<compile_context>
chip_gen: v6e
topology: v6e:2x2x1
jax: 0.10.0
libtpu: 0.0.40
codegen_flags: <defaults>
</compile_context>

<pallas_src>
import functools

import jax
import jax.numpy as jnp
import numpy as np
from jax.experimental import pallas as pl
from jax.experimental.pallas import tpu as pltpu


# -----------------------------------------------------------------------------
# Fused Pallas kernel (whole model in one call)
# -----------------------------------------------------------------------------
def _make_fused_kernel(T, B, H, num_layers):
    """Build the fused kernel, closed over the static model configuration."""

    def kernel(*refs):
        # refs layout: x2d, [6 refs per layer: wf_ih, wf_hh, bf, wb_ih, wb_hh, bb],
        #              dense_w, dense_b, out
        x_ref = refs[0]
        layer_refs = refs[1:1 + 6 * num_layers]
        dense_w_ref = refs[1 + 6 * num_layers]
        dense_b_ref = refs[2 + 6 * num_layers]
        out_ref = refs[3 + 6 * num_layers]

        def run_direction(seq2d, w_ih, w_hh, bias, reverse):
            # Hoisted input projection for the whole sequence: one well-shaped
            # matmul off the serial recurrence.  seq2d: (T*B, Din) -> (T*B, 4H)
            xp = jnp.dot(seq2d, w_ih, preferred_element_type=jnp.float32) + bias

            h = jnp.zeros((B, H), jnp.float32)
            c = jnp.zeros((B, H), jnp.float32)
            hs = [None] * T
            order = range(T - 1, -1, -1) if reverse else range(T)
            for t in order:                       # static unroll; T is small
                gates = xp[t * B:(t + 1) * B, :] + jnp.dot(
                    h, w_hh, preferred_element_type=jnp.float32)   # (B, 4H)
                i = jax.nn.sigmoid(gates[:, 0 * H:1 * H])
                f = jax.nn.sigmoid(gates[:, 1 * H:2 * H])
                g = jnp.tanh(gates[:, 2 * H:3 * H])
                o = jax.nn.sigmoid(gates[:, 3 * H:4 * H])
                c = f * c + i * g
                h = o * jnp.tanh(c)
                hs[t] = h                          # indexed by real time step
            return hs

        seq2d = x_ref[...]                         # (T*B, D), time-major rows
        per_t = None
        for layer in range(num_layers):
            wf_ih = layer_refs[6 * layer + 0][...]
            wf_hh = layer_refs[6 * layer + 1][...]
            bf = layer_refs[6 * layer + 2][...]
            wb_ih = layer_refs[6 * layer + 3][...]
            wb_hh = layer_refs[6 * layer + 4][...]
            bb = layer_refs[6 * layer + 5][...]

            hs_f = run_direction(seq2d, wf_ih, wf_hh, bf, reverse=False)
            hs_b = run_direction(seq2d, wb_ih, wb_hh, bb, reverse=True)

            # per-timestep bidirectional features (B, 2H)
            per_t = [jnp.concatenate([hs_f[t], hs_b[t]], axis=-1)
                     for t in range(T)]
            if layer + 1 < num_layers:
                # next layer's input sequence, still VMEM-resident: (T*B, 2H)
                seq2d = jnp.concatenate(per_t, axis=0)

        # PyTorch: dense(lstm_out[:, -1, :]) -> fwd state at t=T-1 concat with
        # bwd state at t=T-1 (bwd's first processed step).
        last = per_t[T - 1]                        # (B, 2H)
        out_ref[...] = (jnp.dot(last, dense_w_ref[...],
                                preferred_element_type=jnp.float32)
                        + dense_b_ref[...])

    return kernel


# -----------------------------------------------------------------------------
# Wrapper around pallas_call
# -----------------------------------------------------------------------------
@functools.partial(jax.jit, static_argnames=("num_layers",))
def lstm_predictor_forward(x, params, num_layers):
    """x: (B, T, D)  ->  (B, C)   (matches PyTorch LSTMPredictor.forward)."""
    B, T, D = x.shape
    H = params["l0_fwd"][1].shape[0]
    C = params["dense_w"].shape[1]

    # time-major & flattened to 2-D so all in-kernel matmuls are plain 2-D.
    x2d = jnp.transpose(x, (1, 0, 2)).reshape(T * B, D).astype(jnp.float32)

    inputs = [x2d]
    in_specs = [pl.BlockSpec((T * B, D), lambda i: (0, 0))]
    for layer in range(num_layers):
        for direction in ("fwd", "bwd"):
            w_ih, w_hh, b = params[f"l{layer}_{direction}"]
            inputs += [w_ih, w_hh, b]
            in_specs += [
                pl.BlockSpec(w_ih.shape, lambda i: (0, 0)),
                pl.BlockSpec(w_hh.shape, lambda i: (0, 0)),
                pl.BlockSpec(b.shape, lambda i: (0, 0)),
            ]
    inputs += [params["dense_w"], params["dense_b"]]
    in_specs += [pl.BlockSpec(params["dense_w"].shape, lambda i: (0, 0)),
                 pl.BlockSpec(params["dense_b"].shape, lambda i: (0, 0))]

    kernel = _make_fused_kernel(T, B, H, num_layers)
    return pl.pallas_call(
        kernel,
        out_shape=jax.ShapeDtypeStruct((B, C), jnp.float32),
        grid_spec=pltpu.PrefetchScalarGridSpec(
            num_scalar_prefetch=0,
            grid=(1,),                       # single step: no per-step overhead
            in_specs=in_specs,
            out_specs=pl.BlockSpec((B, C), lambda i: (0, 0)),
        ),
        compiler_params=pltpu.CompilerParams(
            dimension_semantics=("arbitrary",)),
    )(*inputs)


# -----------------------------------------------------------------------------
# Parameter init (PyTorch-style U(-1/sqrt(H), 1/sqrt(H)))
# -----------------------------------------------------------------------------
def init_params(key, D, hidden_size, num_layers, C):
    H = hidden_size
    k = 1.0 / np.sqrt(H)
    params = {}

    def u(key, shape):
        return jax.random.uniform(key, shape, jnp.float32, -k, k)

    for layer in range(num_layers):
        d_in = D if layer == 0 else 2 * H
        for direction in ("fwd", "bwd"):
            key, k1, k2, k3, k4 = jax.random.split(key, 5)
            # stored transposed relative to PyTorch: (Din, 4H) and (H, 4H)
            w_ih = u(k1, (d_in, 4 * H))
            w_hh = u(k2, (H, 4 * H))
            b = (u(k3, (1, 4 * H)) + u(k4, (1, 4 * H)))   # b_ih + b_hh
            params[f"l{layer}_{direction}"] = (w_ih, w_hh, b)

    key, k1, k2 = jax.random.split(key, 3)
    kd = 1.0 / np.sqrt(2 * H)
    params["dense_w"] = jax.random.uniform(k1, (2 * H, C), jnp.float32, -kd, kd)
    params["dense_b"] = jax.random.uniform(k2, (1, C), jnp.float32, -kd, kd)
    return params


# -----------------------------------------------------------------------------
# Pure-JAX reference (for correctness check)
# -----------------------------------------------------------------------------
def _ref_direction(seq, w_ih, w_hh, b):
    T, B, _ = seq.shape
    H = w_hh.shape[0]

    def step(carry, x_t):
        h, c = carry
        gates = (jnp.dot(x_t, w_ih, precision=jax.lax.Precision.HIGHEST)
                 + jnp.dot(h, w_hh, precision=jax.lax.Precision.HIGHEST)
                 + b)
        i = jax.nn.sigmoid(gates[:, 0 * H:1 * H])
        f = jax.nn.sigmoid(gates[:, 1 * H:2 * H])
        g = jnp.tanh(gates[:, 2 * H:3 * H])
        o = jax.nn.sigmoid(gates[:, 3 * H:4 * H])
        c = f * c + i * g
        h = o * jnp.tanh(c)
        return (h, c), h

    init = (jnp.zeros((B, H), jnp.float32), jnp.zeros((B, H), jnp.float32))
    _, hs = jax.lax.scan(step, init, seq)
    return hs


def ref_forward(x, params, num_layers):
    seq = jnp.transpose(x, (1, 0, 2)).astype(jnp.float32)
    for layer in range(num_layers):
        wf_ih, wf_hh, bf = params[f"l{layer}_fwd"]
        wb_ih, wb_hh, bb = params[f"l{layer}_bwd"]
        h_fwd = _ref_direction(seq, wf_ih, wf_hh, bf)
        h_bwd = _ref_direction(seq[::-1], wb_ih, wb_hh, bb)[::-1]
        seq = jnp.concatenate([h_fwd, h_bwd], axis=-1)
    last = seq[-1]
    return (jnp.dot(last, params["dense_w"],
                    precision=jax.lax.Precision.HIGHEST)
            + params["dense_b"])


# -----------------------------------------------------------------------------
if __name__ == "__main__":
    # Small shapes consistent with the module: B=2, T=8, D=4, H=32, L=2, C=4
    B, T, D = 2, 8, 4
    hidden_size, num_layers, C = 32, 2, 4

    key = jax.random.PRNGKey(0)
    key, kx, kp = jax.random.split(key, 3)
    x = jax.random.normal(kx, (B, T, D), jnp.float32)
    params = init_params(kp, D, hidden_size, num_layers, C)

    out = lstm_predictor_forward(x, params, num_layers)
    out = jax.block_until_ready(out)
    assert out.shape == (B, C), out.shape

    ref = jax.block_until_ready(ref_forward(x, params, num_layers))
    np.testing.assert_allclose(np.asarray(out), np.asarray(ref),
                               rtol=1e-3, atol=1e-3)

    print("KERNEL_OK")
</pallas_src>

<mosaic_0001>
module attributes {stable_mosaic.version = 11 : i64} {
  func.func @kernel(%arg0: i32, %arg1: memref<16x4xf32, #tpu.memory_space<vmem>>, %arg2: memref<4x128xf32, #tpu.memory_space<vmem>>, %arg3: memref<32x128xf32, #tpu.memory_space<vmem>>, %arg4: memref<1x128xf32, #tpu.memory_space<vmem>>, %arg5: memref<4x128xf32, #tpu.memory_space<vmem>>, %arg6: memref<32x128xf32, #tpu.memory_space<vmem>>, %arg7: memref<1x128xf32, #tpu.memory_space<vmem>>, %arg8: memref<64x128xf32, #tpu.memory_space<vmem>>, %arg9: memref<32x128xf32, #tpu.memory_space<vmem>>, %arg10: memref<1x128xf32, #tpu.memory_space<vmem>>, %arg11: memref<64x128xf32, #tpu.memory_space<vmem>>, %arg12: memref<32x128xf32, #tpu.memory_space<vmem>>, %arg13: memref<1x128xf32, #tpu.memory_space<vmem>>, %arg14: memref<64x4xf32, #tpu.memory_space<vmem>>, %arg15: memref<1x4xf32, #tpu.memory_space<vmem>>, %arg16: memref<2x4xf32, #tpu.memory_space<vmem>>) attributes {dimension_semantics = [#tpu.dimension_semantics<arbitrary>], iteration_bounds = array<i64: 1>, scalar_prefetch = 0 : i64, scratch_operands = 0 : i64, tpu.core_type = #tpu.core_type<tc>, window_params = [{pipeline_mode = #tpu.pipeline_mode<synchronous>, transform_indices = @transform_0, window_bounds = array<i64: 16, 4>}, {pipeline_mode = #tpu.pipeline_mode<synchronous>, transform_indices = @transform_1, window_bounds = array<i64: 4, 128>}, {pipeline_mode = #tpu.pipeline_mode<synchronous>, transform_indices = @transform_2, window_bounds = array<i64: 32, 128>}, {pipeline_mode = #tpu.pipeline_mode<synchronous>, transform_indices = @transform_3, window_bounds = array<i64: 1, 128>}, {pipeline_mode = #tpu.pipeline_mode<synchronous>, transform_indices = @transform_4, window_bounds = array<i64: 4, 128>}, {pipeline_mode = #tpu.pipeline_mode<synchronous>, transform_indices = @transform_5, window_bounds = array<i64: 32, 128>}, {pipeline_mode = #tpu.pipeline_mode<synchronous>, transform_indices = @transform_6, window_bounds = array<i64: 1, 128>}, {pipeline_mode = #tpu.pipeline_mode<synchronous>, transform_indices = @transform_7, window_bounds = array<i64: 64, 128>}, {pipeline_mode = #tpu.pipeline_mode<synchronous>, transform_indices = @transform_8, window_bounds = array<i64: 32, 128>}, {pipeline_mode = #tpu.pipeline_mode<synchronous>, transform_indices = @transform_9, window_bounds = array<i64: 1, 128>}, {pipeline_mode = #tpu.pipeline_mode<synchronous>, transform_indices = @transform_10, window_bounds = array<i64: 64, 128>}, {pipeline_mode = #tpu.pipeline_mode<synchronous>, transform_indices = @transform_11, window_bounds = array<i64: 32, 128>}, {pipeline_mode = #tpu.pipeline_mode<synchronous>, transform_indices = @transform_12, window_bounds = array<i64: 1, 128>}, {pipeline_mode = #tpu.pipeline_mode<synchronous>, transform_indices = @transform_13, window_bounds = array<i64: 64, 4>}, {pipeline_mode = #tpu.pipeline_mode<synchronous>, transform_indices = @transform_14, window_bounds = array<i64: 1, 4>}, {pipeline_mode = #tpu.pipeline_mode<synchronous>, transform_indices = @transform_15, window_bounds = array<i64: 2, 4>}]} {
    %c0 = arith.constant 0 : index
    %c0_0 = arith.constant 0 : index
    %0 = vector.load %arg1[%c0, %c0_0] : memref<16x4xf32, #tpu.memory_space<vmem>>, vector<16x4xf32>
    %c0_1 = arith.constant 0 : index
    %c0_2 = arith.constant 0 : index
    %1 = vector.load %arg2[%c0_1, %c0_2] : memref<4x128xf32, #tpu.memory_space<vmem>>, vector<4x128xf32>
    %c0_3 = arith.constant 0 : index
    %c0_4 = arith.constant 0 : index
    %2 = vector.load %arg3[%c0_3, %c0_4] : memref<32x128xf32, #tpu.memory_space<vmem>>, vector<32x128xf32>
    %c0_5 = arith.constant 0 : index
    %c0_6 = arith.constant 0 : index
    %3 = vector.load %arg4[%c0_5, %c0_6] : memref<1x128xf32, #tpu.memory_space<vmem>>, vector<1x128xf32>
    %c0_7 = arith.constant 0 : index
    %c0_8 = arith.constant 0 : index
    %4 = vector.load %arg5[%c0_7, %c0_8] : memref<4x128xf32, #tpu.memory_space<vmem>>, vector<4x128xf32>
    %c0_9 = arith.constant 0 : index
    %c0_10 = arith.constant 0 : index
    %5 = vector.load %arg6[%c0_9, %c0_10] : memref<32x128xf32, #tpu.memory_space<vmem>>, vector<32x128xf32>
    %c0_11 = arith.constant 0 : index
    %c0_12 = arith.constant 0 : index
    %6 = vector.load %arg7[%c0_11, %c0_12] : memref<1x128xf32, #tpu.memory_space<vmem>>, vector<1x128xf32>
    %cst = arith.constant dense<0.000000e+00> : vector<16x128xf32>
    %7 = tpu.matmul %0, %1, %cst {dimension_numbers = #tpu.dot_dimension_numbers<[1], [0], [0], [1], [0, 0, 1, 1], [], []>} : vector<16x4xf32>, vector<4x128xf32>, vector<16x128xf32> -> vector<16x128xf32>
    %8 = vector.broadcast %3 : vector<1x128xf32> to vector<16x128xf32>
    %9 = arith.addf %7, %8 : vector<16x128xf32>
    %cst_13 = arith.constant 0.000000e+00 : f32
    %10 = vector.broadcast %cst_13 : f32 to vector<2x32xf32>
    %cst_14 = arith.constant 0.000000e+00 : f32
    %11 = vector.broadcast %cst_14 : f32 to vector<2x32xf32>
    %12 = vector.extract_strided_slice %9 {offsets = [0, 0], sizes = [2, 128], strides = [1, 1]} : vector<16x128xf32> to vector<2x128xf32>
    %cst_15 = arith.constant dense<0.000000e+00> : vector<2x128xf32>
    %13 = tpu.matmul %10, %2, %cst_15 {dimension_numbers = #tpu.dot_dimension_numbers<[1], [0], [0], [1], [0, 0, 1, 1], [], []>} : vector<2x32xf32>, vector<32x128xf32>, vector<2x128xf32> -> vector<2x128xf32>
    %14 = arith.addf %12, %13 : vector<2x128xf32>
    %15 = vector.extract_strided_slice %14 {offsets = [0, 0], sizes = [2, 32], strides = [1, 1]} : vector<2x128xf32> to vector<2x32xf32>
    %16 = arith.negf %15 : vector<2x32xf32>
    %17 = math.exp %16 : vector<2x32xf32>
    %cst_16 = arith.constant 1.000000e+00 : f32
    %18 = vector.broadcast %cst_16 : f32 to vector<2x32xf32>
    %19 = arith.addf %18, %17 : vector<2x32xf32>
    %20 = arith.divf %18, %19 : vector<2x32xf32>
    %21 = vector.extract_strided_slice %14 {offsets = [0, 32], sizes = [2, 32], strides = [1, 1]} : vector<2x128xf32> to vector<2x32xf32>
    %22 = arith.negf %21 : vector<2x32xf32>
    %23 = math.exp %22 : vector<2x32xf32>
    %cst_17 = arith.constant 1.000000e+00 : f32
    %24 = vector.broadcast %cst_17 : f32 to vector<2x32xf32>
    %25 = arith.addf %24, %23 : vector<2x32xf32>
    %26 = arith.divf %24, %25 : vector<2x32xf32>
    %27 = vector.extract_strided_slice %14 {offsets = [0, 64], sizes = [2, 32], strides = [1, 1]} : vector<2x128xf32> to vector<2x32xf32>
    %28 = math.tanh %27 : vector<2x32xf32>
    %29 = vector.extract_strided_slice %14 {offsets = [0, 96], sizes = [2, 32], strides = [1, 1]} : vector<2x128xf32> to vector<2x32xf32>
    %30 = arith.negf %29 : vector<2x32xf32>
    %31 = math.exp %30 : vector<2x32xf32>
    %cst_18 = arith.constant 1.000000e+00 : f32
    %32 = vector.broadcast %cst_18 : f32 to vector<2x32xf32>
    %33 = arith.addf %32, %31 : vector<2x32xf32>
    %34 = arith.divf %32, %33 : vector<2x32xf32>
    %35 = arith.mulf %26, %11 : vector<2x32xf32>
    %36 = arith.mulf %20, %28 : vector<2x32xf32>
    %37 = arith.addf %35, %36 : vector<2x32xf32>
    %38 = math.tanh %37 : vector<2x32xf32>
    %39 = arith.mulf %34, %38 : vector<2x32xf32>
    %40 = vector.extract_strided_slice %9 {offsets = [2, 0], sizes = [2, 128], strides = [1, 1]} : vector<16x128xf32> to vector<2x128xf32>
    %cst_19 = arith.constant dense<0.000000e+00> : vector<2x128xf32>
    %41 = tpu.matmul %39, %2, %cst_19 {dimension_numbers = #tpu.dot_dimension_numbers<[1], [0], [0], [1], [0, 0, 1, 1], [], []>} : vector<2x32xf32>, vector<32x128xf32>, vector<2x128xf32> -> vector<2x128xf32>
    %42 = arith.addf %40, %41 : vector<2x128xf32>
    %43 = vector.extract_strided_slice %42 {offsets = [0, 0], sizes = [2, 32], strides = [1, 1]} : vector<2x128xf32> to vector<2x32xf32>
    %44 = arith.negf %43 : vector<2x32xf32>
    %45 = math.exp %44 : vector<2x32xf32>
    %cst_20 = arith.constant 1.000000e+00 : f32
    %46 = vector.broadcast %cst_20 : f32 to vector<2x32xf32>
    %47 = arith.addf %46, %45 : vector<2x32xf32>
    %48 = arith.divf %46, %47 : vector<2x32xf32>
    %49 = vector.extract_strided_slice %42 {offsets = [0, 32], sizes = [2, 32], strides = [1, 1]} : vector<2x128xf32> to vector<2x32xf32>
    %50 = arith.negf %49 : vector<2x32xf32>
    %51 = math.exp %50 : vector<2x32xf32>
    %cst_21 = arith.constant 1.000000e+00 : f32
    %52 = vector.broadcast %cst_21 : f32 to vector<2x32xf32>
    %53 = arith.addf %52, %51 : vector<2x32xf32>
    %54 = arith.divf %52, %53 : vector<2x32xf32>
    %55 = vector.extract_strided_slice %42 {offsets = [0, 64], sizes = [2, 32], strides = [1, 1]} : vector<2x128xf32> to vector<2x32xf32>
    %56 = math.tanh %55 : vector<2x32xf32>
    %57 = vector.extract_strided_slice %42 {offsets = [0, 96], sizes = [2, 32], strides = [1, 1]} : vector<2x128xf32> to vector<2x32xf32>
    %58 = arith.negf %57 : vector<2x32xf32>
    %59 = math.exp %58 : vector<2x32xf32>
    %cst_22 = arith.constant 1.000000e+00 : f32
    %60 = vector.broadcast %cst_22 : f32 to vector<2x32xf32>
    %61 = arith.addf %60, %59 : vector<2x32xf32>
    %62 = arith.divf %60, %61 : vector<2x32xf32>
    %63 = arith.mulf %54, %37 : vector<2x32xf32>
    %64 = arith.mulf %48, %56 : vector<2x32xf32>
    %65 = arith.addf %63, %64 : vector<2x32xf32>
    %66 = math.tanh %65 : vector<2x32xf32>
    %67 = arith.mulf %62, %66 : vector<2x32xf32>
    %68 = vector.extract_strided_slice %9 {offsets = [4, 0], sizes = [2, 128], strides = [1, 1]} : vector<16x128xf32> to vector<2x128xf32>
    %cst_23 = arith.constant dense<0.000000e+00> : vector<2x128xf32>
    %69 = tpu.matmul %67, %2, %cst_23 {dimension_numbers = #tpu.dot_dimension_numbers<[1], [0], [0], [1], [0, 0, 1, 1], [], []>} : vector<2x32xf32>, vector<32x128xf32>, vector<2x128xf32> -> vector<2x128xf32>
    %70 = arith.addf %68, %69 : vector<2x128xf32>
    %71 = vector.extract_strided_slice %70 {offsets = [0, 0], sizes = [2, 32], strides = [1, 1]} : vector<2x128xf32> to vector<2x32xf32>
    %72 = arith.negf %71 : vector<2x32xf32>
    %73 = math.exp %72 : vector<2x32xf32>
    %cst_24 = arith.constant 1.000000e+00 : f32
    %74 = vector.broadcast %cst_24 : f32 to vector<2x32xf32>
    %75 = arith.addf %74, %73 : vector<2x32xf32>
    %76 = arith.divf %74, %75 : vector<2x32xf32>
    %77 = vector.extract_strided_slice %70 {offsets = [0, 32], sizes = [2, 32], strides = [1, 1]} : vector<2x128xf32> to vector<2x32xf32>
    %78 = arith.negf %77 : vector<2x32xf32>
    %79 = math.exp %78 : vector<2x32xf32>
    %cst_25 = arith.constant 1.000000e+00 : f32
    %80 = vector.broadcast %cst_25 : f32 to vector<2x32xf32>
    %81 = arith.addf %80, %79 : vector<2x32xf32>
    %82 = arith.divf %80, %81 : vector<2x32xf32>
    %83 = vector.extract_strided_slice %70 {offsets = [0, 64], sizes = [2, 32], strides = [1, 1]} : vector<2x128xf32> to vector<2x32xf32>
    %84 = math.tanh %83 : vector<2x32xf32>
    %85 = vector.extract_strided_slice %70 {offsets = [0, 96], sizes = [2, 32], strides = [1, 1]} : vector<2x128xf32> to vector<2x32xf32>
    %86 = arith.negf %85 : vector<2x32xf32>
    %87 = math.exp %86 : vector<2x32xf32>
    %cst_26 = arith.constant 1.000000e+00 : f32
    %88 = vector.broadcast %cst_26 : f32 to vector<2x32xf32>
    %89 = arith.addf %88, %87 : vector<2x32xf32>
    %90 = arith.divf %88, %89 : vector<2x32xf32>
    %91 = arith.mulf %82, %65 : vector<2x32xf32>
    %92 = arith.mulf %76, %84 : vector<2x32xf32>
    %93 = arith.addf %91, %92 : vector<2x32xf32>
    %94 = math.tanh %93 : vector<2x32xf32>
    %95 = arith.mulf %90, %94 : vector<2x32xf32>
    %96 = vector.extract_strided_slice %9 {offsets = [6, 0], sizes = [2, 128], strides = [1, 1]} : vector<16x128xf32> to vector<2x128xf32>
    %cst_27 = arith.constant dense<0.000000e+00> : vector<2x128xf32>
    %97 = tpu.matmul %95, %2, %cst_27 {dimension_numbers = #tpu.dot_dimension_numbers<[1], [0], [0], [1], [0, 0, 1, 1], [], []>} : vector<2x32xf32>, vector<32x128xf32>, vector<2x128xf32> -> vector<2x128xf32>
    %98 = arith.addf %96, %97 : vector<2x128xf32>
    %99 = vector.extract_strided_slice %98 {offsets = [0, 0], sizes = [2, 32], strides = [1, 1]} : vector<2x128xf32> to vector<2x32xf32>
    %100 = arith.negf %99 : vector<2x32xf32>
    %101 = math.exp %100 : vector<2x32xf32>
    %cst_28 = arith.constant 1.000000e+00 : f32
    %102 = vector.broadcast %cst_28 : f32 to vector<2x32xf32>
    %103 = arith.addf %102, %101 : vector<2x32xf32>
    %104 = arith.divf %102, %103 : vector<2x32xf32>
    %105 = vector.extract_strided_slice %98 {offsets = [0, 32], sizes = [2, 32], strides = [1, 1]} : vector<2x128xf32> to vector<2x32xf32>
    %106 = arith.negf %105 : vector<2x32xf32>
    %107 = math.exp %106 : vector<2x32xf32>
    %cst_29 = arith.constant 1.000000e+00 : f32
    %108 = vector.broadcast %cst_29 : f32 to vector<2x32xf32>
    %109 = arith.addf %108, %107 : vector<2x32xf32>
    %110 = arith.divf %108, %109 : vector<2x32xf32>
    %111 = vector.extract_strided_slice %98 {offsets = [0, 64], sizes = [2, 32], strides = [1, 1]} : vector<2x128xf32> to vector<2x32xf32>
    %112 = math.tanh %111 : vector<2x32xf32>
    %113 = vector.extract_strided_slice %98 {offsets = [0, 96], sizes = [2, 32], strides = [1, 1]} : vector<2x128xf32> to vector<2x32xf32>
    %114 = arith.negf %113 : vector<2x32xf32>
    %115 = math.exp %114 : vector<2x32xf32>
    %cst_30 = arith.constant 1.000000e+00 : f32
    %116 = vector.broadcast %cst_30 : f32 to vector<2x32xf32>
    %117 = arith.addf %116, %115 : vector<2x32xf32>
    %118 = arith.divf %116, %117 : vector<2x32xf32>
    %119 = arith.mulf %110, %93 : vector<2x32xf32>
    %120 = arith.mulf %104, %112 : vector<2x32xf32>
    %121 = arith.addf %119, %120 : vector<2x32xf32>
    %122 = math.tanh %121 : vector<2x32xf32>
    %123 = arith.mulf %118, %122 : vector<2x32xf32>
    %124 = vector.extract_strided_slice %9 {offsets = [8, 0], sizes = [2, 128], strides = [1, 1]} : vector<16x128xf32> to vector<2x128xf32>
    %cst_31 = arith.constant dense<0.000000e+00> : vector<2x128xf32>
    %125 = tpu.matmul %123, %2, %cst_31 {dimension_numbers = #tpu.dot_dimension_numbers<[1], [0], [0], [1], [0, 0, 1, 1], [], []>} : vector<2x32xf32>, vector<32x128xf32>, vector<2x128xf32> -> vector<2x128xf32>
    %126 = arith.addf %124, %125 : vector<2x128xf32>
    %127 = vector.extract_strided_slice %126 {offsets = [0, 0], sizes = [2, 32], strides = [1, 1]} : vector<2x128xf32> to vector<2x32xf32>
    %128 = arith.negf %127 : vector<2x32xf32>
    %129 = math.exp %128 : vector<2x32xf32>
    %cst_32 = arith.constant 1.000000e+00 : f32
    %130 = vector.broadcast %cst_32 : f32 to vector<2x32xf32>
    %131 = arith.addf %130, %129 : vector<2x32xf32>
    %132 = arith.divf %130, %131 : vector<2x32xf32>
    %133 = vector.extract_strided_slice %126 {offsets = [0, 32], sizes = [2, 32], strides = [1, 1]} : vector<2x128xf32> to vector<2x32xf32>
    %134 = arith.negf %133 : vector<2x32xf32>
    %135 = math.exp %134 : vector<2x32xf32>
    %cst_33 = arith.constant 1.000000e+00 : f32
    %136 = vector.broadcast %cst_33 : f32 to vector<2x32xf32>
    %137 = arith.addf %136, %135 : vector<2x32xf32>
    %138 = arith.divf %136, %137 : vector<2x32xf32>
    %139 = vector.extract_strided_slice %126 {offsets = [0, 64], sizes = [2, 32], strides = [1, 1]} : vector<2x128xf32> to vector<2x32xf32>
    %140 = math.tanh %139 : vector<2x32xf32>
    %141 = vector.extract_strided_slice %126 {offsets = [0, 96], sizes = [2, 32], strides = [1, 1]} : vector<2x128xf32> to vector<2x32xf32>
    %142 = arith.negf %141 : vector<2x32xf32>
    %143 = math.exp %142 : vector<2x32xf32>
    %cst_34 = arith.constant 1.000000e+00 : f32
    %144 = vector.broadcast %cst_34 : f32 to vector<2x32xf32>
    %145 = arith.addf %144, %143 : vector<2x32xf32>
    %146 = arith.divf %144, %145 : vector<2x32xf32>
    %147 = arith.mulf %138, %121 : vector<2x32xf32>
    %148 = arith.mulf %132, %140 : vector<2x32xf32>
    %149 = arith.addf %147, %148 : vector<2x32xf32>
    %150 = math.tanh %149 : vector<2x32xf32>
    %151 = arith.mulf %146, %150 : vector<2x32xf32>
    %152 = vector.extract_strided_slice %9 {offsets = [10, 0], sizes = [2, 128], strides = [1, 1]} : vector<16x128xf32> to vector<2x128xf32>
    %cst_35 = arith.constant dense<0.000000e+00> : vector<2x128xf32>
    %153 = tpu.matmul %151, %2, %cst_35 {dimension_numbers = #tpu.dot_dimension_numbers<[1], [0], [0], [1], [0, 0, 1, 1], [], []>} : vector<2x32xf32>, vector<32x128xf32>, vector<2x128xf32> -> vector<2x128xf32>
    %154 = arith.addf %152, %153 : vector<2x128xf32>
    %155 = vector.extract_strided_slice %154 {offsets = [0, 0], sizes = [2, 32], strides = [1, 1]} : vector<2x128xf32> to vector<2x32xf32>
    %156 = arith.negf %155 : vector<2x32xf32>
    %157 = math.exp %156 : vector<2x32xf32>
    %cst_36 = arith.constant 1.000000e+00 : f32
    %158 = vector.broadcast %cst_36 : f32 to vector<2x32xf32>
    %159 = arith.addf %158, %157 : vector<2x32xf32>
    %160 = arith.divf %158, %159 : vector<2x32xf32>
    %161 = vector.extract_strided_slice %154 {offsets = [0, 32], sizes = [2, 32], strides = [1, 1]} : vector<2x128xf32> to vector<2x32xf32>
    %162 = arith.negf %161 : vector<2x32xf32>
    %163 = math.exp %162 : vector<2x32xf32>
    %cst_37 = arith.constant 1.000000e+00 : f32
    %164 = vector.broadcast %cst_37 : f32 to vector<2x32xf32>
    %165 = arith.addf %164, %163 : vector<2x32xf32>
    %166 = arith.divf %164, %165 : vector<2x32xf32>
    %167 = vector.extract_strided_slice %154 {offsets = [0, 64], sizes = [2, 32], strides = [1, 1]} : vector<2x128xf32> to vector<2x32xf32>
    %168 = math.tanh %167 : vector<2x32xf32>
    %169 = vector.extract_strided_slice %154 {offsets = [0, 96], sizes = [2, 32], strides = [1, 1]} : vector<2x128xf32> to vector<2x32xf32>
    %170 = arith.negf %169 : vector<2x32xf32>
    %171 = math.exp %170 : vector<2x32xf32>
    %cst_38 = arith.constant 1.000000e+00 : f32
    %172 = vector.broadcast %cst_38 : f32 to vector<2x32xf32>
    %173 = arith.addf %172, %171 : vector<2x32xf32>
    %174 = arith.divf %172, %173 : vector<2x32xf32>
    %175 = arith.mulf %166, %149 : vector<2x32xf32>
    %176 = arith.mulf %160, %168 : vector<2x32xf32>
    %177 = arith.addf %175, %176 : vector<2x32xf32>
    %178 = math.tanh %177 : vector<2x32xf32>
    %179 = arith.mulf %174, %178 : vector<2x32xf32>
    %180 = vector.extract_strided_slice %9 {offsets = [12, 0], sizes = [2, 128], strides = [1, 1]} : vector<16x128xf32> to vector<2x128xf32>
    %cst_39 = arith.constant dense<0.000000e+00> : vector<2x128xf32>
    %181 = tpu.matmul %179, %2, %cst_39 {dimension_numbers = #tpu.dot_dimension_numbers<[1], [0], [0], [1], [0, 0, 1, 1], [], []>} : vector<2x32xf32>, vector<32x128xf32>, vector<2x128xf32> -> vector<2x128xf32>
    %182 = arith.addf %180, %181 : vector<2x128xf32>
    %183 = vector.extract_strided_slice %182 {offsets = [0, 0], sizes = [2, 32], strides = [1, 1]} : vector<2x128xf32> to vector<2x32xf32>
    %184 = arith.negf %183 : vector<2x32xf32>
    %185 = math.exp %184 : vector<2x32xf32>
    %cst_40 = arith.constant 1.000000e+00 : f32
    %186 = vector.broadcast %cst_40 : f32 to vector<2x32xf32>
    %187 = arith.addf %186, %185 : vector<2x32xf32>
    %188 = arith.divf %186, %187 : vector<2x32xf32>
    %189 = vector.extract_strided_slice %182 {offsets = [0, 32], sizes = [2, 32], strides = [1, 1]} : vector<2x128xf32> to vector<2x32xf32>
    %190 = arith.negf %189 : vector<2x32xf32>
    %191 = math.exp %190 : vector<2x32xf32>
    %cst_41 = arith.constant 1.000000e+00 : f32
    %192 = vector.broadcast %cst_41 : f32 to vector<2x32xf32>
    %193 = arith.addf %192, %191 : vector<2x32xf32>
    %194 = arith.divf %192, %193 : vector<2x32xf32>
    %195 = vector.extract_strided_slice %182 {offsets = [0, 64], sizes = [2, 32], strides = [1, 1]} : vector<2x128xf32> to vector<2x32xf32>
    %196 = math.tanh %195 : vector<2x32xf32>
    %197 = vector.extract_strided_slice %182 {offsets = [0, 96], sizes = [2, 32], strides = [1, 1]} : vector<2x128xf32> to vector<2x32xf32>
    %198 = arith.negf %197 : vector<2x32xf32>
    %199 = math.exp %198 : vector<2x32xf32>
    %cst_42 = arith.constant 1.000000e+00 : f32
    %200 = vector.broadcast %cst_42 : f32 to vector<2x32xf32>
    %201 = arith.addf %200, %199 : vector<2x32xf32>
    %202 = arith.divf %200, %201 : vector<2x32xf32>
    %203 = arith.mulf %194, %177 : vector<2x32xf32>
    %204 = arith.mulf %188, %196 : vector<2x32xf32>
    %205 = arith.addf %203, %204 : vector<2x32xf32>
    %206 = math.tanh %205 : vector<2x32xf32>
    %207 = arith.mulf %202, %206 : vector<2x32xf32>
    %208 = vector.extract_strided_slice %9 {offsets = [14, 0], sizes = [2, 128], strides = [1, 1]} : vector<16x128xf32> to vector<2x128xf32>
    %cst_43 = arith.constant dense<0.000000e+00> : vector<2x128xf32>
    %209 = tpu.matmul %207, %2, %cst_43 {dimension_numbers = #tpu.dot_dimension_numbers<[1], [0], [0], [1], [0, 0, 1, 1], [], []>} : vector<2x32xf32>, vector<32x128xf32>, vector<2x128xf32> -> vector<2x128xf32>
    %210 = arith.addf %208, %209 : vector<2x128xf32>
    %211 = vector.extract_strided_slice %210 {offsets = [0, 0], sizes = [2, 32], strides = [1, 1]} : vector<2x128xf32> to vector<2x32xf32>
    %212 = arith.negf %211 : vector<2x32xf32>
    %213 = math.exp %212 : vector<2x32xf32>
    %cst_44 = arith.constant 1.000000e+00 : f32
    %214 = vector.broadcast %cst_44 : f32 to vector<2x32xf32>
    %215 = arith.addf %214, %213 : vector<2x32xf32>
    %216 = arith.divf %214, %215 : vector<2x32xf32>
    %217 = vector.extract_strided_slice %210 {offsets = [0, 32], sizes = [2, 32], strides = [1, 1]} : vector<2x128xf32> to vector<2x32xf32>
    %218 = arith.negf %217 : vector<2x32xf32>
    %219 = math.exp %218 : vector<2x32xf32>
    %cst_45 = arith.constant 1.000000e+00 : f32
    %220 = vector.broadcast %cst_45 : f32 to vector<2x32xf32>
    %221 = arith.addf %220, %219 : vector<2x32xf32>
    %222 = arith.divf %220, %221 : vector<2x32xf32>
    %223 = vector.extract_strided_slice %210 {offsets = [0, 64], sizes = [2, 32], strides = [1, 1]} : vector<2x128xf32> to vector<2x32xf32>
    %224 = math.tanh %223 : vector<2x32xf32>
    %225 = vector.extract_strided_slice %210 {offsets = [0, 96], sizes = [2, 32], strides = [1, 1]} : vector<2x128xf32> to vector<2x32xf32>
    %226 = arith.negf %225 : vector<2x32xf32>
    %227 = math.exp %226 : vector<2x32xf32>
    %cst_46 = arith.constant 1.000000e+00 : f32
    %228 = vector.broadcast %cst_46 : f32 to vector<2x32xf32>
    %229 = arith.addf %228, %227 : vector<2x32xf32>
    %230 = arith.divf %228, %229 : vector<2x32xf32>
    %231 = arith.mulf %222, %205 : vector<2x32xf32>
    %232 = arith.mulf %216, %224 : vector<2x32xf32>
    %233 = arith.addf %231, %232 : vector<2x32xf32>
    %234 = math.tanh %233 : vector<2x32xf32>
    %235 = arith.mulf %230, %234 : vector<2x32xf32>
    %cst_47 = arith.constant dense<0.000000e+00> : vector<16x128xf32>
    %236 = tpu.matmul %0, %4, %cst_47 {dimension_numbers = #tpu.dot_dimension_numbers<[1], [0], [0], [1], [0, 0, 1, 1], [], []>} : vector<16x4xf32>, vector<4x128xf32>, vector<16x128xf32> -> vector<16x128xf32>
    %237 = vector.broadcast %6 : vector<1x128xf32> to vector<16x128xf32>
    %238 = arith.addf %236, %237 : vector<16x128xf32>
    %cst_48 = arith.constant 0.000000e+00 : f32
    %239 = vector.broadcast %cst_48 : f32 to vector<2x32xf32>
    %cst_49 = arith.constant 0.000000e+00 : f32
    %240 = vector.broadcast %cst_49 : f32 to vector<2x32xf32>
    %241 = vector.extract_strided_slice %238 {offsets = [14, 0], sizes = [2, 128], strides = [1, 1]} : vector<16x128xf32> to vector<2x128xf32>
    %cst_50 = arith.constant dense<0.000000e+00> : vector<2x128xf32>
    %242 = tpu.matmul %239, %5, %cst_50 {dimension_numbers = #tpu.dot_dimension_numbers<[1], [0], [0], [1], [0, 0, 1, 1], [], []>} : vector<2x32xf32>, vector<32x128xf32>, vector<2x128xf32> -> vector<2x128xf32>
    %243 = arith.addf %241, %242 : vector<2x128xf32>
    %244 = vector.extract_strided_slice %243 {offsets = [0, 0], sizes = [2, 32], strides = [1, 1]} : vector<2x128xf32> to vector<2x32xf32>
    %245 = arith.negf %244 : vector<2x32xf32>
    %246 = math.exp %245 : vector<2x32xf32>
    %cst_51 = arith.constant 1.000000e+00 : f32
    %247 = vector.broadcast %cst_51 : f32 to vector<2x32xf32>
    %248 = arith.addf %247, %246 : vector<2x32xf32>
    %249 = arith.divf %247, %248 : vector<2x32xf32>
    %250 = vector.extract_strided_slice %243 {offsets = [0, 32], sizes = [2, 32], strides = [1, 1]} : vector<2x128xf32> to vector<2x32xf32>
    %251 = arith.negf %250 : vector<2x32xf32>
    %252 = math.exp %251 : vector<2x32xf32>
    %cst_52 = arith.constant 1.000000e+00 : f32
    %253 = vector.broadcast %cst_52 : f32 to vector<2x32xf32>
    %254 = arith.addf %253, %252 : vector<2x32xf32>
    %255 = arith.divf %253, %254 : vector<2x32xf32>
    %256 = vector.extract_strided_slice %243 {offsets = [0, 64], sizes = [2, 32], strides = [1, 1]} : vector<2x128xf32> to vector<2x32xf32>
    %257 = math.tanh %256 : vector<2x32xf32>
    %258 = vector.extract_strided_slice %243 {offsets = [0, 96], sizes = [2, 32], strides = [1, 1]} : vector<2x128xf32> to vector<2x32xf32>
    %259 = arith.negf %258 : vector<2x32xf32>
    %260 = math.exp %259 : vector<2x32xf32>
    %cst_53 = arith.constant 1.000000e+00 : f32
    %261 = vector.broadcast %cst_53 : f32 to vector<2x32xf32>
    %262 = arith.addf %261, %260 : vector<2x32xf32>
    %263 = arith.divf %261, %262 : vector<2x32xf32>
    %264 = arith.mulf %255, %240 : vector<2x32xf32>
    %265 = arith.mulf %249, %257 : vector<2x32xf32>
    %266 = arith.addf %264, %265 : vector<2x32xf32>
    %267 = math.tanh %266 : vector<2x32xf32>
    %268 = arith.mulf %263, %267 : vector<2x32xf32>
    %269 = vector.extract_strided_slice %238 {offsets = [12, 0], sizes = [2, 128], strides = [1, 1]} : vector<16x128xf32> to vector<2x128xf32>
    %cst_54 = arith.constant dense<0.000000e+00> : vector<2x128xf32>
    %270 = tpu.matmul %268, %5, %cst_54 {dimension_numbers = #tpu.dot_dimension_numbers<[1], [0], [0], [1], [0, 0, 1, 1], [], []>} : vector<2x32xf32>, vector<32x128xf32>, vector<2x128xf32> -> vector<2x128xf32>
    %271 = arith.addf %269, %270 : vector<2x128xf32>
    %272 = vector.extract_strided_slice %271 {offsets = [0, 0], sizes = [2, 32], strides = [1, 1]} : vector<2x128xf32> to vector<2x32xf32>
    %273 = arith.negf %272 : vector<2x32xf32>
    %274 = math.exp %273 : vector<2x32xf32>
    %cst_55 = arith.constant 1.000000e+00 : f32
    %275 = vector.broadcast %cst_55 : f32 to vector<2x32xf32>
    %276 = arith.addf %275, %274 : vector<2x32xf32>
    %277 = arith.divf %275, %276 : vector<2x32xf32>
    %278 = vector.extract_strided_slice %271 {offsets = [0, 32], sizes = [2, 32], strides = [1, 1]} : vector<2x128xf32> to vector<2x32xf32>
    %279 = arith.negf %278 : vector<2x32xf32>
    %280 = math.exp %279 : vector<2x32xf32>
    %cst_56 = arith.constant 1.000000e+00 : f32
    %281 = vector.broadcast %cst_56 : f32 to vector<2x32xf32>
    %282 = arith.addf %281, %280 : vector<2x32xf32>
    %283 = arith.divf %281, %282 : vector<2x32xf32>
    %284 = vector.extract_strided_slice %271 {offsets = [0, 64], sizes = [2, 32], strides = [1, 1]} : vector<2x128xf32> to vector<2x32xf32>
    %285 = math.tanh %284 : vector<2x32xf32>
    %286 = vector.extract_strided_slice %271 {offsets = [0, 96], sizes = [2, 32], strides = [1, 1]} : vector<2x128xf32> to vector<2x32xf32>
    %287 = arith.negf %286 : vector<2x32xf32>
    %288 = math.exp %287 : vector<2x32xf32>
    %cst_57 = arith.constant 1.000000e+00 : f32
    %289 = vector.broadcast %cst_57 : f32 to vector<2x32xf32>
    %290 = arith.addf %289, %288 : vector<2x32xf32>
    %291 = arith.divf %289, %290 : vector<2x32xf32>
    %292 = arith.mulf %283, %266 : vector<2x32xf32>
    %293 = arith.mulf %277, %285 : vector<2x32xf32>
    %294 = arith.addf %292, %293 : vector<2x32xf32>
    %295 = math.tanh %294 : vector<2x32xf32>
    %296 = arith.mulf %291, %295 : vector<2x32xf32>
    %297 = vector.extract_strided_slice %238 {offsets = [10, 0], sizes = [2, 128], strides = [1, 1]} : vector<16x128xf32> to vector<2x128xf32>
    %cst_58 = arith.constant dense<0.000000e+00> : vector<2x128xf32>
    %298 = tpu.matmul %296, %5, %cst_58 {dimension_numbers = #tpu.dot_dimension_numbers<[1], [0], [0], [1], [0, 0, 1, 1], [], []>} : vector<2x32xf32>, vector<32x128xf32>, vector<2x128xf32> -> vector<2x128xf32>
    %299 = arith.addf %297, %298 : vector<2x128xf32>
    %300 = vector.extract_strided_slice %299 {offsets = [0, 0], sizes = [2, 32], strides = [1, 1]} : vector<2x128xf32> to vector<2x32xf32>
    %301 = arith.negf %300 : vector<2x32xf32>
    %302 = math.exp %301 : vector<2x32xf32>
    %cst_59 = arith.constant 1.000000e+00 : f32
    %303 = vector.broadcast %cst_59 : f32 to vector<2x32xf32>
    %304 = arith.addf %303, %302 : vector<2x32xf32>
    %305 = arith.divf %303, %304 : vector<2x32xf32>
    %306 = vector.extract_strided_slice %299 {offsets = [0, 32], sizes = [2, 32], strides = [1, 1]} : vector<2x128xf32> to vector<2x32xf32>
    %307 = arith.negf %306 : vector<2x32xf32>
    %308 = math.exp %307 : vector<2x32xf32>
    %cst_60 = arith.constant 1.000000e+00 : f32
    %309 = vector.broadcast %cst_60 : f32 to vector<2x32xf32>
    %310 = arith.addf %309, %308 : vector<2x32xf32>
    %311 = arith.divf %309, %310 : vector<2x32xf32>
    %312 = vector.extract_strided_slice %299 {offsets = [0, 64], sizes = [2, 32], strides = [1, 1]} : vector<2x128xf32> to vector<2x32xf32>
    %313 = math.tanh %312 : vector<2x32xf32>
    %314 = vector.extract_strided_slice %299 {offsets = [0, 96], sizes = [2, 32], strides = [1, 1]} : vector<2x128xf32> to vector<2x32xf32>
    %315 = arith.negf %314 : vector<2x32xf32>
    %316 = math.exp %315 : vector<2x32xf32>
    %cst_61 = arith.constant 1.000000e+00 : f32
    %317 = vector.broadcast %cst_61 : f32 to vector<2x32xf32>
    %318 = arith.addf %317, %316 : vector<2x32xf32>
    %319 = arith.divf %317, %318 : vector<2x32xf32>
    %320 = arith.mulf %311, %294 : vector<2x32xf32>
    %321 = arith.mulf %305, %313 : vector<2x32xf32>
    %322 = arith.addf %320, %321 : vector<2x32xf32>
    %323 = math.tanh %322 : vector<2x32xf32>
    %324 = arith.mulf %319, %323 : vector<2x32xf32>
    %325 = vector.extract_strided_slice %238 {offsets = [8, 0], sizes = [2, 128], strides = [1, 1]} : vector<16x128xf32> to vector<2x128xf32>
    %cst_62 = arith.constant dense<0.000000e+00> : vector<2x128xf32>
    %326 = tpu.matmul %324, %5, %cst_62 {dimension_numbers = #tpu.dot_dimension_numbers<[1], [0], [0], [1], [0, 0, 1, 1], [], []>} : vector<2x32xf32>, vector<32x128xf32>, vector<2x128xf32> -> vector<2x128xf32>
    %327 = arith.addf %325, %326 : vector<2x128xf32>
    %328 = vector.extract_strided_slice %327 {offsets = [0, 0], sizes = [2, 32], strides = [1, 1]} : vector<2x128xf32> to vector<2x32xf32>
    %329 = arith.negf %328 : vector<2x32xf32>
    %330 = math.exp %329 : vector<2x32xf32>
    %cst_63 = arith.constant 1.000000e+00 : f32
    %331 = vector.broadcast %cst_63 : f32 to vector<2x32xf32>
    %332 = arith.addf %331, %330 : vector<2x32xf32>
    %333 = arith.divf %331, %332 : vector<2x32xf32>
    %334 = vector.extract_strided_slice %327 {offsets = [0, 32], sizes = [2, 32], strides = [1, 1]} : vector<2x128xf32> to vector<2x32xf32>
    %335 = arith.negf %334 : vector<2x32xf32>
    %336 = math.exp %335 : vector<2x32xf32>
    %cst_64 = arith.constant 1.000000e+00 : f32
    %337 = vector.broadcast %cst_64 : f32 to vector<2x32xf32>
    %338 = arith.addf %337, %336 : vector<2x32xf32>
    %339 = arith.divf %337, %338 : vector<2x32xf32>
    %340 = vector.extract_strided_slice %327 {offsets = [0, 64], sizes = [2, 32], strides = [1, 1]} : vector<2x128xf32> to vector<2x32xf32>
    %341 = math.tanh %340 : vector<2x32xf32>
    %342 = vector.extract_strided_slice %327 {offsets = [0, 96], sizes = [2, 32], strides = [1, 1]} : vector<2x128xf32> to vector<2x32xf32>
    %343 = arith.negf %342 : vector<2x32xf32>
    %344 = math.exp %343 : vector<2x32xf32>
    %cst_65 = arith.constant 1.000000e+00 : f32
    %345 = vector.broadcast %cst_65 : f32 to vector<2x32xf32>
    %346 = arith.addf %345, %344 : vector<2x32xf32>
    %347 = arith.divf %345, %346 : vector<2x32xf32>
    %348 = arith.mulf %339, %322 : vector<2x32xf32>
    %349 = arith.mulf %333, %341 : vector<2x32xf32>
    %350 = arith.addf %348, %349 : vector<2x32xf32>
    %351 = math.tanh %350 : vector<2x32xf32>
    %352 = arith.mulf %347, %351 : vector<2x32xf32>
    %353 = vector.extract_strided_slice %238 {offsets = [6, 0], sizes = [2, 128], strides = [1, 1]} : vector<16x128xf32> to vector<2x128xf32>
    %cst_66 = arith.constant dense<0.000000e+00> : vector<2x128xf32>
    %354 = tpu.matmul %352, %5, %cst_66 {dimension_numbers = #tpu.dot_dimension_numbers<[1], [0], [0], [1], [0, 0, 1, 1], [], []>} : vector<2x32xf32>, vector<32x128xf32>, vector<2x128xf32> -> vector<2x128xf32>
    %355 = arith.addf %353, %354 : vector<2x128xf32>
    %356 = vector.extract_strided_slice %355 {offsets = [0, 0], sizes = [2, 32], strides = [1, 1]} : vector<2x128xf32> to vector<2x32xf32>
    %357 = arith.negf %356 : vector<2x32xf32>
    %358 = math.exp %357 : vector<2x32xf32>
    %cst_67 = arith.constant 1.000000e+00 : f32
    %359 = vector.broadcast %cst_67 : f32 to vector<2x32xf32>
    %360 = arith.addf %359, %358 : vector<2x32xf32>
    %361 = arith.divf %359, %360 : vector<2x32xf32>
    %362 = vector.extract_strided_slice %355 {offsets = [0, 32], sizes = [2, 32], strides = [1, 1]} : vector<2x128xf32> to vector<2x32xf32>
    %363 = arith.negf %362 : vector<2x32xf32>
    %364 = math.exp %363 : vector<2x32xf32>
    %cst_68 = arith.constant 1.000000e+00 : f32
    %365 = vector.broadcast %cst_68 : f32 to vector<2x32xf32>
    %366 = arith.addf %365, %364 : vector<2x32xf32>
    %367 = arith.divf %365, %366 : vector<2x32xf32>
    %368 = vector.extract_strided_slice %355 {offsets = [0, 64], sizes = [2, 32], strides = [1, 1]} : vector<2x128xf32> to vector<2x32xf32>
    %369 = math.tanh %368 : vector<2x32xf32>
    %370 = vector.extract_strided_slice %355 {offsets = [0, 96], sizes = [2, 32], strides = [1, 1]} : vector<2x128xf32> to vector<2x32xf32>
    %371 = arith.negf %370 : vector<2x32xf32>
    %372 = math.exp %371 : vector<2x32xf32>
    %cst_69 = arith.constant 1.000000e+00 : f32
    %373 = vector.broadcast %cst_69 : f32 to vector<2x32xf32>
    %374 = arith.addf %373, %372 : vector<2x32xf32>
    %375 = arith.divf %373, %374 : vector<2x32xf32>
    %376 = arith.mulf %367, %350 : vector<2x32xf32>
    %377 = arith.mulf %361, %369 : vector<2x32xf32>
    %378 = arith.addf %376, %377 : vector<2x32xf32>
    %379 = math.tanh %378 : vector<2x32xf32>
    %380 = arith.mulf %375, %379 : vector<2x32xf32>
    %381 = vector.extract_strided_slice %238 {offsets = [4, 0], sizes = [2, 128], strides = [1, 1]} : vector<16x128xf32> to vector<2x128xf32>
    %cst_70 = arith.constant dense<0.000000e+00> : vector<2x128xf32>
    %382 = tpu.matmul %380, %5, %cst_70 {dimension_numbers = #tpu.dot_dimension_numbers<[1], [0], [0], [1], [0, 0, 1, 1], [], []>} : vector<2x32xf32>, vector<32x128xf32>, vector<2x128xf32> -> vector<2x128xf32>
    %383 = arith.addf %381, %382 : vector<2x128xf32>
    %384 = vector.extract_strided_slice %383 {offsets = [0, 0], sizes = [2, 32], strides = [1, 1]} : vector<2x128xf32> to vector<2x32xf32>
    %385 = arith.negf %384 : vector<2x32xf32>
    %386 = math.exp %385 : vector<2x32xf32>
    %cst_71 = arith.constant 1.000000e+00 : f32
    %387 = vector.broadcast %cst_71 : f32 to vector<2x32xf32>
    %388 = arith.addf %387, %386 : vector<2x32xf32>
    %389 = arith.divf %387, %388 : vector<2x32xf32>
    %390 = vector.extract_strided_slice %383 {offsets = [0, 32], sizes = [2, 32], strides = [1, 1]} : vector<2x128xf32> to vector<2x32xf32>
    %391 = arith.negf %390 : vector<2x32xf32>
    %392 = math.exp %391 : vector<2x32xf32>
    %cst_72 = arith.constant 1.000000e+00 : f32
    %393 = vector.broadcast %cst_72 : f32 to vector<2x32xf32>
    %394 = arith.addf %393, %392 : vector<2x32xf32>
    %395 = arith.divf %393, %394 : vector<2x32xf32>
    %396 = vector.extract_strided_slice %383 {offsets = [0, 64], sizes = [2, 32], strides = [1, 1]} : vector<2x128xf32> to vector<2x32xf32>
    %397 = math.tanh %396 : vector<2x32xf32>
    %398 = vector.extract_strided_slice %383 {offsets = [0, 96], sizes = [2, 32], strides = [1, 1]} : vector<2x128xf32> to vector<2x32xf32>
    %399 = arith.negf %398 : vector<2x32xf32>
    %400 = math.exp %399 : vector<2x32xf32>
    %cst_73 = arith.constant 1.000000e+00 : f32
    %401 = vector.broadcast %cst_73 : f32 to vector<2x32xf32>
    %402 = arith.addf %401, %400 : vector<2x32xf32>
    %403 = arith.divf %401, %402 : vector<2x32xf32>
    %404 = arith.mulf %395, %378 : vector<2x32xf32>
    %405 = arith.mulf %389, %397 : vector<2x32xf32>
    %406 = arith.addf %404, %405 : vector<2x32xf32>
    %407 = math.tanh %406 : vector<2x32xf32>
    %408 = arith.mulf %403, %407 : vector<2x32xf32>
    %409 = vector.extract_strided_slice %238 {offsets = [2, 0], sizes = [2, 128], strides = [1, 1]} : vector<16x128xf32> to vector<2x128xf32>
    %cst_74 = arith.constant dense<0.000000e+00> : vector<2x128xf32>
    %410 = tpu.matmul %408, %5, %cst_74 {dimension_numbers = #tpu.dot_dimension_numbers<[1], [0], [0], [1], [0, 0, 1, 1], [], []>} : vector<2x32xf32>, vector<32x128xf32>, vector<2x128xf32> -> vector<2x128xf32>
    %411 = arith.addf %409, %410 : vector<2x128xf32>
    %412 = vector.extract_strided_slice %411 {offsets = [0, 0], sizes = [2, 32], strides = [1, 1]} : vector<2x128xf32> to vector<2x32xf32>
    %413 = arith.negf %412 : vector<2x32xf32>
    %414 = math.exp %413 : vector<2x32xf32>
    %cst_75 = arith.constant 1.000000e+00 : f32
    %415 = vector.broadcast %cst_75 : f32 to vector<2x32xf32>
    %416 = arith.addf %415, %414 : vector<2x32xf32>
    %417 = arith.divf %415, %416 : vector<2x32xf32>
    %418 = vector.extract_strided_slice %411 {offsets = [0, 32], sizes = [2, 32], strides = [1, 1]} : vector<2x128xf32> to vector<2x32xf32>
    %419 = arith.negf %418 : vector<2x32xf32>
    %420 = math.exp %419 : vector<2x32xf32>
    %cst_76 = arith.constant 1.000000e+00 : f32
    %421 = vector.broadcast %cst_76 : f32 to vector<2x32xf32>
    %422 = arith.addf %421, %420 : vector<2x32xf32>
    %423 = arith.divf %421, %422 : vector<2x32xf32>
    %424 = vector.extract_strided_slice %411 {offsets = [0, 64], sizes = [2, 32], strides = [1, 1]} : vector<2x128xf32> to vector<2x32xf32>
    %425 = math.tanh %424 : vector<2x32xf32>
    %426 = vector.extract_strided_slice %411 {offsets = [0, 96], sizes = [2, 32], strides = [1, 1]} : vector<2x128xf32> to vector<2x32xf32>
    %427 = arith.negf %426 : vector<2x32xf32>
    %428 = math.exp %427 : vector<2x32xf32>
    %cst_77 = arith.constant 1.000000e+00 : f32
    %429 = vector.broadcast %cst_77 : f32 to vector<2x32xf32>
    %430 = arith.addf %429, %428 : vector<2x32xf32>
    %431 = arith.divf %429, %430 : vector<2x32xf32>
    %432 = arith.mulf %423, %406 : vector<2x32xf32>
    %433 = arith.mulf %417, %425 : vector<2x32xf32>
    %434 = arith.addf %432, %433 : vector<2x32xf32>
    %435 = math.tanh %434 : vector<2x32xf32>
    %436 = arith.mulf %431, %435 : vector<2x32xf32>
    %437 = vector.extract_strided_slice %238 {offsets = [0, 0], sizes = [2, 128], strides = [1, 1]} : vector<16x128xf32> to vector<2x128xf32>
    %cst_78 = arith.constant dense<0.000000e+00> : vector<2x128xf32>
    %438 = tpu.matmul %436, %5, %cst_78 {dimension_numbers = #tpu.dot_dimension_numbers<[1], [0], [0], [1], [0, 0, 1, 1], [], []>} : vector<2x32xf32>, vector<32x128xf32>, vector<2x128xf32> -> vector<2x128xf32>
    %439 = arith.addf %437, %438 : vector<2x128xf32>
    %440 = vector.extract_strided_slice %439 {offsets = [0, 0], sizes = [2, 32], strides = [1, 1]} : vector<2x128xf32> to vector<2x32xf32>
    %441 = arith.negf %440 : vector<2x32xf32>
    %442 = math.exp %441 : vector<2x32xf32>
    %cst_79 = arith.constant 1.000000e+00 : f32
    %443 = vector.broadcast %cst_79 : f32 to vector<2x32xf32>
    %444 = arith.addf %443, %442 : vector<2x32xf32>
    %445 = arith.divf %443, %444 : vector<2x32xf32>
    %446 = vector.extract_strided_slice %439 {offsets = [0, 32], sizes = [2, 32], strides = [1, 1]} : vector<2x128xf32> to vector<2x32xf32>
    %447 = arith.negf %446 : vector<2x32xf32>
    %448 = math.exp %447 : vector<2x32xf32>
    %cst_80 = arith.constant 1.000000e+00 : f32
    %449 = vector.broadcast %cst_80 : f32 to vector<2x32xf32>
    %450 = arith.addf %449, %448 : vector<2x32xf32>
    %451 = arith.divf %449, %450 : vector<2x32xf32>
    %452 = vector.extract_strided_slice %439 {offsets = [0, 64], sizes = [2, 32], strides = [1, 1]} : vector<2x128xf32> to vector<2x32xf32>
    %453 = math.tanh %452 : vector<2x32xf32>
    %454 = vector.extract_strided_slice %439 {offsets = [0, 96], sizes = [2, 32], strides = [1, 1]} : vector<2x128xf32> to vector<2x32xf32>
    %455 = arith.negf %454 : vector<2x32xf32>
    %456 = math.exp %455 : vector<2x32xf32>
    %cst_81 = arith.constant 1.000000e+00 : f32
    %457 = vector.broadcast %cst_81 : f32 to vector<2x32xf32>
    %458 = arith.addf %457, %456 : vector<2x32xf32>
    %459 = arith.divf %457, %458 : vector<2x32xf32>
    %460 = arith.mulf %451, %434 : vector<2x32xf32>
    %461 = arith.mulf %445, %453 : vector<2x32xf32>
    %462 = arith.addf %460, %461 : vector<2x32xf32>
    %463 = math.tanh %462 : vector<2x32xf32>
    %464 = arith.mulf %459, %463 : vector<2x32xf32>
    %465 = tpu.concatenate %39, %464 in 1 : vector<2x32xf32>, vector<2x32xf32> -> vector<2x64xf32>
    %466 = tpu.concatenate %67, %436 in 1 : vector<2x32xf32>, vector<2x32xf32> -> vector<2x64xf32>
    %467 = tpu.concatenate %95, %408 in 1 : vector<2x32xf32>, vector<2x32xf32> -> vector<2x64xf32>
    %468 = tpu.concatenate %123, %380 in 1 : vector<2x32xf32>, vector<2x32xf32> -> vector<2x64xf32>
    %469 = tpu.concatenate %151, %352 in 1 : vector<2x32xf32>, vector<2x32xf32> -> vector<2x64xf32>
    %470 = tpu.concatenate %179, %324 in 1 : vector<2x32xf32>, vector<2x32xf32> -> vector<2x64xf32>
    %471 = tpu.concatenate %207, %296 in 1 : vector<2x32xf32>, vector<2x32xf32> -> vector<2x64xf32>
    %472 = tpu.concatenate %235, %268 in 1 : vector<2x32xf32>, vector<2x32xf32> -> vector<2x64xf32>
    %473 = tpu.concatenate %465, %466, %467, %468, %469, %470, %471, %472 in 0 : vector<2x64xf32>, vector<2x64xf32>, vector<2x64xf32>, vector<2x64xf32>, vector<2x64xf32>, vector<2x64xf32>, vector<2x64xf32>, vector<2x64xf32> -> vector<16x64xf32>
    %c0_82 = arith.constant 0 : index
    %c0_83 = arith.constant 0 : index
    %474 = vector.load %arg8[%c0_82, %c0_83] : memref<64x128xf32, #tpu.memory_space<vmem>>, vector<64x128xf32>
    %c0_84 = arith.constant 0 : index
    %c0_85 = arith.constant 0 : index
    %475 = vector.load %arg9[%c0_84, %c0_85] : memref<32x128xf32, #tpu.memory_space<vmem>>, vector<32x128xf32>
    %c0_86 = arith.constant 0 : index
    %c0_87 = arith.constant 0 : index
    %476 = vector.load %arg10[%c0_86, %c0_87] : memref<1x128xf32, #tpu.memory_space<vmem>>, vector<1x128xf32>
    %c0_88 = arith.constant 0 : index
    %c0_89 = arith.constant 0 : index
    %477 = vector.load %arg11[%c0_88, %c0_89] : memref<64x128xf32, #tpu.memory_space<vmem>>, vector<64x128xf32>
    %c0_90 = arith.constant 0 : index
    %c0_91 = arith.constant 0 : index
    %478 = vector.load %arg12[%c0_90, %c0_91] : memref<32x128xf32, #tpu.memory_space<vmem>>, vector<32x128xf32>
    %c0_92 = arith.constant 0 : index
    %c0_93 = arith.constant 0 : index
    %479 = vector.load %arg13[%c0_92, %c0_93] : memref<1x128xf32, #tpu.memory_space<vmem>>, vector<1x128xf32>
    %cst_94 = arith.constant dense<0.000000e+00> : vector<16x128xf32>
    %480 = tpu.matmul %473, %474, %cst_94 {dimension_numbers = #tpu.dot_dimension_numbers<[1], [0], [0], [1], [0, 0, 1, 1], [], []>} : vector<16x64xf32>, vector<64x128xf32>, vector<16x128xf32> -> vector<16x128xf32>
    %481 = vector.broadcast %476 : vector<1x128xf32> to vector<16x128xf32>
    %482 = arith.addf %480, %481 : vector<16x128xf32>
    %cst_95 = arith.constant 0.000000e+00 : f32
    %483 = vector.broadcast %cst_95 : f32 to vector<2x32xf32>
    %cst_96 = arith.constant 0.000000e+00 : f32
    %484 = vector.broadcast %cst_96 : f32 to vector<2x32xf32>
    %485 = vector.extract_strided_slice %482 {offsets = [0, 0], sizes = [2, 128], strides = [1, 1]} : vector<16x128xf32> to vector<2x128xf32>
    %cst_97 = arith.constant dense<0.000000e+00> : vector<2x128xf32>
    %486 = tpu.matmul %483, %475, %cst_97 {dimension_numbers = #tpu.dot_dimension_numbers<[1], [0], [0], [1], [0, 0, 1, 1], [], []>} : vector<2x32xf32>, vector<32x128xf32>, vector<2x128xf32> -> vector<2x128xf32>
    %487 = arith.addf %485, %486 : vector<2x128xf32>
    %488 = vector.extract_strided_slice %487 {offsets = [0, 0], sizes = [2, 32], strides = [1, 1]} : vector<2x128xf32> to vector<2x32xf32>
    %489 = arith.negf %488 : vector<2x32xf32>
    %490 = math.exp %489 : vector<2x32xf32>
    %cst_98 = arith.constant 1.000000e+00 : f32
    %491 = vector.broadcast %cst_98 : f32 to vector<2x32xf32>
    %492 = arith.addf %491, %490 : vector<2x32xf32>
    %493 = arith.divf %491, %492 : vector<2x32xf32>
    %494 = vector.extract_strided_slice %487 {offsets = [0, 32], sizes = [2, 32], strides = [1, 1]} : vector<2x128xf32> to vector<2x32xf32>
    %495 = arith.negf %494 : vector<2x32xf32>
    %496 = math.exp %495 : vector<2x32xf32>
    %cst_99 = arith.constant 1.000000e+00 : f32
    %497 = vector.broadcast %cst_99 : f32 to vector<2x32xf32>
    %498 = arith.addf %497, %496 : vector<2x32xf32>
    %499 = arith.divf %497, %498 : vector<2x32xf32>
    %500 = vector.extract_strided_slice %487 {offsets = [0, 64], sizes = [2, 32], strides = [1, 1]} : vector<2x128xf32> to vector<2x32xf32>
    %501 = math.tanh %500 : vector<2x32xf32>
    %502 = vector.extract_strided_slice %487 {offsets = [0, 96], sizes = [2, 32], strides = [1, 1]} : vector<2x128xf32> to vector<2x32xf32>
    %503 = arith.negf %502 : vector<2x32xf32>
    %504 = math.exp %503 : vector<2x32xf32>
    %cst_100 = arith.constant 1.000000e+00 : f32
    %505 = vector.broadcast %cst_100 : f32 to vector<2x32xf32>
    %506 = arith.addf %505, %504 : vector<2x32xf32>
    %507 = arith.divf %505, %506 : vector<2x32xf32>
    %508 = arith.mulf %499, %484 : vector<2x32xf32>
    %509 = arith.mulf %493, %501 : vector<2x32xf32>
    %510 = arith.addf %508, %509 : vector<2x32xf32>
    %511 = math.tanh %510 : vector<2x32xf32>
    %512 = arith.mulf %507, %511 : vector<2x32xf32>
    %513 = vector.extract_strided_slice %482 {offsets = [2, 0], sizes = [2, 128], strides = [1, 1]} : vector<16x128xf32> to vector<2x128xf32>
    %cst_101 = arith.constant dense<0.000000e+00> : vector<2x128xf32>
    %514 = tpu.matmul %512, %475, %cst_101 {dimension_numbers = #tpu.dot_dimension_numbers<[1], [0], [0], [1], [0, 0, 1, 1], [], []>} : vector<2x32xf32>, vector<32x128xf32>, vector<2x128xf32> -> vector<2x128xf32>
    %515 = arith.addf %513, %514 : vector<2x128xf32>
    %516 = vector.extract_strided_slice %515 {offsets = [0, 0], sizes = [2, 32], strides = [1, 1]} : vector<2x128xf32> to vector<2x32xf32>
    %517 = arith.negf %516 : vector<2x32xf32>
    %518 = math.exp %517 : vector<2x32xf32>
    %cst_102 = arith.constant 1.000000e+00 : f32
    %519 = vector.broadcast %cst_102 : f32 to vector<2x32xf32>
    %520 = arith.addf %519, %518 : vector<2x32xf32>
    %521 = arith.divf %519, %520 : vector<2x32xf32>
    %522 = vector.extract_strided_slice %515 {offsets = [0, 32], sizes = [2, 32], strides = [1, 1]} : vector<2x128xf32> to vector<2x32xf32>
    %523 = arith.negf %522 : vector<2x32xf32>
    %524 = math.exp %523 : vector<2x32xf32>
    %cst_103 = arith.constant 1.000000e+00 : f32
    %525 = vector.broadcast %cst_103 : f32 to vector<2x32xf32>
    %526 = arith.addf %525, %524 : vector<2x32xf32>
    %527 = arith.divf %525, %526 : vector<2x32xf32>
    %528 = vector.extract_strided_slice %515 {offsets = [0, 64], sizes = [2, 32], strides = [1, 1]} : vector<2x128xf32> to vector<2x32xf32>
    %529 = math.tanh %528 : vector<2x32xf32>
    %530 = vector.extract_strided_slice %515 {offsets = [0, 96], sizes = [2, 32], strides = [1, 1]} : vector<2x128xf32> to vector<2x32xf32>
    %531 = arith.negf %530 : vector<2x32xf32>
    %532 = math.exp %531 : vector<2x32xf32>
    %cst_104 = arith.constant 1.000000e+00 : f32
    %533 = vector.broadcast %cst_104 : f32 to vector<2x32xf32>
    %534 = arith.addf %533, %532 : vector<2x32xf32>
    %535 = arith.divf %533, %534 : vector<2x32xf32>
    %536 = arith.mulf %527, %510 : vector<2x32xf32>
    %537 = arith.mulf %521, %529 : vector<2x32xf32>
    %538 = arith.addf %536, %537 : vector<2x32xf32>
    %539 = math.tanh %538 : vector<2x32xf32>
    %540 = arith.mulf %535, %539 : vector<2x32xf32>
    %541 = vector.extract_strided_slice %482 {offsets = [4, 0], sizes = [2, 128], strides = [1, 1]} : vector<16x128xf32> to vector<2x128xf32>
    %cst_105 = arith.constant dense<0.000000e+00> : vector<2x128xf32>
    %542 = tpu.matmul %540, %475, %cst_105 {dimension_numbers = #tpu.dot_dimension_numbers<[1], [0], [0], [1], [0, 0, 1, 1], [], []>} : vector<2x32xf32>, vector<32x128xf32>, vector<2x128xf32> -> vector<2x128xf32>
    %543 = arith.addf %541, %542 : vector<2x128xf32>
    %544 = vector.extract_strided_slice %543 {offsets = [0, 0], sizes = [2, 32], strides = [1, 1]} : vector<2x128xf32> to vector<2x32xf32>
    %545 = arith.negf %544 : vector<2x32xf32>
    %546 = math.exp %545 : vector<2x32xf32>
    %cst_106 = arith.constant 1.000000e+00 : f32
    %547 = vector.broadcast %cst_106 : f32 to vector<2x32xf32>
    %548 = arith.addf %547, %546 : vector<2x32xf32>
    %549 = arith.divf %547, %548 : vector<2x32xf32>
    %550 = vector.extract_strided_slice %543 {offsets = [0, 32], sizes = [2, 32], strides = [1, 1]} : vector<2x128xf32> to vector<2x32xf32>
    %551 = arith.negf %550 : vector<2x32xf32>
    %552 = math.exp %551 : vector<2x32xf32>
    %cst_107 = arith.constant 1.000000e+00 : f32
    %553 = vector.broadcast %cst_107 : f32 to vector<2x32xf32>
    %554 = arith.addf %553, %552 : vector<2x32xf32>
    %555 = arith.divf %553, %554 : vector<2x32xf32>
    %556 = vector.extract_strided_slice %543 {offsets = [0, 64], sizes = [2, 32], strides = [1, 1]} : vector<2x128xf32> to vector<2x32xf32>
    %557 = math.tanh %556 : vector<2x32xf32>
    %558 = vector.extract_strided_slice %543 {offsets = [0, 96], sizes = [2, 32], strides = [1, 1]} : vector<2x128xf32> to vector<2x32xf32>
    %559 = arith.negf %558 : vector<2x32xf32>
    %560 = math.exp %559 : vector<2x32xf32>
    %cst_108 = arith.constant 1.000000e+00 : f32
    %561 = vector.broadcast %cst_108 : f32 to vector<2x32xf32>
    %562 = arith.addf %561, %560 : vector<2x32xf32>
    %563 = arith.divf %561, %562 : vector<2x32xf32>
    %564 = arith.mulf %555, %538 : vector<2x32xf32>
    %565 = arith.mulf %549, %557 : vector<2x32xf32>
    %566 = arith.addf %564, %565 : vector<2x32xf32>
    %567 = math.tanh %566 : vector<2x32xf32>
    %568 = arith.mulf %563, %567 : vector<2x32xf32>
    %569 = vector.extract_strided_slice %482 {offsets = [6, 0], sizes = [2, 128], strides = [1, 1]} : vector<16x128xf32> to vector<2x128xf32>
    %cst_109 = arith.constant dense<0.000000e+00> : vector<2x128xf32>
    %570 = tpu.matmul %568, %475, %cst_109 {dimension_numbers = #tpu.dot_dimension_numbers<[1], [0], [0], [1], [0, 0, 1, 1], [], []>} : vector<2x32xf32>, vector<32x128xf32>, vector<2x128xf32> -> vector<2x128xf32>
    %571 = arith.addf %569, %570 : vector<2x128xf32>
    %572 = vector.extract_strided_slice %571 {offsets = [0, 0], sizes = [2, 32], strides = [1, 1]} : vector<2x128xf32> to vector<2x32xf32>
    %573 = arith.negf %572 : vector<2x32xf32>
    %574 = math.exp %573 : vector<2x32xf32>
    %cst_110 = arith.constant 1.000000e+00 : f32
    %575 = vector.broadcast %cst_110 : f32 to vector<2x32xf32>
    %576 = arith.addf %575, %574 : vector<2x32xf32>
    %577 = arith.divf %575, %576 : vector<2x32xf32>
    %578 = vector.extract_strided_slice %571 {offsets = [0, 32], sizes = [2, 32], strides = [1, 1]} : vector<2x128xf32> to vector<2x32xf32>
    %579 = arith.negf %578 : vector<2x32xf32>
    %580 = math.exp %579 : vector<2x32xf32>
    %cst_111 = arith.constant 1.000000e+00 : f32
    %581 = vector.broadcast %cst_111 : f32 to vector<2x32xf32>
    %582 = arith.addf %581, %580 : vector<2x32xf32>
    %583 = arith.divf %581, %582 : vector<2x32xf32>
    %584 = vector.extract_strided_slice %571 {offsets = [0, 64], sizes = [2, 32], strides = [1, 1]} : vector<2x128xf32> to vector<2x32xf32>
    %585 = math.tanh %584 : vector<2x32xf32>
    %586 = vector.extract_strided_slice %571 {offsets = [0, 96], sizes = [2, 32], strides = [1, 1]} : vector<2x128xf32> to vector<2x32xf32>
    %587 = arith.negf %586 : vector<2x32xf32>
    %588 = math.exp %587 : vector<2x32xf32>
    %cst_112 = arith.constant 1.000000e+00 : f32
    %589 = vector.broadcast %cst_112 : f32 to vector<2x32xf32>
    %590 = arith.addf %589, %588 : vector<2x32xf32>
    %591 = arith.divf %589, %590 : vector<2x32xf32>
    %592 = arith.mulf %583, %566 : vector<2x32xf32>
    %593 = arith.mulf %577, %585 : vector<2x32xf32>
    %594 = arith.addf %592, %593 : vector<2x32xf32>
    %595 = math.tanh %594 : vector<2x32xf32>
    %596 = arith.mulf %591, %595 : vector<2x32xf32>
    %597 = vector.extract_strided_slice %482 {offsets = [8, 0], sizes = [2, 128], strides = [1, 1]} : vector<16x128xf32> to vector<2x128xf32>
    %cst_113 = arith.constant dense<0.000000e+00> : vector<2x128xf32>
    %598 = tpu.matmul %596, %475, %cst_113 {dimension_numbers = #tpu.dot_dimension_numbers<[1], [0], [0], [1], [0, 0, 1, 1], [], []>} : vector<2x32xf32>, vector<32x128xf32>, vector<2x128xf32> -> vector<2x128xf32>
    %599 = arith.addf %597, %598 : vector<2x128xf32>
    %600 = vector.extract_strided_slice %599 {offsets = [0, 0], sizes = [2, 32], strides = [1, 1]} : vector<2x128xf32> to vector<2x32xf32>
    %601 = arith.negf %600 : vector<2x32xf32>
    %602 = math.exp %601 : vector<2x32xf32>
    %cst_114 = arith.constant 1.000000e+00 : f32
    %603 = vector.broadcast %cst_114 : f32 to vector<2x32xf32>
    %604 = arith.addf %603, %602 : vector<2x32xf32>
    %605 = arith.divf %603, %604 : vector<2x32xf32>
    %606 = vector.extract_strided_slice %599 {offsets = [0, 32], sizes = [2, 32], strides = [1, 1]} : vector<2x128xf32> to vector<2x32xf32>
    %607 = arith.negf %606 : vector<2x32xf32>
    %608 = math.exp %607 : vector<2x32xf32>
    %cst_115 = arith.constant 1.000000e+00 : f32
    %609 = vector.broadcast %cst_115 : f32 to vector<2x32xf32>
    %610 = arith.addf %609, %608 : vector<2x32xf32>
    %611 = arith.divf %609, %610 : vector<2x32xf32>
    %612 = vector.extract_strided_slice %599 {offsets = [0, 64], sizes = [2, 32], strides = [1, 1]} : vector<2x128xf32> to vector<2x32xf32>
    %613 = math.tanh %612 : vector<2x32xf32>
    %614 = vector.extract_strided_slice %599 {offsets = [0, 96], sizes = [2, 32], strides = [1, 1]} : vector<2x128xf32> to vector<2x32xf32>
    %615 = arith.negf %614 : vector<2x32xf32>
    %616 = math.exp %615 : vector<2x32xf32>
    %cst_116 = arith.constant 1.000000e+00 : f32
    %617 = vector.broadcast %cst_116 : f32 to vector<2x32xf32>
    %618 = arith.addf %617, %616 : vector<2x32xf32>
    %619 = arith.divf %617, %618 : vector<2x32xf32>
    %620 = arith.mulf %611, %594 : vector<2x32xf32>
    %621 = arith.mulf %605, %613 : vector<2x32xf32>
    %622 = arith.addf %620, %621 : vector<2x32xf32>
    %623 = math.tanh %622 : vector<2x32xf32>
    %624 = arith.mulf %619, %623 : vector<2x32xf32>
    %625 = vector.extract_strided_slice %482 {offsets = [10, 0], sizes = [2, 128], strides = [1, 1]} : vector<16x128xf32> to vector<2x128xf32>
    %cst_117 = arith.constant dense<0.000000e+00> : vector<2x128xf32>
    %626 = tpu.matmul %624, %475, %cst_117 {dimension_numbers = #tpu.dot_dimension_numbers<[1], [0], [0], [1], [0, 0, 1, 1], [], []>} : vector<2x32xf32>, vector<32x128xf32>, vector<2x128xf32> -> vector<2x128xf32>
    %627 = arith.addf %625, %626 : vector<2x128xf32>
    %628 = vector.extract_strided_slice %627 {offsets = [0, 0], sizes = [2, 32], strides = [1, 1]} : vector<2x128xf32> to vector<2x32xf32>
    %629 = arith.negf %628 : vector<2x32xf32>
    %630 = math.exp %629 : vector<2x32xf32>
    %cst_118 = arith.constant 1.000000e+00 : f32
    %631 = vector.broadcast %cst_118 : f32 to vector<2x32xf32>
    %632 = arith.addf %631, %630 : vector<2x32xf32>
    %633 = arith.divf %631, %632 : vector<2x32xf32>
    %634 = vector.extract_strided_slice %627 {offsets = [0, 32], sizes = [2, 32], strides = [1, 1]} : vector<2x128xf32> to vector<2x32xf32>
    %635 = arith.negf %634 : vector<2x32xf32>
    %636 = math.exp %635 : vector<2x32xf32>
    %cst_119 = arith.constant 1.000000e+00 : f32
    %637 = vector.broadcast %cst_119 : f32 to vector<2x32xf32>
    %638 = arith.addf %637, %636 : vector<2x32xf32>
    %639 = arith.divf %637, %638 : vector<2x32xf32>
    %640 = vector.extract_strided_slice %627 {offsets = [0, 64], sizes = [2, 32], strides = [1, 1]} : vector<2x128xf32> to vector<2x32xf32>
    %641 = math.tanh %640 : vector<2x32xf32>
    %642 = vector.extract_strided_slice %627 {offsets = [0, 96], sizes = [2, 32], strides = [1, 1]} : vector<2x128xf32> to vector<2x32xf32>
    %643 = arith.negf %642 : vector<2x32xf32>
    %644 = math.exp %643 : vector<2x32xf32>
    %cst_120 = arith.constant 1.000000e+00 : f32
    %645 = vector.broadcast %cst_120 : f32 to vector<2x32xf32>
    %646 = arith.addf %645, %644 : vector<2x32xf32>
    %647 = arith.divf %645, %646 : vector<2x32xf32>
    %648 = arith.mulf %639, %622 : vector<2x32xf32>
    %649 = arith.mulf %633, %641 : vector<2x32xf32>
    %650 = arith.addf %648, %649 : vector<2x32xf32>
    %651 = math.tanh %650 : vector<2x32xf32>
    %652 = arith.mulf %647, %651 : vector<2x32xf32>
    %653 = vector.extract_strided_slice %482 {offsets = [12, 0], sizes = [2, 128], strides = [1, 1]} : vector<16x128xf32> to vector<2x128xf32>
    %cst_121 = arith.constant dense<0.000000e+00> : vector<2x128xf32>
    %654 = tpu.matmul %652, %475, %cst_121 {dimension_numbers = #tpu.dot_dimension_numbers<[1], [0], [0], [1], [0, 0, 1, 1], [], []>} : vector<2x32xf32>, vector<32x128xf32>, vector<2x128xf32> -> vector<2x128xf32>
    %655 = arith.addf %653, %654 : vector<2x128xf32>
    %656 = vector.extract_strided_slice %655 {offsets = [0, 0], sizes = [2, 32], strides = [1, 1]} : vector<2x128xf32> to vector<2x32xf32>
    %657 = arith.negf %656 : vector<2x32xf32>
    %658 = math.exp %657 : vector<2x32xf32>
    %cst_122 = arith.constant 1.000000e+00 : f32
    %659 = vector.broadcast %cst_122 : f32 to vector<2x32xf32>
    %660 = arith.addf %659, %658 : vector<2x32xf32>
    %661 = arith.divf %659, %660 : vector<2x32xf32>
    %662 = vector.extract_strided_slice %655 {offsets = [0, 32], sizes = [2, 32], strides = [1, 1]} : vector<2x128xf32> to vector<2x32xf32>
    %663 = arith.negf %662 : vector<2x32xf32>
    %664 = math.exp %663 : vector<2x32xf32>
    %cst_123 = arith.constant 1.000000e+00 : f32
    %665 = vector.broadcast %cst_123 : f32 to vector<2x32xf32>
    %666 = arith.addf %665, %664 : vector<2x32xf32>
    %667 = arith.divf %665, %666 : vector<2x32xf32>
    %668 = vector.extract_strided_slice %655 {offsets = [0, 64], sizes = [2, 32], strides = [1, 1]} : vector<2x128xf32> to vector<2x32xf32>
    %669 = math.tanh %668 : vector<2x32xf32>
    %670 = vector.extract_strided_slice %655 {offsets = [0, 96], sizes = [2, 32], strides = [1, 1]} : vector<2x128xf32> to vector<2x32xf32>
    %671 = arith.negf %670 : vector<2x32xf32>
    %672 = math.exp %671 : vector<2x32xf32>
    %cst_124 = arith.constant 1.000000e+00 : f32
    %673 = vector.broadcast %cst_124 : f32 to vector<2x32xf32>
    %674 = arith.addf %673, %672 : vector<2x32xf32>
    %675 = arith.divf %673, %674 : vector<2x32xf32>
    %676 = arith.mulf %667, %650 : vector<2x32xf32>
    %677 = arith.mulf %661, %669 : vector<2x32xf32>
    %678 = arith.addf %676, %677 : vector<2x32xf32>
    %679 = math.tanh %678 : vector<2x32xf32>
    %680 = arith.mulf %675, %679 : vector<2x32xf32>
    %681 = vector.extract_strided_slice %482 {offsets = [14, 0], sizes = [2, 128], strides = [1, 1]} : vector<16x128xf32> to vector<2x128xf32>
    %cst_125 = arith.constant dense<0.000000e+00> : vector<2x128xf32>
    %682 = tpu.matmul %680, %475, %cst_125 {dimension_numbers = #tpu.dot_dimension_numbers<[1], [0], [0], [1], [0, 0, 1, 1], [], []>} : vector<2x32xf32>, vector<32x128xf32>, vector<2x128xf32> -> vector<2x128xf32>
    %683 = arith.addf %681, %682 : vector<2x128xf32>
    %684 = vector.extract_strided_slice %683 {offsets = [0, 0], sizes = [2, 32], strides = [1, 1]} : vector<2x128xf32> to vector<2x32xf32>
    %685 = arith.negf %684 : vector<2x32xf32>
    %686 = math.exp %685 : vector<2x32xf32>
    %cst_126 = arith.constant 1.000000e+00 : f32
    %687 = vector.broadcast %cst_126 : f32 to vector<2x32xf32>
    %688 = arith.addf %687, %686 : vector<2x32xf32>
    %689 = arith.divf %687, %688 : vector<2x32xf32>
    %690 = vector.extract_strided_slice %683 {offsets = [0, 32], sizes = [2, 32], strides = [1, 1]} : vector<2x128xf32> to vector<2x32xf32>
    %691 = arith.negf %690 : vector<2x32xf32>
    %692 = math.exp %691 : vector<2x32xf32>
    %cst_127 = arith.constant 1.000000e+00 : f32
    %693 = vector.broadcast %cst_127 : f32 to vector<2x32xf32>
    %694 = arith.addf %693, %692 : vector<2x32xf32>
    %695 = arith.divf %693, %694 : vector<2x32xf32>
    %696 = vector.extract_strided_slice %683 {offsets = [0, 64], sizes = [2, 32], strides = [1, 1]} : vector<2x128xf32> to vector<2x32xf32>
    %697 = math.tanh %696 : vector<2x32xf32>
    %698 = vector.extract_strided_slice %683 {offsets = [0, 96], sizes = [2, 32], strides = [1, 1]} : vector<2x128xf32> to vector<2x32xf32>
    %699 = arith.negf %698 : vector<2x32xf32>
    %700 = math.exp %699 : vector<2x32xf32>
    %cst_128 = arith.constant 1.000000e+00 : f32
    %701 = vector.broadcast %cst_128 : f32 to vector<2x32xf32>
    %702 = arith.addf %701, %700 : vector<2x32xf32>
    %703 = arith.divf %701, %702 : vector<2x32xf32>
    %704 = arith.mulf %695, %678 : vector<2x32xf32>
    %705 = arith.mulf %689, %697 : vector<2x32xf32>
    %706 = arith.addf %704, %705 : vector<2x32xf32>
    %707 = math.tanh %706 : vector<2x32xf32>
    %708 = arith.mulf %703, %707 : vector<2x32xf32>
    %cst_129 = arith.constant dense<0.000000e+00> : vector<16x128xf32>
    %709 = tpu.matmul %473, %477, %cst_129 {dimension_numbers = #tpu.dot_dimension_numbers<[1], [0], [0], [1], [0, 0, 1, 1], [], []>} : vector<16x64xf32>, vector<64x128xf32>, vector<16x128xf32> -> vector<16x128xf32>
    %710 = vector.broadcast %479 : vector<1x128xf32> to vector<16x128xf32>
    %711 = arith.addf %709, %710 : vector<16x128xf32>
    %cst_130 = arith.constant 0.000000e+00 : f32
    %712 = vector.broadcast %cst_130 : f32 to vector<2x32xf32>
    %cst_131 = arith.constant 0.000000e+00 : f32
    %713 = vector.broadcast %cst_131 : f32 to vector<2x32xf32>
    %714 = vector.extract_strided_slice %711 {offsets = [14, 0], sizes = [2, 128], strides = [1, 1]} : vector<16x128xf32> to vector<2x128xf32>
    %cst_132 = arith.constant dense<0.000000e+00> : vector<2x128xf32>
    %715 = tpu.matmul %712, %478, %cst_132 {dimension_numbers = #tpu.dot_dimension_numbers<[1], [0], [0], [1], [0, 0, 1, 1], [], []>} : vector<2x32xf32>, vector<32x128xf32>, vector<2x128xf32> -> vector<2x128xf32>
    %716 = arith.addf %714, %715 : vector<2x128xf32>
    %717 = vector.extract_strided_slice %716 {offsets = [0, 0], sizes = [2, 32], strides = [1, 1]} : vector<2x128xf32> to vector<2x32xf32>
    %718 = arith.negf %717 : vector<2x32xf32>
    %719 = math.exp %718 : vector<2x32xf32>
    %cst_133 = arith.constant 1.000000e+00 : f32
    %720 = vector.broadcast %cst_133 : f32 to vector<2x32xf32>
    %721 = arith.addf %720, %719 : vector<2x32xf32>
    %722 = arith.divf %720, %721 : vector<2x32xf32>
    %723 = vector.extract_strided_slice %716 {offsets = [0, 32], sizes = [2, 32], strides = [1, 1]} : vector<2x128xf32> to vector<2x32xf32>
    %724 = arith.negf %723 : vector<2x32xf32>
    %725 = math.exp %724 : vector<2x32xf32>
    %cst_134 = arith.constant 1.000000e+00 : f32
    %726 = vector.broadcast %cst_134 : f32 to vector<2x32xf32>
    %727 = arith.addf %726, %725 : vector<2x32xf32>
    %728 = arith.divf %726, %727 : vector<2x32xf32>
    %729 = vector.extract_strided_slice %716 {offsets = [0, 64], sizes = [2, 32], strides = [1, 1]} : vector<2x128xf32> to vector<2x32xf32>
    %730 = math.tanh %729 : vector<2x32xf32>
    %731 = vector.extract_strided_slice %716 {offsets = [0, 96], sizes = [2, 32], strides = [1, 1]} : vector<2x128xf32> to vector<2x32xf32>
    %732 = arith.negf %731 : vector<2x32xf32>
    %733 = math.exp %732 : vector<2x32xf32>
    %cst_135 = arith.constant 1.000000e+00 : f32
    %734 = vector.broadcast %cst_135 : f32 to vector<2x32xf32>
    %735 = arith.addf %734, %733 : vector<2x32xf32>
    %736 = arith.divf %734, %735 : vector<2x32xf32>
    %737 = arith.mulf %728, %713 : vector<2x32xf32>
    %738 = arith.mulf %722, %730 : vector<2x32xf32>
    %739 = arith.addf %737, %738 : vector<2x32xf32>
    %740 = math.tanh %739 : vector<2x32xf32>
    %741 = arith.mulf %736, %740 : vector<2x32xf32>
    %742 = tpu.concatenate %708, %741 in 1 : vector<2x32xf32>, vector<2x32xf32> -> vector<2x64xf32>
    %c0_136 = arith.constant 0 : index
    %c0_137 = arith.constant 0 : index
    %743 = vector.load %arg14[%c0_136, %c0_137] : memref<64x4xf32, #tpu.memory_space<vmem>>, vector<64x4xf32>
    %cst_138 = arith.constant dense<0.000000e+00> : vector<2x4xf32>
    %744 = tpu.matmul %742, %743, %cst_138 {dimension_numbers = #tpu.dot_dimension_numbers<[1], [0], [0], [1], [0, 0, 1, 1], [], []>} : vector<2x64xf32>, vector<64x4xf32>, vector<2x4xf32> -> vector<2x4xf32>
    %c0_139 = arith.constant 0 : index
    %c0_140 = arith.constant 0 : index
    %745 = vector.load %arg15[%c0_139, %c0_140] : memref<1x4xf32, #tpu.memory_space<vmem>>, vector<1x4xf32>
    %746 = vector.broadcast %745 : vector<1x4xf32> to vector<2x4xf32>
    %747 = arith.addf %744, %746 : vector<2x4xf32>
    %c0_141 = arith.constant 0 : index
    %c0_142 = arith.constant 0 : index
    %748 = vector.load %arg16[%c0_141, %c0_142] : memref<2x4xf32, #tpu.memory_space<vmem>>, vector<2x4xf32>
    tpu.vector_store %arg16[%c0_141, %c0_142], %747 {strides = array<i32>} : memref<2x4xf32, #tpu.memory_space<vmem>>, vector<2x4xf32>,
    return
  }
  func.func @transform_0(%arg0: i32) -> (i32, i32) {
    %c0_i32 = arith.constant 0 : i32
    %c0_i32_0 = arith.constant 0 : i32
    %c0_i32_1 = arith.constant 0 : i32
    return %c0_i32, %c0_i32_0 : i32, i32
  }
  func.func @transform_1(%arg0: i32) -> (i32, i32) {
    %c0_i32 = arith.constant 0 : i32
    %c0_i32_0 = arith.constant 0 : i32
    %c0_i32_1 = arith.constant 0 : i32
    return %c0_i32, %c0_i32_0 : i32, i32
  }
  func.func @transform_2(%arg0: i32) -> (i32, i32) {
    %c0_i32 = arith.constant 0 : i32
    %c0_i32_0 = arith.constant 0 : i32
    %c0_i32_1 = arith.constant 0 : i32
    return %c0_i32, %c0_i32_0 : i32, i32
  }
  func.func @transform_3(%arg0: i32) -> (i32, i32) {
    %c0_i32 = arith.constant 0 : i32
    %c0_i32_0 = arith.constant 0 : i32
    %c0_i32_1 = arith.constant 0 : i32
    return %c0_i32, %c0_i32_0 : i32, i32
  }
  func.func @transform_4(%arg0: i32) -> (i32, i32) {
    %c0_i32 = arith.constant 0 : i32
    %c0_i32_0 = arith.constant 0 : i32
    %c0_i32_1 = arith.constant 0 : i32
    return %c0_i32, %c0_i32_0 : i32, i32
  }
  func.func @transform_5(%arg0: i32) -> (i32, i32) {
    %c0_i32 = arith.constant 0 : i32
    %c0_i32_0 = arith.constant 0 : i32
    %c0_i32_1 = arith.constant 0 : i32
    return %c0_i32, %c0_i32_0 : i32, i32
  }
  func.func @transform_6(%arg0: i32) -> (i32, i32) {
    %c0_i32 = arith.constant 0 : i32
    %c0_i32_0 = arith.constant 0 : i32
    %c0_i32_1 = arith.constant 0 : i32
    return %c0_i32, %c0_i32_0 : i32, i32
  }
  func.func @transform_7(%arg0: i32) -> (i32, i32) {
    %c0_i32 = arith.constant 0 : i32
    %c0_i32_0 = arith.constant 0 : i32
    %c0_i32_1 = arith.constant 0 : i32
    return %c0_i32, %c0_i32_0 : i32, i32
  }
  func.func @transform_8(%arg0: i32) -> (i32, i32) {
    %c0_i32 = arith.constant 0 : i32
    %c0_i32_0 = arith.constant 0 : i32
    %c0_i32_1 = arith.constant 0 : i32
    return %c0_i32, %c0_i32_0 : i32, i32
  }
  func.func @transform_9(%arg0: i32) -> (i32, i32) {
    %c0_i32 = arith.constant 0 : i32
    %c0_i32_0 = arith.constant 0 : i32
    %c0_i32_1 = arith.constant 0 : i32
    return %c0_i32, %c0_i32_0 : i32, i32
  }
  func.func @transform_10(%arg0: i32) -> (i32, i32) {
    %c0_i32 = arith.constant 0 : i32
    %c0_i32_0 = arith.constant 0 : i32
    %c0_i32_1 = arith.constant 0 : i32
    return %c0_i32, %c0_i32_0 : i32, i32
  }
  func.func @transform_11(%arg0: i32) -> (i32, i32) {
    %c0_i32 = arith.constant 0 : i32
    %c0_i32_0 = arith.constant 0 : i32
    %c0_i32_1 = arith.constant 0 : i32
    return %c0_i32, %c0_i32_0 : i32, i32
  }
  func.func @transform_12(%arg0: i32) -> (i32, i32) {
    %c0_i32 = arith.constant 0 : i32
    %c0_i32_0 = arith.constant 0 : i32
    %c0_i32_1 = arith.constant 0 : i32
    return %c0_i32, %c0_i32_0 : i32, i32
  }
  func.func @transform_13(%arg0: i32) -> (i32, i32) {
    %c0_i32 = arith.constant 0 : i32
    %c0_i32_0 = arith.constant 0 : i32
    %c0_i32_1 = arith.constant 0 : i32
    return %c0_i32, %c0_i32_0 : i32, i32
  }
  func.func @transform_14(%arg0: i32) -> (i32, i32) {
    %c0_i32 = arith.constant 0 : i32
    %c0_i32_0 = arith.constant 0 : i32
    %c0_i32_1 = arith.constant 0 : i32
    return %c0_i32, %c0_i32_0 : i32, i32
  }
  func.func @transform_15(%arg0: i32) -> (i32, i32) {
    %c0_i32 = arith.constant 0 : i32
    %c0_i32_0 = arith.constant 0 : i32
    %c0_i32_1 = arith.constant 0 : i32
    return %c0_i32, %c0_i32_0 : i32, i32
  }
}

</mosaic_0001>

<llo_original>
// kernel: lstm_predictor_forward.1
$region0: #{lstm_predictor_forward.1}
  #allocation0 [shape = 'u32[]', space=smem, size = 0x4, offset = 0x4, fixed_abs, tag = 'smem constant byte address 0x4 - core index']
  #allocation1 [shape = 'u32[144,128]{1,0:T(1,128)}', space=vmem, size = 0x12000, scoped, tag = 'internal scratch']
  %s0 = inlined_call_operand.vmem [shape: f32[16,4], index: 0, kind: input, shape index: {}]
  %s1 = inlined_call_operand.vmem [shape: f32[4,128], index: 1, kind: input, shape index: {}]
  %s2 = inlined_call_operand.vmem [shape: f32[32,128], index: 2, kind: input, shape index: {}]
  %s3 = inlined_call_operand.vmem [shape: f32[1,128], index: 3, kind: input, shape index: {}]
  %s4 = inlined_call_operand.vmem [shape: f32[4,128], index: 4, kind: input, shape index: {}]
  %s5 = inlined_call_operand.hbm [shape: f32[32,128], index: 5, kind: input, shape index: {}]
  %s6 = inlined_call_operand.vmem [shape: f32[1,128], index: 6, kind: input, shape index: {}]
  %s7 = inlined_call_operand.vmem [shape: f32[64,128], index: 7, kind: input, shape index: {}]
  %s8 = inlined_call_operand.hbm [shape: f32[32,128], index: 8, kind: input, shape index: {}]
  %s9 = inlined_call_operand.vmem [shape: f32[1,128], index: 9, kind: input, shape index: {}]
  %s10 = inlined_call_operand.hbm [shape: f32[64,128], index: 10, kind: input, shape index: {}]
  %s11 = inlined_call_operand.hbm [shape: f32[32,128], index: 11, kind: input, shape index: {}]
  %s12 = inlined_call_operand.vmem [shape: f32[1,128], index: 12, kind: input, shape index: {}]
  %s13 = inlined_call_operand.vmem [shape: f32[64,4], index: 13, kind: input, shape index: {}]
  %s14 = inlined_call_operand.vmem [shape: f32[1,4], index: 14, kind: input, shape index: {}]
  %s15 = inlined_call_operand.hbm [shape: f32[2,4], index: 15, kind: output, shape index: {}]
  %s16 = sld [smem:[#allocation0]]
  $region86: #{lstm_predictor_forward.1} parent=0
    _
  %s18 = ssub.s32 1, %s16
  %s19 = scalar_select 0, %s18, %s16
  $region1: #{lstm_predictor_forward.1} parent=0
    #allocation2 [shape = 'u8[16384]{0}', space=vmem, size = 0x4000, scoped, tag = 'input window, operand 5, single buffered']
    #allocation3 [shape = 's32[1]{0}', space=sflag, size = 0x4, scoped, tag = 'scoped memory for lstm_predictor_forward.1']
    #allocation4 [shape = 's32[1]{0}', space=sflag, size = 0x4, scoped, tag = 'scoped memory for lstm_predictor_forward.1']
    #allocation5 [shape = 'u8[16384]{0}', space=vmem, size = 0x4000, scoped, tag = 'input window, operand 8, single buffered']
    #allocation6 [shape = 's32[1]{0}', space=sflag, size = 0x4, scoped, tag = 'scoped memory for lstm_predictor_forward.1']
    #allocation7 [shape = 'u8[32768]{0}', space=vmem, size = 0x8000, scoped, tag = 'input window, operand 10, single buffered']
    #allocation8 [shape = 'u8[16384]{0}', space=vmem, size = 0x4000, scoped, tag = 'input window, operand 11, single buffered']
    #allocation9 [shape = 's32[1]{0}', space=sflag, size = 0x4, scoped, tag = 'scoped memory for lstm_predictor_forward.1']
    #allocation10 [shape = 'u8[1024]{0}', space=vmem, size = 0x400, scoped, tag = 'output window, operand 0, single buffered']
    %20 = vsyncpa [#allocation3], 0
    %21 = vsyncpa [#allocation6], 0
    %22 = vsyncpa [#allocation9], 0
    %23 = vsyncpa [#allocation4], 0
    // Predicated region
    $region2: #{lstm_predictor_forward.1} parent=1 // pred_check
      _
    $region3: #{lstm_predictor_forward.1} parent=1 // pred_check_branch
      %25 = sbr.rel (0) target = $region5
    $region4: #{lstm_predictor_forward.1} parent=1 // pred_region
      _
    $region5: #{lstm_predictor_forward.1} parent=1 // pred_fallthru
      _
    // Predicated region
    $region6: #{lstm_predictor_forward.1} parent=1 // pred_check
      _
    $region7: #{lstm_predictor_forward.1} parent=1 // pred_check_branch
      %27 = sbr.rel (0) target = $region9
    $region8: #{lstm_predictor_forward.1} parent=1 // pred_region
      _
    $region9: #{lstm_predictor_forward.1} parent=1 // pred_fallthru
      _
    // Predicated region
    $region10: #{lstm_predictor_forward.1} parent=1 // pred_check
      _
    $region11: #{lstm_predictor_forward.1} parent=1 // pred_check_branch
      %29 = sbr.rel (0) target = $region13
    $region12: #{lstm_predictor_forward.1} parent=1 // pred_region
      _
    $region13: #{lstm_predictor_forward.1} parent=1 // pred_fallthru
      _
    // Predicated region
    $region14: #{lstm_predictor_forward.1} parent=1 // pred_check
      _
    $region15: #{lstm_predictor_forward.1} parent=1 // pred_check_branch
      %31 = sbr.rel (0) target = $region17
    $region16: #{lstm_predictor_forward.1} parent=1 // pred_region
      _
    $region17: #{lstm_predictor_forward.1} parent=1 // pred_fallthru
      _
    // Predicated region
    $region18: #{lstm_predictor_forward.1} parent=1 // pred_check
      _
    $region19: #{lstm_predictor_forward.1} parent=1 // pred_check_branch
      %33 = sbr.rel (0) target = $region21
    $region20: #{lstm_predictor_forward.1} parent=1 // pred_region
      _
    $region21: #{lstm_predictor_forward.1} parent=1 // pred_fallthru
      _
    // Predicated region
    $region22: #{lstm_predictor_forward.1} parent=1 // pred_check
      _
    $region23: #{lstm_predictor_forward.1} parent=1 // pred_check_branch
      %35 = sbr.rel (0) target = $region25
    $region24: #{lstm_predictor_forward.1} parent=1 // pred_region
      %s37 = ssub.s32 512, 512
      %38 = vsyncadd [#allocation3], %s37
      %s39 = sshll.u32 [#allocation2], 4
      %s40 = int_to_ptr.vmem [resolvable:$true] %s39
      %45 = dma.hbm_to_vmem [thread:$0]  %s5, 512, %s40, [#allocation3], 128, 128, 8
    $region25: #{lstm_predictor_forward.1} parent=1 // pred_fallthru
      _
    // Predicated region
    $region26: #{lstm_predictor_forward.1} parent=1 // pred_check
      _
    $region27: #{lstm_predictor_forward.1} parent=1 // pred_check_branch
      %47 = sbr.rel (0) target = $region29
    $region28: #{lstm_predictor_forward.1} parent=1 // pred_region
      _
    $region29: #{lstm_predictor_forward.1} parent=1 // pred_fallthru
      _
    // Predicated region
    $region30: #{lstm_predictor_forward.1} parent=1 // pred_check
      _
    $region31: #{lstm_predictor_forward.1} parent=1 // pred_check_branch
      %49 = sbr.rel (0) target = $region33
    $region32: #{lstm_predictor_forward.1} parent=1 // pred_region
      _
    $region33: #{lstm_predictor_forward.1} parent=1 // pred_fallthru
      _
    // Predicated region
    $region34: #{lstm_predictor_forward.1} parent=1 // pred_check
      _
    $region35: #{lstm_predictor_forward.1} parent=1 // pred_check_branch
      %51 = sbr.rel (0) target = $region37
    $region36: #{lstm_predictor_forward.1} parent=1 // pred_region
      %s53 = ssub.s32 512, 512
      %54 = vsyncadd [#allocation6], %s53
      %s55 = sshll.u32 [#allocation5], 4
      %s56 = int_to_ptr.vmem [resolvable:$true] %s55
      %61 = dma.hbm_to_vmem [thread:$0]  %s8, 512, %s56, [#allocation6], 128, 128, 8
    $region37: #{lstm_predictor_forward.1} parent=1 // pred_fallthru
      _
    // Predicated region
    $region38: #{lstm_predictor_forward.1} parent=1 // pred_check
      _
    $region39: #{lstm_predictor_forward.1} parent=1 // pred_check_branch
      %63 = sbr.rel (0) target = $region41
    $region40: #{lstm_predictor_forward.1} parent=1 // pred_region
      _
    $region41: #{lstm_predictor_forward.1} parent=1 // pred_fallthru
      _
    // Predicated region
    $region42: #{lstm_predictor_forward.1} parent=1 // pred_check
      _
    $region43: #{lstm_predictor_forward.1} parent=1 // pred_check_branch
      %65 = sbr.rel (0) target = $region45
    $region44: #{lstm_predictor_forward.1} parent=1 // pred_region
      %s67 = ssub.s32 1024, 1024
      %68 = vsyncadd [#allocation6], %s67
      %s69 = sshll.u32 [#allocation7], 4
      %s70 = int_to_ptr.vmem [resolvable:$true] %s69
      %75 = dma.hbm_to_vmem [thread:$0]  %s10, 1024, %s70, [#allocation6], 128, 128, 8
    $region45: #{lstm_predictor_forward.1} parent=1 // pred_fallthru
      _
    // Predicated region
    $region46: #{lstm_predictor_forward.1} parent=1 // pred_check
      _
    $region47: #{lstm_predictor_forward.1} parent=1 // pred_check_branch
      %77 = sbr.rel (0) target = $region49
    $region48: #{lstm_predictor_forward.1} parent=1 // pred_region
      %s79 = ssub.s32 512, 512
      %80 = vsyncadd [#allocation9], %s79
      %s81 = sshll.u32 [#allocation8], 4
      %s82 = int_to_ptr.vmem [resolvable:$true] %s81
      %87 = dma.hbm_to_vmem [thread:$0]  %s11, 512, %s82, [#allocation9], 128, 128, 8
    $region49: #{lstm_predictor_forward.1} parent=1 // pred_fallthru
      _
    // Predicated region
    $region50: #{lstm_predictor_forward.1} parent=1 // pred_check
      _
    $region51: #{lstm_predictor_forward.1} parent=1 // pred_check_branch
      %89 = sbr.rel (0) target = $region53
    $region52: #{lstm_predictor_forward.1} parent=1 // pred_region
      _
    $region53: #{lstm_predictor_forward.1} parent=1 // pred_fallthru
      _
    // Predicated region
    $region54: #{lstm_predictor_forward.1} parent=1 // pred_check
      _
    $region55: #{lstm_predictor_forward.1} parent=1 // pred_check_branch
      %91 = sbr.rel (0) target = $region57
    $region56: #{lstm_predictor_forward.1} parent=1 // pred_region
      _
    $region57: #{lstm_predictor_forward.1} parent=1 // pred_fallthru
      _
    // Predicated region
    $region58: #{lstm_predictor_forward.1} parent=1 // pred_check
      _
    $region59: #{lstm_predictor_forward.1} parent=1 // pred_check_branch
      %93 = sbr.rel (0) target = $region61
    $region60: #{lstm_predictor_forward.1} parent=1 // pred_region
      _
    $region61: #{lstm_predictor_forward.1} parent=1 // pred_fallthru
      _
    // Predicated region
    $region62: #{lstm_predictor_forward.1} parent=1 // pred_check
      _
    $region63: #{lstm_predictor_forward.1} parent=1 // pred_check_branch
      %95 = sbr.rel (0) target = $region65
    $region64: #{lstm_predictor_forward.1} parent=1 // pred_region
      %96 = dma.done [#allocation3], 512
    $region65: #{lstm_predictor_forward.1} parent=1 // pred_fallthru
      _
    // Predicated region
    $region66: #{lstm_predictor_forward.1} parent=1 // pred_check
      _
    $region67: #{lstm_predictor_forward.1} parent=1 // pred_check_branch
      %98 = sbr.rel (0) target = $region69
    $region68: #{lstm_predictor_forward.1} parent=1 // pred_region
      %99 = dma.done [#allocation6], 512
    $region69: #{lstm_predictor_forward.1} parent=1 // pred_fallthru
      _
    // Predicated region
    $region70: #{lstm_predictor_forward.1} parent=1 // pred_check
      _
    $region71: #{lstm_predictor_forward.1} parent=1 // pred_check_branch
      %101 = sbr.rel (0) target = $region73
    $region72: #{lstm_predictor_forward.1} parent=1 // pred_region
      %102 = dma.done [#allocation6], 1024
    $region73: #{lstm_predictor_forward.1} parent=1 // pred_fallthru
      _
    // Predicated region
    $region74: #{lstm_predictor_forward.1} parent=1 // pred_check
      _
    $region75: #{lstm_predictor_forward.1} parent=1 // pred_check_branch
      %104 = sbr.rel (0) target = $region77
    $region76: #{lstm_predictor_forward.1} parent=1 // pred_region
      %105 = dma.done [#allocation9], 512
    $region77: #{lstm_predictor_forward.1} parent=1 // pred_fallthru
      _
    %v106 = vld [vmem:[%s0] sm:$0xff]
    %v107 = vld [vmem:[%s0 + $0x8] sm:$0xff]
    %v108 = vld [vmem:[%s1] sm:$0xf]
    %v109 = vld [vmem:[%s2] sm:$0xff]
    %v110 = vld [vmem:[%s2 + $0x8] sm:$0xff]
    %v111 = vld [vmem:[%s2 + $0x10] sm:$0xff]
    %v112 = vld [vmem:[%s2 + $0x18] sm:$0xff]
    %v113 = vld [vmem:[%s3] sm:$0x1]
    %v114 = vld [vmem:[%s4] sm:$0xf]
    %v115 = vld [vmem:[#allocation2] sm:$0xff]
    %v116 = vld [vmem:[#allocation2 + $0x8] sm:$0xff]
    %v117 = vld [vmem:[#allocation2 + $0x10] sm:$0xff]
    %v118 = vld [vmem:[#allocation2 + $0x18] sm:$0xff]
    %v119 = vld [vmem:[%s6] sm:$0x1]
    %v121 = vlaneseq
    %v122 = vshrl.u32 %v121, 7
    %v123 = vsub.s32 0, %v122
    %v124 = vrot.slane %v113, %v123
    %vm126 = vcmask 31744
    %v128 = vsel %vm126, %v106, 0
    %v131 = vsel %vm126, %v107, 0
    %vm133 = vcmask 1043456
    %v135 = vsel %vm133, %v108, 0
    %137 = vmatprep.subr.mxu0 0.0
    %138 = vmatpush1.msra.mxu0 0.0
    %139 = vmatprep.subr.mxu0 0.0
    %140 = vmatpush1.msra.mxu0 0.0
    %141 = vmatprep.subr.mxu0 0.0
    %142 = vmatpush1.msra.mxu0 0.0
    %143 = vmatprep.subr.mxu0 0.0
    %144 = vmatpush1.msra.mxu0 0.0
    %145 = vmatprep.subr.mxu0 0.0
    %146 = vmatpush1.msra.mxu0 0.0
    %147 = vmatprep.subr.mxu0 0.0
    %148 = vmatpush1.msra.mxu0 0.0
    %149 = vmatprep.subr.mxu0 0.0
    %150 = vmatpush1.msra.mxu0 0.0
    %151 = vmatprep.subr.mxu0 0.0
    %152 = vmatpush1.msra.mxu0 0.0
    %153 = vmatprep.subr.mxu0 0.0
    %154 = vmatpush1.msra.mxu0 0.0
    %155 = vmatprep.subr.mxu0 0.0
    %156 = vmatpush1.msra.mxu0 0.0
    %157 = vmatprep.subr.mxu0 0.0
    %158 = vmatpush1.msra.mxu0 0.0
    %159 = vmatprep.subr.mxu0 0.0
    %160 = vmatpush1.msra.mxu0 0.0
    %161 = vmatprep.subr.mxu0 0.0
    %162 = vmatpush1.msra.mxu0 0.0
    %163 = vmatprep.subr.mxu0 0.0
    %164 = vmatpush1.msra.mxu0 0.0
    %165 = vmatprep.subr.mxu0 0.0
    %166 = vmatpush1.msra.mxu0 0.0
    %167 = vmatprep.subr.mxu0 0.0
    %168 = vmatpush1.msra.mxu0 %v135
    %169 = vmatprep.subr.mxu0 0.0
    %170 = vmatpush2.msra.mxu0 0.0
    %171 = vmatprep.subr.mxu0 0.0
    %172 = vmatpush2.msra.mxu0 0.0
    %173 = vmatprep.subr.mxu0 0.0
    %174 = vmatpush2.msra.mxu0 0.0
    %175 = vmatprep.subr.mxu0 0.0
    %176 = vmatpush2.msra.mxu0 0.0
    %177 = vmatprep.subr.mxu0 0.0
    %178 = vmatpush2.msra.mxu0 0.0
    %179 = vmatprep.subr.mxu0 0.0
    %180 = vmatpush2.msra.mxu0 0.0
    %181 = vmatprep.subr.mxu0 0.0
    %182 = vmatpush2.msra.mxu0 0.0
    %183 = vmatprep.subr.mxu0 0.0
    %184 = vmatpush2.msra.mxu0 0.0
    %185 = vmatprep.subr.mxu0 0.0
    %186 = vmatpush2.msra.mxu0 0.0
    %187 = vmatprep.subr.mxu0 0.0
    %188 = vmatpush2.msra.mxu0 0.0
    %189 = vmatprep.subr.mxu0 0.0
    %190 = vmatpush2.msra.mxu0 0.0
    %191 = vmatprep.subr.mxu0 0.0
    %192 = vmatpush2.msra.mxu0 0.0
    %193 = vmatprep.subr.mxu0 0.0
    %194 = vmatpush2.msra.mxu0 0.0
    %195 = vmatprep.subr.mxu0 0.0
    %196 = vmatpush2.msra.mxu0 0.0
    %197 = vmatprep.subr.mxu0 0.0
    %198 = vmatpush2.msra.mxu0 0.0
    %199 = vmatprep.subr.mxu0 0.0
    %200 = vmatpush2.msra.mxu0 0.0
    %201 = vmatprep.mubr.f32.mxu0 0.0
    %202 = vmatmul.mubr.f32.gmra.mxu0 %v128
    %v203 = vpop.f32.mrf.mxu0
    %v204 = vadd.f32 %v124, %v203
    %v205 = vpop.f32.mrf.mxu0
    %206 = vmatprep.mubr.f32.mxu0 0.0
    %207 = vmatmul.mubr.f32.gmra.mxu0 %v131
    %v208 = vpop.f32.mrf.mxu0
    %v209 = vadd.f32 %v124, %v208
    %v210 = vpop.f32.mrf.mxu0
    %211 = vdwg.mxu0
    %vm212 = vcmask 261120
    %v214 = vsel %vm212, 0.0, 0
    %216 = vmatprep.subr.mxu0 0.0
    %217 = vmatpush1.msra.mxu0 0.0
    %218 = vmatprep.subr.mxu0 0.0
    %219 = vmatpush1.msra.mxu0 0.0
    %220 = vmatprep.subr.mxu0 0.0
    %221 = vmatpush1.msra.mxu0 0.0
    %222 = vmatprep.subr.mxu0 0.0
    %223 = vmatpush1.msra.mxu0 0.0
    %224 = vmatprep.subr.mxu0 0.0
    %225 = vmatpush1.msra.mxu0 0.0
    %226 = vmatprep.subr.mxu0 0.0
    %227 = vmatpush1.msra.mxu0 0.0
    %228 = vmatprep.subr.mxu0 0.0
    %229 = vmatpush1.msra.mxu0 0.0
    %230 = vmatprep.subr.mxu0 0.0
    %231 = vmatpush1.msra.mxu0 0.0
    %232 = vmatprep.subr.mxu0 0.0
    %233 = vmatpush1.msra.mxu0 0.0
    %234 = vmatprep.subr.mxu0 0.0
    %235 = vmatpush1.msra.mxu0 0.0
    %236 = vmatprep.subr.mxu0 0.0
    %237 = vmatpush1.msra.mxu0 0.0
    %238 = vmatprep.subr.mxu0 0.0
    %239 = vmatpush1.msra.mxu0 0.0
    %240 = vmatprep.subr.mxu0 0.0
    %241 = vmatpush1.msra.mxu0 %v112
    %242 = vmatprep.subr.mxu0 0.0
    %243 = vmatpush1.msra.mxu0 %v111
    %244 = vmatprep.subr.mxu0 0.0
    %245 = vmatpush1.msra.mxu0 %v110
    %246 = vmatprep.subr.mxu0 0.0
    %247 = vmatpush1.msra.mxu0 %v109
    %248 = vmatprep.subr.mxu0 0.0
    %249 = vmatpush2.msra.mxu0 0.0
    %250 = vmatprep.subr.mxu0 0.0
    %251 = vmatpush2.msra.mxu0 0.0
    %252 = vmatprep.subr.mxu0 0.0
    %253 = vmatpush2.msra.mxu0 0.0
    %254 = vmatprep.subr.mxu0 0.0
    %255 = vmatpush2.msra.mxu0 0.0
    %256 = vmatprep.subr.mxu0 0.0
    %257 = vmatpush2.msra.mxu0 0.0
    %258 = vmatprep.subr.mxu0 0.0
    %259 = vmatpush2.msra.mxu0 0.0
    %260 = vmatprep.subr.mxu0 0.0
    %261 = vmatpush2.msra.mxu0 0.0
    %262 = vmatprep.subr.mxu0 0.0
    %263 = vmatpush2.msra.mxu0 0.0
    %264 = vmatprep.subr.mxu0 0.0
    %265 = vmatpush2.msra.mxu0 0.0
    %266 = vmatprep.subr.mxu0 0.0
    %267 = vmatpush2.msra.mxu0 0.0
    %268 = vmatprep.subr.mxu0 0.0
    %269 = vmatpush2.msra.mxu0 0.0
    %270 = vmatprep.subr.mxu0 0.0
    %271 = vmatpush2.msra.mxu0 0.0
    %272 = vmatprep.subr.mxu0 0.0
    %273 = vmatpush2.msra.mxu0 0.0
    %274 = vmatprep.subr.mxu0 0.0
    %275 = vmatpush2.msra.mxu0 0.0
    %276 = vmatprep.subr.mxu0 0.0
    %277 = vmatpush2.msra.mxu0 0.0
    %278 = vmatprep.subr.mxu0 0.0
    %279 = vmatpush2.msra.mxu0 0.0
    %280 = vmatprep.mubr.f32.mxu0 0.0
    %281 = vmatmul.mubr.f32.gmra.mxu0 %v214
    %v282 = vpop.f32.mrf.mxu0
    %v283 = vadd.f32 0.0, %v282
    %v284 = vpop.f32.mrf.mxu0
    %285 = vdwg.mxu0
    %v286 = vadd.f32 %v204, %v283
    %v287 = vxor.u32 %v286, 2147483648
    %v288 = vmul.f32 %v287, 1.442695
    %v289 = vpow.pop %v288
    %v290 = vadd.f32 %v289, 1.0
    %v291 = vrcp.pop %v290
    %v292 = vmul.f32 1.0, %v291
    %v293 = vtanh.pop %v286
    %v294 = vmul.f32 %v292, 0.0
    %296 = vrot.lane.b32.xlu0 %v293, 64
    %v297 = vpop.permute.xlu0 %296
    %v299 = vmul.f32 %v292, %v297
    %301 = vrot.lane.b32.xlu0 %v299, 32
    %v302 = vpop.permute.xlu0 %301
    %v304 = vadd.f32 %v294, %v302
    %v305 = vtanh.pop %v304
    %307 = vrot.lane.b32.xlu0 %v305, 64
    %v308 = vpop.permute.xlu0 %307
    %v310 = vmul.f32 %v292, %v308
    %312 = vrot.lane.b32.xlu0 %v310, 32
    %v313 = vpop.permute.xlu0 %312
    %v314 = vsel %vm212, %v313, 0
    %316 = vmatprep.subr.mxu0 0.0
    %317 = vmatpush1.msra.mxu0 0.0
    %318 = vmatprep.subr.mxu0 0.0
    %319 = vmatpush1.msra.mxu0 0.0
    %320 = vmatprep.subr.mxu0 0.0
    %321 = vmatpush1.msra.mxu0 0.0
    %322 = vmatprep.subr.mxu0 0.0
    %323 = vmatpush1.msra.mxu0 0.0
    %324 = vmatprep.subr.mxu0 0.0
    %325 = vmatpush1.msra.mxu0 0.0
    %326 = vmatprep.subr.mxu0 0.0
    %327 = vmatpush1.msra.mxu0 0.0
    %328 = vmatprep.subr.mxu0 0.0
    %329 = vmatpush1.msra.mxu0 0.0
    %330 = vmatprep.subr.mxu0 0.0
    %331 = vmatpush1.msra.mxu0 0.0
    %332 = vmatprep.subr.mxu0 0.0
    %333 = vmatpush1.msra.mxu0 0.0
    %334 = vmatprep.subr.mxu0 0.0
    %335 = vmatpush1.msra.mxu0 0.0
    %336 = vmatprep.subr.mxu0 0.0
    %337 = vmatpush1.msra.mxu0 0.0
    %338 = vmatprep.subr.mxu0 0.0
    %339 = vmatpush1.msra.mxu0 0.0
    %340 = vmatprep.subr.mxu0 0.0
    %341 = vmatpush1.msra.mxu0 %v112
    %342 = vmatprep.subr.mxu0 0.0
    %343 = vmatpush1.msra.mxu0 %v111
    %344 = vmatprep.subr.mxu0 0.0
    %345 = vmatpush1.msra.mxu0 %v110
    %346 = vmatprep.subr.mxu0 0.0
    %347 = vmatpush1.msra.mxu0 %v109
    %348 = vmatprep.subr.mxu0 0.0
    %349 = vmatpush2.msra.mxu0 0.0
    %350 = vmatprep.subr.mxu0 0.0
    %351 = vmatpush2.msra.mxu0 0.0
    %352 = vmatprep.subr.mxu0 0.0
    %353 = vmatpush2.msra.mxu0 0.0
    %354 = vmatprep.subr.mxu0 0.0
    %355 = vmatpush2.msra.mxu0 0.0
    %356 = vmatprep.subr.mxu0 0.0
    %357 = vmatpush2.msra.mxu0 0.0
    %358 = vmatprep.subr.mxu0 0.0
    %359 = vmatpush2.msra.mxu0 0.0
    %360 = vmatprep.subr.mxu0 0.0
    %361 = vmatpush2.msra.mxu0 0.0
    %362 = vmatprep.subr.mxu0 0.0
    %363 = vmatpush2.msra.mxu0 0.0
    %364 = vmatprep.subr.mxu0 0.0
    %365 = vmatpush2.msra.mxu0 0.0
    %366 = vmatprep.subr.mxu0 0.0
    %367 = vmatpush2.msra.mxu0 0.0
    %368 = vmatprep.subr.mxu0 0.0
    %369 = vmatpush2.msra.mxu0 0.0
    %370 = vmatprep.subr.mxu0 0.0
    %371 = vmatpush2.msra.mxu0 0.0
    %372 = vmatprep.subr.mxu0 0.0
    %373 = vmatpush2.msra.mxu0 0.0
    %374 = vmatprep.subr.mxu0 0.0
    %375 = vmatpush2.msra.mxu0 0.0
    %376 = vmatprep.subr.mxu0 0.0
    %377 = vmatpush2.msra.mxu0 0.0
    %378 = vmatprep.subr.mxu0 0.0
    %379 = vmatpush2.msra.mxu0 0.0
    %380 = vmatprep.mubr.f32.mxu0 0.0
    %381 = vmatmul.mubr.f32.gmra.mxu0 %v314
    %v382 = vpop.f32.mrf.mxu0
    %v383 = vadd.f32 0.0, %v382
    %v384 = vpop.f32.mrf.mxu0
    %385 = vdwg.mxu0
    %v387 = vrot.slane %v383, 6
    %v389 = vadd.f32 %v204, %v387
    %v390 = vxor.u32 %v389, 2147483648
    %v391 = vmul.f32 %v390, 1.442695
    %v392 = vpow.pop %v391
    %v393 = vadd.f32 %v392, 1.0
    %v394 = vrcp.pop %v393
    %v395 = vmul.f32 1.0, %v394
    %v396 = vtanh.pop %v389
    %v398 = vrot.slane %v304, 6
    %v400 = vmul.f32 %v395, %v398
    %402 = vrot.lane.b32.xlu0 %v396, 64
    %v403 = vpop.permute.xlu0 %402
    %v405 = vmul.f32 %v395, %v403
    %407 = vrot.lane.b32.xlu0 %v405, 32
    %v408 = vpop.permute.xlu0 %407
    %v410 = vadd.f32 %v400, %v408
    %v411 = vtanh.pop %v410
    %413 = vrot.lane.b32.xlu0 %v411, 64
    %v414 = vpop.permute.xlu0 %413
    %v416 = vmul.f32 %v395, %v414
    %v418 = vrot.slane %v416, 2
    %419 = vrot.lane.b32.xlu0 %v418, 32
    %v420 = vpop.permute.xlu0 %419
    %v421 = vsel %vm212, %v420, 0
    %423 = vmatprep.subr.mxu0 0.0
    %424 = vmatpush1.msra.mxu0 0.0
    %425 = vmatprep.subr.mxu0 0.0
    %426 = vmatpush1.msra.mxu0 0.0
    %427 = vmatprep.subr.mxu0 0.0
    %428 = vmatpush1.msra.mxu0 0.0
    %429 = vmatprep.subr.mxu0 0.0
    %430 = vmatpush1.msra.mxu0 0.0
    %431 = vmatprep.subr.mxu0 0.0
    %432 = vmatpush1.msra.mxu0 0.0
    %433 = vmatprep.subr.mxu0 0.0
    %434 = vmatpush1.msra.mxu0 0.0
    %435 = vmatprep.subr.mxu0 0.0
    %436 = vmatpush1.msra.mxu0 0.0
    %437 = vmatprep.subr.mxu0 0.0
    %438 = vmatpush1.msra.mxu0 0.0
    %439 = vmatprep.subr.mxu0 0.0
    %440 = vmatpush1.msra.mxu0 0.0
    %441 = vmatprep.subr.mxu0 0.0
    %442 = vmatpush1.msra.mxu0 0.0
    %443 = vmatprep.subr.mxu0 0.0
    %444 = vmatpush1.msra.mxu0 0.0
    %445 = vmatprep.subr.mxu0 0.0
    %446 = vmatpush1.msra.mxu0 0.0
    %447 = vmatprep.subr.mxu0 0.0
    %448 = vmatpush1.msra.mxu0 %v112
    %449 = vmatprep.subr.mxu0 0.0
    %450 = vmatpush1.msra.mxu0 %v111
    %451 = vmatprep.subr.mxu0 0.0
    %452 = vmatpush1.msra.mxu0 %v110
    %453 = vmatprep.subr.mxu0 0.0
    %454 = vmatpush1.msra.mxu0 %v109
    %455 = vmatprep.subr.mxu0 0.0
    %456 = vmatpush2.msra.mxu0 0.0
    %457 = vmatprep.subr.mxu0 0.0
    %458 = vmatpush2.msra.mxu0 0.0
    %459 = vmatprep.subr.mxu0 0.0
    %460 = vmatpush2.msra.mxu0 0.0
    %461 = vmatprep.subr.mxu0 0.0
    %462 = vmatpush2.msra.mxu0 0.0
    %463 = vmatprep.subr.mxu0 0.0
    %464 = vmatpush2.msra.mxu0 0.0
    %465 = vmatprep.subr.mxu0 0.0
    %466 = vmatpush2.msra.mxu0 0.0
    %467 = vmatprep.subr.mxu0 0.0
    %468 = vmatpush2.msra.mxu0 0.0
    %469 = vmatprep.subr.mxu0 0.0
    %470 = vmatpush2.msra.mxu0 0.0
    %471 = vmatprep.subr.mxu0 0.0
    %472 = vmatpush2.msra.mxu0 0.0
    %473 = vmatprep.subr.mxu0 0.0
    %474 = vmatpush2.msra.mxu0 0.0
    %475 = vmatprep.subr.mxu0 0.0
    %476 = vmatpush2.msra.mxu0 0.0
    %477 = vmatprep.subr.mxu0 0.0
    %478 = vmatpush2.msra.mxu0 0.0
    %479 = vmatprep.subr.mxu0 0.0
    %480 = vmatpush2.msra.mxu0 0.0
    %481 = vmatprep.subr.mxu0 0.0
    %482 = vmatpush2.msra.mxu0 0.0
    %483 = vmatprep.subr.mxu0 0.0
    %484 = vmatpush2.msra.mxu0 0.0
    %485 = vmatprep.subr.mxu0 0.0
    %486 = vmatpush2.msra.mxu0 0.0
    %487 = vmatprep.mubr.f32.mxu0 0.0
    %488 = vmatmul.mubr.f32.gmra.mxu0 %v421
    %v489 = vpop.f32.mrf.mxu0
    %v490 = vadd.f32 0.0, %v489
    %v491 = vpop.f32.mrf.mxu0
    %492 = vdwg.mxu0
    %v494 = vrot.slane %v490, 4
    %v496 = vadd.f32 %v204, %v494
    %v497 = vxor.u32 %v496, 2147483648
    %v498 = vmul.f32 %v497, 1.442695
    %v499 = vpow.pop %v498
    %v500 = vadd.f32 %v499, 1.0
    %v501 = vrcp.pop %v500
    %v502 = vmul.f32 1.0, %v501
    %v503 = vtanh.pop %v496
    %v505 = vrot.slane %v410, 6
    %v507 = vmul.f32 %v502, %v505
    %509 = vrot.lane.b32.xlu0 %v503, 64
    %v510 = vpop.permute.xlu0 %509
    %v512 = vmul.f32 %v502, %v510
    %514 = vrot.lane.b32.xlu0 %v512, 32
    %v515 = vpop.permute.xlu0 %514
    %v517 = vadd.f32 %v507, %v515
    %v518 = vtanh.pop %v517
    %520 = vrot.lane.b32.xlu0 %v518, 64
    %v521 = vpop.permute.xlu0 %520
    %v523 = vmul.f32 %v502, %v521
    %v525 = vrot.slane %v523, 4
    %526 = vrot.lane.b32.xlu0 %v525, 32
    %v527 = vpop.permute.xlu0 %526
    %v528 = vsel %vm212, %v527, 0
    %530 = vmatprep.subr.mxu0 0.0
    %531 = vmatpush1.msra.mxu0 0.0
    %532 = vmatprep.subr.mxu0 0.0
    %533 = vmatpush1.msra.mxu0 0.0
    %534 = vmatprep.subr.mxu0 0.0
    %535 = vmatpush1.msra.mxu0 0.0
    %536 = vmatprep.subr.mxu0 0.0
    %537 = vmatpush1.msra.mxu0 0.0
    %538 = vmatprep.subr.mxu0 0.0
    %539 = vmatpush1.msra.mxu0 0.0
    %540 = vmatprep.subr.mxu0 0.0
    %541 = vmatpush1.msra.mxu0 0.0
    %542 = vmatprep.subr.mxu0 0.0
    %543 = vmatpush1.msra.mxu0 0.0
    %544 = vmatprep.subr.mxu0 0.0
    %545 = vmatpush1.msra.mxu0 0.0
    %546 = vmatprep.subr.mxu0 0.0
    %547 = vmatpush1.msra.mxu0 0.0
    %548 = vmatprep.subr.mxu0 0.0
    %549 = vmatpush1.msra.mxu0 0.0
    %550 = vmatprep.subr.mxu0 0.0
    %551 = vmatpush1.msra.mxu0 0.0
    %552 = vmatprep.subr.mxu0 0.0
    %553 = vmatpush1.msra.mxu0 0.0
    %554 = vmatprep.subr.mxu0 0.0
    %555 = vmatpush1.msra.mxu0 %v112
    %556 = vmatprep.subr.mxu0 0.0
    %557 = vmatpush1.msra.mxu0 %v111
    %558 = vmatprep.subr.mxu0 0.0
    %559 = vmatpush1.msra.mxu0 %v110
    %560 = vmatprep.subr.mxu0 0.0
    %561 = vmatpush1.msra.mxu0 %v109
    %562 = vmatprep.subr.mxu0 0.0
    %563 = vmatpush2.msra.mxu0 0.0
    %564 = vmatprep.subr.mxu0 0.0
    %565 = vmatpush2.msra.mxu0 0.0
    %566 = vmatprep.subr.mxu0 0.0
    %567 = vmatpush2.msra.mxu0 0.0
    %568 = vmatprep.subr.mxu0 0.0
    %569 = vmatpush2.msra.mxu0 0.0
    %570 = vmatprep.subr.mxu0 0.0
    %571 = vmatpush2.msra.mxu0 0.0
    %572 = vmatprep.subr.mxu0 0.0
    %573 = vmatpush2.msra.mxu0 0.0
    %574 = vmatprep.subr.mxu0 0.0
    %575 = vmatpush2.msra.mxu0 0.0
    %576 = vmatprep.subr.mxu0 0.0
    %577 = vmatpush2.msra.mxu0 0.0
    %578 = vmatprep.subr.mxu0 0.0
    %579 = vmatpush2.msra.mxu0 0.0
    %580 = vmatprep.subr.mxu0 0.0
    %581 = vmatpush2.msra.mxu0 0.0
    %582 = vmatprep.subr.mxu0 0.0
    %583 = vmatpush2.msra.mxu0 0.0
    %584 = vmatprep.subr.mxu0 0.0
    %585 = vmatpush2.msra.mxu0 0.0
    %586 = vmatprep.subr.mxu0 0.0
    %587 = vmatpush2.msra.mxu0 0.0
    %588 = vmatprep.subr.mxu0 0.0
    %589 = vmatpush2.msra.mxu0 0.0
    %590 = vmatprep.subr.mxu0 0.0
    %591 = vmatpush2.msra.mxu0 0.0
    %592 = vmatprep.subr.mxu0 0.0
    %593 = vmatpush2.msra.mxu0 0.0
    %594 = vmatprep.mubr.f32.mxu0 0.0
    %595 = vmatmul.mubr.f32.gmra.mxu0 %v528
    %v596 = vpop.f32.mrf.mxu0
    %v597 = vadd.f32 0.0, %v596
    %v598 = vpop.f32.mrf.mxu0
    %599 = vdwg.mxu0
    %v601 = vrot.slane %v597, 2
    %v603 = vadd.f32 %v204, %v601
    %v604 = vxor.u32 %v603, 2147483648
    %v605 = vmul.f32 %v604, 1.442695
    %v606 = vpow.pop %v605
    %v607 = vadd.f32 %v606, 1.0
    %v608 = vrcp.pop %v607
    %v609 = vmul.f32 1.0, %v608
    %v610 = vtanh.pop %v603
    %v612 = vrot.slane %v517, 6
    %v614 = vmul.f32 %v609, %v612
    %616 = vrot.lane.b32.xlu0 %v610, 64
    %v617 = vpop.permute.xlu0 %616
    %v619 = vmul.f32 %v609, %v617
    %621 = vrot.lane.b32.xlu0 %v619, 32
    %v622 = vpop.permute.xlu0 %621
    %v624 = vadd.f32 %v614, %v622
    %v625 = vtanh.pop %v624
    %627 = vrot.lane.b32.xlu0 %v625, 64
    %v628 = vpop.permute.xlu0 %627
    %v630 = vmul.f32 %v609, %v628
    %v632 = vrot.slane %v630, 6
    %633 = vrot.lane.b32.xlu0 %v632, 32
    %v634 = vpop.permute.xlu0 %633
    %v635 = vsel %vm212, %v634, 0
    %637 = vmatprep.subr.mxu0 0.0
    %638 = vmatpush1.msra.mxu0 0.0
    %639 = vmatprep.subr.mxu0 0.0
    %640 = vmatpush1.msra.mxu0 0.0
    %641 = vmatprep.subr.mxu0 0.0
    %642 = vmatpush1.msra.mxu0 0.0
    %643 = vmatprep.subr.mxu0 0.0
    %644 = vmatpush1.msra.mxu0 0.0
    %645 = vmatprep.subr.mxu0 0.0
    %646 = vmatpush1.msra.mxu0 0.0
    %647 = vmatprep.subr.mxu0 0.0
    %648 = vmatpush1.msra.mxu0 0.0
    %649 = vmatprep.subr.mxu0 0.0
    %650 = vmatpush1.msra.mxu0 0.0
    %651 = vmatprep.subr.mxu0 0.0
    %652 = vmatpush1.msra.mxu0 0.0
    %653 = vmatprep.subr.mxu0 0.0
    %654 = vmatpush1.msra.mxu0 0.0
    %655 = vmatprep.subr.mxu0 0.0
    %656 = vmatpush1.msra.mxu0 0.0
    %657 = vmatprep.subr.mxu0 0.0
    %658 = vmatpush1.msra.mxu0 0.0
    %659 = vmatprep.subr.mxu0 0.0
    %660 = vmatpush1.msra.mxu0 0.0
    %661 = vmatprep.subr.mxu0 0.0
    %662 = vmatpush1.msra.mxu0 %v112
    %663 = vmatprep.subr.mxu0 0.0
    %664 = vmatpush1.msra.mxu0 %v111
    %665 = vmatprep.subr.mxu0 0.0
    %666 = vmatpush1.msra.mxu0 %v110
    %667 = vmatprep.subr.mxu0 0.0
    %668 = vmatpush1.msra.mxu0 %v109
    %669 = vmatprep.subr.mxu0 0.0
    %670 = vmatpush2.msra.mxu0 0.0
    %671 = vmatprep.subr.mxu0 0.0
    %672 = vmatpush2.msra.mxu0 0.0
    %673 = vmatprep.subr.mxu0 0.0
    %674 = vmatpush2.msra.mxu0 0.0
    %675 = vmatprep.subr.mxu0 0.0
    %676 = vmatpush2.msra.mxu0 0.0
    %677 = vmatprep.subr.mxu0 0.0
    %678 = vmatpush2.msra.mxu0 0.0
    %679 = vmatprep.subr.mxu0 0.0
    %680 = vmatpush2.msra.mxu0 0.0
    %681 = vmatprep.subr.mxu0 0.0
    %682 = vmatpush2.msra.mxu0 0.0
    %683 = vmatprep.subr.mxu0 0.0
    %684 = vmatpush2.msra.mxu0 0.0
    %685 = vmatprep.subr.mxu0 0.0
    %686 = vmatpush2.msra.mxu0 0.0
    %687 = vmatprep.subr.mxu0 0.0
    %688 = vmatpush2.msra.mxu0 0.0
    %689 = vmatprep.subr.mxu0 0.0
    %690 = vmatpush2.msra.mxu0 0.0
    %691 = vmatprep.subr.mxu0 0.0
    %692 = vmatpush2.msra.mxu0 0.0
    %693 = vmatprep.subr.mxu0 0.0
    %694 = vmatpush2.msra.mxu0 0.0
    %695 = vmatprep.subr.mxu0 0.0
    %696 = vmatpush2.msra.mxu0 0.0
    %697 = vmatprep.subr.mxu0 0.0
    %698 = vmatpush2.msra.mxu0 0.0
    %699 = vmatprep.subr.mxu0 0.0
    %700 = vmatpush2.msra.mxu0 0.0
    %701 = vmatprep.mubr.f32.mxu0 0.0
    %702 = vmatmul.mubr.f32.gmra.mxu0 %v635
    %v703 = vpop.f32.mrf.mxu0
    %v704 = vadd.f32 0.0, %v703
    %v705 = vpop.f32.mrf.mxu0
    %706 = vdwg.mxu0
    %v707 = vadd.f32 %v209, %v704
    %v708 = vxor.u32 %v707, 2147483648
    %v709 = vmul.f32 %v708, 1.442695
    %v710 = vpow.pop %v709
    %v711 = vadd.f32 %v710, 1.0
    %v712 = vrcp.pop %v711
    %v713 = vmul.f32 1.0, %v712
    %v714 = vtanh.pop %v707
    %v716 = vrot.slane %v624, 6
    %v718 = vmul.f32 %v713, %v716
    %720 = vrot.lane.b32.xlu0 %v714, 64
    %v721 = vpop.permute.xlu0 %720
    %v723 = vmul.f32 %v713, %v721
    %725 = vrot.lane.b32.xlu0 %v723, 32
    %v726 = vpop.permute.xlu0 %725
    %v728 = vadd.f32 %v718, %v726
    %v729 = vtanh.pop %v728
    %731 = vrot.lane.b32.xlu0 %v729, 64
    %v732 = vpop.permute.xlu0 %731
    %v734 = vmul.f32 %v713, %v732
    %736 = vrot.lane.b32.xlu0 %v734, 32
    %v737 = vpop.permute.xlu0 %736
    %v738 = vsel %vm212, %v737, 0
    %740 = vmatprep.subr.mxu0 0.0
    %741 = vmatpush1.msra.mxu0 0.0
    %742 = vmatprep.subr.mxu0 0.0
    %743 = vmatpush1.msra.mxu0 0.0
    %744 = vmatprep.subr.mxu0 0.0
    %745 = vmatpush1.msra.mxu0 0.0
    %746 = vmatprep.subr.mxu0 0.0
    %747 = vmatpush1.msra.mxu0 0.0
    %748 = vmatprep.subr.mxu0 0.0
    %749 = vmatpush1.msra.mxu0 0.0
    %750 = vmatprep.subr.mxu0 0.0
    %751 = vmatpush1.msra.mxu0 0.0
    %752 = vmatprep.subr.mxu0 0.0
    %753 = vmatpush1.msra.mxu0 0.0
    %754 = vmatprep.subr.mxu0 0.0
    %755 = vmatpush1.msra.mxu0 0.0
    %756 = vmatprep.subr.mxu0 0.0
    %757 = vmatpush1.msra.mxu0 0.0
    %758 = vmatprep.subr.mxu0 0.0
    %759 = vmatpush1.msra.mxu0 0.0
    %760 = vmatprep.subr.mxu0 0.0
    %761 = vmatpush1.msra.mxu0 0.0
    %762 = vmatprep.subr.mxu0 0.0
    %763 = vmatpush1.msra.mxu0 0.0
    %764 = vmatprep.subr.mxu0 0.0
    %765 = vmatpush1.msra.mxu0 %v112
    %766 = vmatprep.subr.mxu0 0.0
    %767 = vmatpush1.msra.mxu0 %v111
    %768 = vmatprep.subr.mxu0 0.0
    %769 = vmatpush1.msra.mxu0 %v110
    %770 = vmatprep.subr.mxu0 0.0
    %771 = vmatpush1.msra.mxu0 %v109
    %772 = vmatprep.subr.mxu0 0.0
    %773 = vmatpush2.msra.mxu0 0.0
    %774 = vmatprep.subr.mxu0 0.0
    %775 = vmatpush2.msra.mxu0 0.0
    %776 = vmatprep.subr.mxu0 0.0
    %777 = vmatpush2.msra.mxu0 0.0
    %778 = vmatprep.subr.mxu0 0.0
    %779 = vmatpush2.msra.mxu0 0.0
    %780 = vmatprep.subr.mxu0 0.0
    %781 = vmatpush2.msra.mxu0 0.0
    %782 = vmatprep.subr.mxu0 0.0
    %783 = vmatpush2.msra.mxu0 0.0
    %784 = vmatprep.subr.mxu0 0.0
    %785 = vmatpush2.msra.mxu0 0.0
    %786 = vmatprep.subr.mxu0 0.0
    %787 = vmatpush2.msra.mxu0 0.0
    %788 = vmatprep.subr.mxu0 0.0
    %789 = vmatpush2.msra.mxu0 0.0
    %790 = vmatprep.subr.mxu0 0.0
    %791 = vmatpush2.msra.mxu0 0.0
    %792 = vmatprep.subr.mxu0 0.0
    %793 = vmatpush2.msra.mxu0 0.0
    %794 = vmatprep.subr.mxu0 0.0
    %795 = vmatpush2.msra.mxu0 0.0
    %796 = vmatprep.subr.mxu0 0.0
    %797 = vmatpush2.msra.mxu0 0.0
    %798 = vmatprep.subr.mxu0 0.0
    %799 = vmatpush2.msra.mxu0 0.0
    %800 = vmatprep.subr.mxu0 0.0
    %801 = vmatpush2.msra.mxu0 0.0
    %802 = vmatprep.subr.mxu0 0.0
    %803 = vmatpush2.msra.mxu0 0.0
    %804 = vmatprep.mubr.f32.mxu0 0.0
    %805 = vmatmul.mubr.f32.gmra.mxu0 %v738
    %v806 = vpop.f32.mrf.mxu0
    %v807 = vadd.f32 0.0, %v806
    %v808 = vpop.f32.mrf.mxu0
    %809 = vdwg.mxu0
    %v811 = vrot.slane %v807, 6
    %v813 = vadd.f32 %v209, %v811
    %v814 = vxor.u32 %v813, 2147483648
    %v815 = vmul.f32 %v814, 1.442695
    %v816 = vpow.pop %v815
    %v817 = vadd.f32 %v816, 1.0
    %v818 = vrcp.pop %v817
    %v819 = vmul.f32 1.0, %v818
    %v820 = vtanh.pop %v813
    %v822 = vrot.slane %v728, 6
    %v824 = vmul.f32 %v819, %v822
    %826 = vrot.lane.b32.xlu0 %v820, 64
    %v827 = vpop.permute.xlu0 %826
    %v829 = vmul.f32 %v819, %v827
    %831 = vrot.lane.b32.xlu0 %v829, 32
    %v832 = vpop.permute.xlu0 %831
    %v834 = vadd.f32 %v824, %v832
    %v835 = vtanh.pop %v834
    %837 = vrot.lane.b32.xlu0 %v835, 64
    %v838 = vpop.permute.xlu0 %837
    %v840 = vmul.f32 %v819, %v838
    %v842 = vrot.slane %v840, 2
    %843 = vrot.lane.b32.xlu0 %v842, 32
    %v844 = vpop.permute.xlu0 %843
    %v845 = vsel %vm212, %v844, 0
    %847 = vmatprep.subr.mxu0 0.0
    %848 = vmatpush1.msra.mxu0 0.0
    %849 = vmatprep.subr.mxu0 0.0
    %850 = vmatpush1.msra.mxu0 0.0
    %851 = vmatprep.subr.mxu0 0.0
    %852 = vmatpush1.msra.mxu0 0.0
    %853 = vmatprep.subr.mxu0 0.0
    %854 = vmatpush1.msra.mxu0 0.0
    %855 = vmatprep.subr.mxu0 0.0
    %856 = vmatpush1.msra.mxu0 0.0
    %857 = vmatprep.subr.mxu0 0.0
    %858 = vmatpush1.msra.mxu0 0.0
    %859 = vmatprep.subr.mxu0 0.0
    %860 = vmatpush1.msra.mxu0 0.0
    %861 = vmatprep.subr.mxu0 0.0
    %862 = vmatpush1.msra.mxu0 0.0
    %863 = vmatprep.subr.mxu0 0.0
    %864 = vmatpush1.msra.mxu0 0.0
    %865 = vmatprep.subr.mxu0 0.0
    %866 = vmatpush1.msra.mxu0 0.0
    %867 = vmatprep.subr.mxu0 0.0
    %868 = vmatpush1.msra.mxu0 0.0
    %869 = vmatprep.subr.mxu0 0.0
    %870 = vmatpush1.msra.mxu0 0.0
    %871 = vmatprep.subr.mxu0 0.0
    %872 = vmatpush1.msra.mxu0 %v112
    %873 = vmatprep.subr.mxu0 0.0
    %874 = vmatpush1.msra.mxu0 %v111
    %875 = vmatprep.subr.mxu0 0.0
    %876 = vmatpush1.msra.mxu0 %v110
    %877 = vmatprep.subr.mxu0 0.0
    %878 = vmatpush1.msra.mxu0 %v109
    %879 = vmatprep.subr.mxu0 0.0
    %880 = vmatpush2.msra.mxu0 0.0
    %881 = vmatprep.subr.mxu0 0.0
    %882 = vmatpush2.msra.mxu0 0.0
    %883 = vmatprep.subr.mxu0 0.0
    %884 = vmatpush2.msra.mxu0 0.0
    %885 = vmatprep.subr.mxu0 0.0
    %886 = vmatpush2.msra.mxu0 0.0
    %887 = vmatprep.subr.mxu0 0.0
    %888 = vmatpush2.msra.mxu0 0.0
    %889 = vmatprep.subr.mxu0 0.0
    %890 = vmatpush2.msra.mxu0 0.0
    %891 = vmatprep.subr.mxu0 0.0
    %892 = vmatpush2.msra.mxu0 0.0
    %893 = vmatprep.subr.mxu0 0.0
    %894 = vmatpush2.msra.mxu0 0.0
    %895 = vmatprep.subr.mxu0 0.0
    %896 = vmatpush2.msra.mxu0 0.0
    %897 = vmatprep.subr.mxu0 0.0
    %898 = vmatpush2.msra.mxu0 0.0
    %899 = vmatprep.subr.mxu0 0.0
    %900 = vmatpush2.msra.mxu0 0.0
    %901 = vmatprep.subr.mxu0 0.0
    %902 = vmatpush2.msra.mxu0 0.0
    %903 = vmatprep.subr.mxu0 0.0
    %904 = vmatpush2.msra.mxu0 0.0
    %905 = vmatprep.subr.mxu0 0.0
    %906 = vmatpush2.msra.mxu0 0.0
    %907 = vmatprep.subr.mxu0 0.0
    %908 = vmatpush2.msra.mxu0 0.0
    %909 = vmatprep.subr.mxu0 0.0
    %910 = vmatpush2.msra.mxu0 0.0
    %911 = vmatprep.mubr.f32.mxu0 0.0
    %912 = vmatmul.mubr.f32.gmra.mxu0 %v845
    %v913 = vpop.f32.mrf.mxu0
    %v914 = vadd.f32 0.0, %v913
    %v915 = vpop.f32.mrf.mxu0
    %916 = vdwg.mxu0
    %v918 = vrot.slane %v914, 4
    %v920 = vadd.f32 %v209, %v918
    %v921 = vxor.u32 %v920, 2147483648
    %v922 = vmul.f32 %v921, 1.442695
    %v923 = vpow.pop %v922
    %v924 = vadd.f32 %v923, 1.0
    %v925 = vrcp.pop %v924
    %v926 = vmul.f32 1.0, %v925
    %v927 = vtanh.pop %v920
    %v929 = vrot.slane %v834, 6
    %v931 = vmul.f32 %v926, %v929
    %933 = vrot.lane.b32.xlu0 %v927, 64
    %v934 = vpop.permute.xlu0 %933
    %v936 = vmul.f32 %v926, %v934
    %938 = vrot.lane.b32.xlu0 %v936, 32
    %v939 = vpop.permute.xlu0 %938
    %v941 = vadd.f32 %v931, %v939
    %v942 = vtanh.pop %v941
    %944 = vrot.lane.b32.xlu0 %v942, 64
    %v945 = vpop.permute.xlu0 %944
    %v947 = vmul.f32 %v926, %v945
    %v949 = vrot.slane %v947, 4
    %950 = vrot.lane.b32.xlu0 %v949, 32
    %v951 = vpop.permute.xlu0 %950
    %v952 = vsel %vm212, %v951, 0
    %954 = vmatprep.subr.mxu0 0.0
    %955 = vmatpush1.msra.mxu0 0.0
    %956 = vmatprep.subr.mxu0 0.0
    %957 = vmatpush1.msra.mxu0 0.0
    %958 = vmatprep.subr.mxu0 0.0
    %959 = vmatpush1.msra.mxu0 0.0
    %960 = vmatprep.subr.mxu0 0.0
    %961 = vmatpush1.msra.mxu0 0.0
    %962 = vmatprep.subr.mxu0 0.0
    %963 = vmatpush1.msra.mxu0 0.0
    %964 = vmatprep.subr.mxu0 0.0
    %965 = vmatpush1.msra.mxu0 0.0
    %966 = vmatprep.subr.mxu0 0.0
    %967 = vmatpush1.msra.mxu0 0.0
    %968 = vmatprep.subr.mxu0 0.0
    %969 = vmatpush1.msra.mxu0 0.0
    %970 = vmatprep.subr.mxu0 0.0
    %971 = vmatpush1.msra.mxu0 0.0
    %972 = vmatprep.subr.mxu0 0.0
    %973 = vmatpush1.msra.mxu0 0.0
    %974 = vmatprep.subr.mxu0 0.0
    %975 = vmatpush1.msra.mxu0 0.0
    %976 = vmatprep.subr.mxu0 0.0
    %977 = vmatpush1.msra.mxu0 0.0
    %978 = vmatprep.subr.mxu0 0.0
    %979 = vmatpush1.msra.mxu0 %v112
    %980 = vmatprep.subr.mxu0 0.0
    %981 = vmatpush1.msra.mxu0 %v111
    %982 = vmatprep.subr.mxu0 0.0
    %983 = vmatpush1.msra.mxu0 %v110
    %984 = vmatprep.subr.mxu0 0.0
    %985 = vmatpush1.msra.mxu0 %v109
    %986 = vmatprep.subr.mxu0 0.0
    %987 = vmatpush2.msra.mxu0 0.0
    %988 = vmatprep.subr.mxu0 0.0
    %989 = vmatpush2.msra.mxu0 0.0
    %990 = vmatprep.subr.mxu0 0.0
    %991 = vmatpush2.msra.mxu0 0.0
    %992 = vmatprep.subr.mxu0 0.0
    %993 = vmatpush2.msra.mxu0 0.0
    %994 = vmatprep.subr.mxu0 0.0
    %995 = vmatpush2.msra.mxu0 0.0
    %996 = vmatprep.subr.mxu0 0.0
    %997 = vmatpush2.msra.mxu0 0.0
    %998 = vmatprep.subr.mxu0 0.0
    %999 = vmatpush2.msra.mxu0 0.0
    %1000 = vmatprep.subr.mxu0 0.0
    %1001 = vmatpush2.msra.mxu0 0.0
    %1002 = vmatprep.subr.mxu0 0.0
    %1003 = vmatpush2.msra.mxu0 0.0
    %1004 = vmatprep.subr.mxu0 0.0
    %1005 = vmatpush2.msra.mxu0 0.0
    %1006 = vmatprep.subr.mxu0 0.0
    %1007 = vmatpush2.msra.mxu0 0.0
    %1008 = vmatprep.subr.mxu0 0.0
    %1009 = vmatpush2.msra.mxu0 0.0
    %1010 = vmatprep.subr.mxu0 0.0
    %1011 = vmatpush2.msra.mxu0 0.0
    %1012 = vmatprep.subr.mxu0 0.0
    %1013 = vmatpush2.msra.mxu0 0.0
    %1014 = vmatprep.subr.mxu0 0.0
    %1015 = vmatpush2.msra.mxu0 0.0
    %1016 = vmatprep.subr.mxu0 0.0
    %1017 = vmatpush2.msra.mxu0 0.0
    %1018 = vmatprep.mubr.f32.mxu0 0.0
    %1019 = vmatmul.mubr.f32.gmra.mxu0 %v952
    %v1020 = vpop.f32.mrf.mxu0
    %v1021 = vadd.f32 0.0, %v1020
    %v1022 = vpop.f32.mrf.mxu0
    %1023 = vdwg.mxu0
    %v1025 = vrot.slane %v1021, 2
    %v1027 = vadd.f32 %v209, %v1025
    %v1028 = vxor.u32 %v1027, 2147483648
    %v1029 = vmul.f32 %v1028, 1.442695
    %v1030 = vpow.pop %v1029
    %v1031 = vadd.f32 %v1030, 1.0
    %v1032 = vrcp.pop %v1031
    %v1033 = vmul.f32 1.0, %v1032
    %v1034 = vtanh.pop %v1027
    %v1036 = vrot.slane %v941, 6
    %v1038 = vmul.f32 %v1033, %v1036
    %1040 = vrot.lane.b32.xlu0 %v1034, 64
    %v1041 = vpop.permute.xlu0 %1040
    %v1043 = vmul.f32 %v1033, %v1041
    %1045 = vrot.lane.b32.xlu0 %v1043, 32
    %v1046 = vpop.permute.xlu0 %1045
    %v1048 = vadd.f32 %v1038, %v1046
    %v1049 = vtanh.pop %v1048
    %1051 = vrot.lane.b32.xlu0 %v1049, 64
    %v1052 = vpop.permute.xlu0 %1051
    %v1054 = vmul.f32 %v1033, %v1052
    %v1056 = vlaneseq
    %v1057 = vshrl.u32 %v1056, 7
    %v1058 = vsub.s32 0, %v1057
    %v1059 = vrot.slane %v119, %v1058
    %v1062 = vsel %vm133, %v114, 0
    %1064 = vmatprep.subr.mxu0 0.0
    %1065 = vmatpush1.msra.mxu0 0.0
    %1066 = vmatprep.subr.mxu0 0.0
    %1067 = vmatpush1.msra.mxu0 0.0
    %1068 = vmatprep.subr.mxu0 0.0
    %1069 = vmatpush1.msra.mxu0 0.0
    %1070 = vmatprep.subr.mxu0 0.0
    %1071 = vmatpush1.msra.mxu0 0.0
    %1072 = vmatprep.subr.mxu0 0.0
    %1073 = vmatpush1.msra.mxu0 0.0
    %1074 = vmatprep.subr.mxu0 0.0
    %1075 = vmatpush1.msra.mxu0 0.0
    %1076 = vmatprep.subr.mxu0 0.0
    %1077 = vmatpush1.msra.mxu0 0.0
    %1078 = vmatprep.subr.mxu0 0.0
    %1079 = vmatpush1.msra.mxu0 0.0
    %1080 = vmatprep.subr.mxu0 0.0
    %1081 = vmatpush1.msra.mxu0 0.0
    %1082 = vmatprep.subr.mxu0 0.0
    %1083 = vmatpush1.msra.mxu0 0.0
    %1084 = vmatprep.subr.mxu0 0.0
    %1085 = vmatpush1.msra.mxu0 0.0
    %1086 = vmatprep.subr.mxu0 0.0
    %1087 = vmatpush1.msra.mxu0 0.0
    %1088 = vmatprep.subr.mxu0 0.0
    %1089 = vmatpush1.msra.mxu0 0.0
    %1090 = vmatprep.subr.mxu0 0.0
    %1091 = vmatpush1.msra.mxu0 0.0
    %1092 = vmatprep.subr.mxu0 0.0
    %1093 = vmatpush1.msra.mxu0 0.0
    %1094 = vmatprep.subr.mxu0 0.0
    %1095 = vmatpush1.msra.mxu0 %v1062
    %1096 = vmatprep.subr.mxu0 0.0
    %1097 = vmatpush2.msra.mxu0 0.0
    %1098 = vmatprep.subr.mxu0 0.0
    %1099 = vmatpush2.msra.mxu0 0.0
    %1100 = vmatprep.subr.mxu0 0.0
    %1101 = vmatpush2.msra.mxu0 0.0
    %1102 = vmatprep.subr.mxu0 0.0
    %1103 = vmatpush2.msra.mxu0 0.0
    %1104 = vmatprep.subr.mxu0 0.0
    %1105 = vmatpush2.msra.mxu0 0.0
    %1106 = vmatprep.subr.mxu0 0.0
    %1107 = vmatpush2.msra.mxu0 0.0
    %1108 = vmatprep.subr.mxu0 0.0
    %1109 = vmatpush2.msra.mxu0 0.0
    %1110 = vmatprep.subr.mxu0 0.0
    %1111 = vmatpush2.msra.mxu0 0.0
    %1112 = vmatprep.subr.mxu0 0.0
    %1113 = vmatpush2.msra.mxu0 0.0
    %1114 = vmatprep.subr.mxu0 0.0
    %1115 = vmatpush2.msra.mxu0 0.0
    %1116 = vmatprep.subr.mxu0 0.0
    %1117 = vmatpush2.msra.mxu0 0.0
    %1118 = vmatprep.subr.mxu0 0.0
    %1119 = vmatpush2.msra.mxu0 0.0
    %1120 = vmatprep.subr.mxu0 0.0
    %1121 = vmatpush2.msra.mxu0 0.0
    %1122 = vmatprep.subr.mxu0 0.0
    %1123 = vmatpush2.msra.mxu0 0.0
    %1124 = vmatprep.subr.mxu0 0.0
    %1125 = vmatpush2.msra.mxu0 0.0
    %1126 = vmatprep.subr.mxu0 0.0
    %1127 = vmatpush2.msra.mxu0 0.0
    %1128 = vmatprep.mubr.f32.mxu0 0.0
    %1129 = vmatmul.mubr.f32.gmra.mxu0 %v128
    %v1130 = vpop.f32.mrf.mxu0
    %v1131 = vadd.f32 %v1059, %v1130
    %v1132 = vpop.f32.mrf.mxu0
    %1133 = vmatprep.mubr.f32.mxu0 0.0
    %1134 = vmatmul.mubr.f32.gmra.mxu0 %v131
    %v1135 = vpop.f32.mrf.mxu0
    %v1136 = vadd.f32 %v1059, %v1135
    %v1137 = vpop.f32.mrf.mxu0
    %1138 = vdwg.mxu0
    %1139 = vmatprep.subr.mxu0 0.0
    %1140 = vmatpush1.msra.mxu0 0.0
    %1141 = vmatprep.subr.mxu0 0.0
    %1142 = vmatpush1.msra.mxu0 0.0
    %1143 = vmatprep.subr.mxu0 0.0
    %1144 = vmatpush1.msra.mxu0 0.0
    %1145 = vmatprep.subr.mxu0 0.0
    %1146 = vmatpush1.msra.mxu0 0.0
    %1147 = vmatprep.subr.mxu0 0.0
    %1148 = vmatpush1.msra.mxu0 0.0
    %1149 = vmatprep.subr.mxu0 0.0
    %1150 = vmatpush1.msra.mxu0 0.0
    %1151 = vmatprep.subr.mxu0 0.0
    %1152 = vmatpush1.msra.mxu0 0.0
    %1153 = vmatprep.subr.mxu0 0.0
    %1154 = vmatpush1.msra.mxu0 0.0
    %1155 = vmatprep.subr.mxu0 0.0
    %1156 = vmatpush1.msra.mxu0 0.0
    %1157 = vmatprep.subr.mxu0 0.0
    %1158 = vmatpush1.msra.mxu0 0.0
    %1159 = vmatprep.subr.mxu0 0.0
    %1160 = vmatpush1.msra.mxu0 0.0
    %1161 = vmatprep.subr.mxu0 0.0
    %1162 = vmatpush1.msra.mxu0 0.0
    %1163 = vmatprep.subr.mxu0 0.0
    %1164 = vmatpush1.msra.mxu0 %v118
    %1165 = vmatprep.subr.mxu0 0.0
    %1166 = vmatpush1.msra.mxu0 %v117
    %1167 = vmatprep.subr.mxu0 0.0
    %1168 = vmatpush1.msra.mxu0 %v116
    %1169 = vmatprep.subr.mxu0 0.0
    %1170 = vmatpush1.msra.mxu0 %v115
    %1171 = vmatprep.subr.mxu0 0.0
    %1172 = vmatpush2.msra.mxu0 0.0
    %1173 = vmatprep.subr.mxu0 0.0
    %1174 = vmatpush2.msra.mxu0 0.0
    %1175 = vmatprep.subr.mxu0 0.0
    %1176 = vmatpush2.msra.mxu0 0.0
    %1177 = vmatprep.subr.mxu0 0.0
    %1178 = vmatpush2.msra.mxu0 0.0
    %1179 = vmatprep.subr.mxu0 0.0
    %1180 = vmatpush2.msra.mxu0 0.0
    %1181 = vmatprep.subr.mxu0 0.0
    %1182 = vmatpush2.msra.mxu0 0.0
    %1183 = vmatprep.subr.mxu0 0.0
    %1184 = vmatpush2.msra.mxu0 0.0
    %1185 = vmatprep.subr.mxu0 0.0
    %1186 = vmatpush2.msra.mxu0 0.0
    %1187 = vmatprep.subr.mxu0 0.0
    %1188 = vmatpush2.msra.mxu0 0.0
    %1189 = vmatprep.subr.mxu0 0.0
    %1190 = vmatpush2.msra.mxu0 0.0
    %1191 = vmatprep.subr.mxu0 0.0
    %1192 = vmatpush2.msra.mxu0 0.0
    %1193 = vmatprep.subr.mxu0 0.0
    %1194 = vmatpush2.msra.mxu0 0.0
    %1195 = vmatprep.subr.mxu0 0.0
    %1196 = vmatpush2.msra.mxu0 0.0
    %1197 = vmatprep.subr.mxu0 0.0
    %1198 = vmatpush2.msra.mxu0 0.0
    %1199 = vmatprep.subr.mxu0 0.0
    %1200 = vmatpush2.msra.mxu0 0.0
    %1201 = vmatprep.subr.mxu0 0.0
    %1202 = vmatpush2.msra.mxu0 0.0
    %1203 = vmatprep.mubr.f32.mxu0 0.0
    %1204 = vmatmul.mubr.f32.gmra.mxu0 %v214
    %v1205 = vpop.f32.mrf.mxu0
    %v1206 = vadd.f32 0.0, %v1205
    %v1207 = vpop.f32.mrf.mxu0
    %1208 = vdwg.mxu0
    %v1210 = vrot.slane %v1206, 2
    %v1212 = vadd.f32 %v1136, %v1210
    %v1213 = vxor.u32 %v1212, 2147483648
    %v1214 = vmul.f32 %v1213, 1.442695
    %v1215 = vpow.pop %v1214
    %v1216 = vadd.f32 %v1215, 1.0
    %v1217 = vrcp.pop %v1216
    %v1218 = vmul.f32 1.0, %v1217
    %v1219 = vtanh.pop %v1212
    %v1220 = vmul.f32 %v1218, 0.0
    %1222 = vrot.lane.b32.xlu0 %v1219, 64
    %v1223 = vpop.permute.xlu0 %1222
    %v1225 = vmul.f32 %v1218, %v1223
    %1227 = vrot.lane.b32.xlu0 %v1225, 32
    %v1228 = vpop.permute.xlu0 %1227
    %v1230 = vadd.f32 %v1220, %v1228
    %v1231 = vtanh.pop %v1230
    %1233 = vrot.lane.b32.xlu0 %v1231, 64
    %v1234 = vpop.permute.xlu0 %1233
    %v1236 = vmul.f32 %v1218, %v1234
    %v1238 = vrot.slane %v1236, 6
    %1239 = vrot.lane.b32.xlu0 %v1238, 32
    %v1240 = vpop.permute.xlu0 %1239
    %v1241 = vsel %vm212, %v1240, 0
    %1243 = vmatprep.subr.mxu0 0.0
    %1244 = vmatpush1.msra.mxu0 0.0
    %1245 = vmatprep.subr.mxu0 0.0
    %1246 = vmatpush1.msra.mxu0 0.0
    %1247 = vmatprep.subr.mxu0 0.0
    %1248 = vmatpush1.msra.mxu0 0.0
    %1249 = vmatprep.subr.mxu0 0.0
    %1250 = vmatpush1.msra.mxu0 0.0
    %1251 = vmatprep.subr.mxu0 0.0
    %1252 = vmatpush1.msra.mxu0 0.0
    %1253 = vmatprep.subr.mxu0 0.0
    %1254 = vmatpush1.msra.mxu0 0.0
    %1255 = vmatprep.subr.mxu0 0.0
    %1256 = vmatpush1.msra.mxu0 0.0
    %1257 = vmatprep.subr.mxu0 0.0
    %1258 = vmatpush1.msra.mxu0 0.0
    %1259 = vmatprep.subr.mxu0 0.0
    %1260 = vmatpush1.msra.mxu0 0.0
    %1261 = vmatprep.subr.mxu0 0.0
    %1262 = vmatpush1.msra.mxu0 0.0
    %1263 = vmatprep.subr.mxu0 0.0
    %1264 = vmatpush1.msra.mxu0 0.0
    %1265 = vmatprep.subr.mxu0 0.0
    %1266 = vmatpush1.msra.mxu0 0.0
    %1267 = vmatprep.subr.mxu0 0.0
    %1268 = vmatpush1.msra.mxu0 %v118
    %1269 = vmatprep.subr.mxu0 0.0
    %1270 = vmatpush1.msra.mxu0 %v117
    %1271 = vmatprep.subr.mxu0 0.0
    %1272 = vmatpush1.msra.mxu0 %v116
    %1273 = vmatprep.subr.mxu0 0.0
    %1274 = vmatpush1.msra.mxu0 %v115
    %1275 = vmatprep.subr.mxu0 0.0
    %1276 = vmatpush2.msra.mxu0 0.0
    %1277 = vmatprep.subr.mxu0 0.0
    %1278 = vmatpush2.msra.mxu0 0.0
    %1279 = vmatprep.subr.mxu0 0.0
    %1280 = vmatpush2.msra.mxu0 0.0
    %1281 = vmatprep.subr.mxu0 0.0
    %1282 = vmatpush2.msra.mxu0 0.0
    %1283 = vmatprep.subr.mxu0 0.0
    %1284 = vmatpush2.msra.mxu0 0.0
    %1285 = vmatprep.subr.mxu0 0.0
    %1286 = vmatpush2.msra.mxu0 0.0
    %1287 = vmatprep.subr.mxu0 0.0
    %1288 = vmatpush2.msra.mxu0 0.0
    %1289 = vmatprep.subr.mxu0 0.0
    %1290 = vmatpush2.msra.mxu0 0.0
    %1291 = vmatprep.subr.mxu0 0.0
    %1292 = vmatpush2.msra.mxu0 0.0
    %1293 = vmatprep.subr.mxu0 0.0
    %1294 = vmatpush2.msra.mxu0 0.0
    %1295 = vmatprep.subr.mxu0 0.0
    %1296 = vmatpush2.msra.mxu0 0.0
    %1297 = vmatprep.subr.mxu0 0.0
    %1298 = vmatpush2.msra.mxu0 0.0
    %1299 = vmatprep.subr.mxu0 0.0
    %1300 = vmatpush2.msra.mxu0 0.0
    %1301 = vmatprep.subr.mxu0 0.0
    %1302 = vmatpush2.msra.mxu0 0.0
    %1303 = vmatprep.subr.mxu0 0.0
    %1304 = vmatpush2.msra.mxu0 0.0
    %1305 = vmatprep.subr.mxu0 0.0
    %1306 = vmatpush2.msra.mxu0 0.0
    %1307 = vmatprep.mubr.f32.mxu0 0.0
    %1308 = vmatmul.mubr.f32.gmra.mxu0 %v1241
    %v1309 = vpop.f32.mrf.mxu0
    %v1310 = vadd.f32 0.0, %v1309
    %v1311 = vpop.f32.mrf.mxu0
    %1312 = vdwg.mxu0
    %v1314 = vrot.slane %v1310, 4
    %v1316 = vadd.f32 %v1136, %v1314
    %v1317 = vxor.u32 %v1316, 2147483648
    %v1318 = vmul.f32 %v1317, 1.442695
    %v1319 = vpow.pop %v1318
    %v1320 = vadd.f32 %v1319, 1.0
    %v1321 = vrcp.pop %v1320
    %v1322 = vmul.f32 1.0, %v1321
    %v1323 = vtanh.pop %v1316
    %v1325 = vrot.slane %v1230, 2
    %v1327 = vmul.f32 %v1322, %v1325
    %1329 = vrot.lane.b32.xlu0 %v1323, 64
    %v1330 = vpop.permute.xlu0 %1329
    %v1332 = vmul.f32 %v1322, %v1330
    %1334 = vrot.lane.b32.xlu0 %v1332, 32
    %v1335 = vpop.permute.xlu0 %1334
    %v1337 = vadd.f32 %v1327, %v1335
    %v1338 = vtanh.pop %v1337
    %1340 = vrot.lane.b32.xlu0 %v1338, 64
    %v1341 = vpop.permute.xlu0 %1340
    %v1343 = vmul.f32 %v1322, %v1341
    %v1345 = vrot.slane %v1343, 4
    %1346 = vrot.lane.b32.xlu0 %v1345, 32
    %v1347 = vpop.permute.xlu0 %1346
    %v1348 = vsel %vm212, %v1347, 0
    %1350 = vmatprep.subr.mxu0 0.0
    %1351 = vmatpush1.msra.mxu0 0.0
    %1352 = vmatprep.subr.mxu0 0.0
    %1353 = vmatpush1.msra.mxu0 0.0
    %1354 = vmatprep.subr.mxu0 0.0
    %1355 = vmatpush1.msra.mxu0 0.0
    %1356 = vmatprep.subr.mxu0 0.0
    %1357 = vmatpush1.msra.mxu0 0.0
    %1358 = vmatprep.subr.mxu0 0.0
    %1359 = vmatpush1.msra.mxu0 0.0
    %1360 = vmatprep.subr.mxu0 0.0
    %1361 = vmatpush1.msra.mxu0 0.0
    %1362 = vmatprep.subr.mxu0 0.0
    %1363 = vmatpush1.msra.mxu0 0.0
    %1364 = vmatprep.subr.mxu0 0.0
    %1365 = vmatpush1.msra.mxu0 0.0
    %1366 = vmatprep.subr.mxu0 0.0
    %1367 = vmatpush1.msra.mxu0 0.0
    %1368 = vmatprep.subr.mxu0 0.0
    %1369 = vmatpush1.msra.mxu0 0.0
    %1370 = vmatprep.subr.mxu0 0.0
    %1371 = vmatpush1.msra.mxu0 0.0
    %1372 = vmatprep.subr.mxu0 0.0
    %1373 = vmatpush1.msra.mxu0 0.0
    %1374 = vmatprep.subr.mxu0 0.0
    %1375 = vmatpush1.msra.mxu0 %v118
    %1376 = vmatprep.subr.mxu0 0.0
    %1377 = vmatpush1.msra.mxu0 %v117
    %1378 = vmatprep.subr.mxu0 0.0
    %1379 = vmatpush1.msra.mxu0 %v116
    %1380 = vmatprep.subr.mxu0 0.0
    %1381 = vmatpush1.msra.mxu0 %v115
    %1382 = vmatprep.subr.mxu0 0.0
    %1383 = vmatpush2.msra.mxu0 0.0
    %1384 = vmatprep.subr.mxu0 0.0
    %1385 = vmatpush2.msra.mxu0 0.0
    %1386 = vmatprep.subr.mxu0 0.0
    %1387 = vmatpush2.msra.mxu0 0.0
    %1388 = vmatprep.subr.mxu0 0.0
    %1389 = vmatpush2.msra.mxu0 0.0
    %1390 = vmatprep.subr.mxu0 0.0
    %1391 = vmatpush2.msra.mxu0 0.0
    %1392 = vmatprep.subr.mxu0 0.0
    %1393 = vmatpush2.msra.mxu0 0.0
    %1394 = vmatprep.subr.mxu0 0.0
    %1395 = vmatpush2.msra.mxu0 0.0
    %1396 = vmatprep.subr.mxu0 0.0
    %1397 = vmatpush2.msra.mxu0 0.0
    %1398 = vmatprep.subr.mxu0 0.0
    %1399 = vmatpush2.msra.mxu0 0.0
    %1400 = vmatprep.subr.mxu0 0.0
    %1401 = vmatpush2.msra.mxu0 0.0
    %1402 = vmatprep.subr.mxu0 0.0
    %1403 = vmatpush2.msra.mxu0 0.0
    %1404 = vmatprep.subr.mxu0 0.0
    %1405 = vmatpush2.msra.mxu0 0.0
    %1406 = vmatprep.subr.mxu0 0.0
    %1407 = vmatpush2.msra.mxu0 0.0
    %1408 = vmatprep.subr.mxu0 0.0
    %1409 = vmatpush2.msra.mxu0 0.0
    %1410 = vmatprep.subr.mxu0 0.0
    %1411 = vmatpush2.msra.mxu0 0.0
    %1412 = vmatprep.subr.mxu0 0.0
    %1413 = vmatpush2.msra.mxu0 0.0
    %1414 = vmatprep.mubr.f32.mxu0 0.0
    %1415 = vmatmul.mubr.f32.gmra.mxu0 %v1348
    %v1416 = vpop.f32.mrf.mxu0
    %v1417 = vadd.f32 0.0, %v1416
    %v1418 = vpop.f32.mrf.mxu0
    %1419 = vdwg.mxu0
    %v1421 = vrot.slane %v1417, 6
    %v1423 = vadd.f32 %v1136, %v1421
    %v1424 = vxor.u32 %v1423, 2147483648
    %v1425 = vmul.f32 %v1424, 1.442695
    %v1426 = vpow.pop %v1425
    %v1427 = vadd.f32 %v1426, 1.0
    %v1428 = vrcp.pop %v1427
    %v1429 = vmul.f32 1.0, %v1428
    %v1430 = vtanh.pop %v1423
    %v1432 = vrot.slane %v1337, 2
    %v1434 = vmul.f32 %v1429, %v1432
    %1436 = vrot.lane.b32.xlu0 %v1430, 64
    %v1437 = vpop.permute.xlu0 %1436
    %v1439 = vmul.f32 %v1429, %v1437
    %1441 = vrot.lane.b32.xlu0 %v1439, 32
    %v1442 = vpop.permute.xlu0 %1441
    %v1444 = vadd.f32 %v1434, %v1442
    %v1445 = vtanh.pop %v1444
    %1447 = vrot.lane.b32.xlu0 %v1445, 64
    %v1448 = vpop.permute.xlu0 %1447
    %v1450 = vmul.f32 %v1429, %v1448
    %v1452 = vrot.slane %v1450, 2
    %1453 = vrot.lane.b32.xlu0 %v1452, 32
    %v1454 = vpop.permute.xlu0 %1453
    %v1455 = vsel %vm212, %v1454, 0
    %1457 = vmatprep.subr.mxu0 0.0
    %1458 = vmatpush1.msra.mxu0 0.0
    %1459 = vmatprep.subr.mxu0 0.0
    %1460 = vmatpush1.msra.mxu0 0.0
    %1461 = vmatprep.subr.mxu0 0.0
    %1462 = vmatpush1.msra.mxu0 0.0
    %1463 = vmatprep.subr.mxu0 0.0
    %1464 = vmatpush1.msra.mxu0 0.0
    %1465 = vmatprep.subr.mxu0 0.0
    %1466 = vmatpush1.msra.mxu0 0.0
    %1467 = vmatprep.subr.mxu0 0.0
    %1468 = vmatpush1.msra.mxu0 0.0
    %1469 = vmatprep.subr.mxu0 0.0
    %1470 = vmatpush1.msra.mxu0 0.0
    %1471 = vmatprep.subr.mxu0 0.0
    %1472 = vmatpush1.msra.mxu0 0.0
    %1473 = vmatprep.subr.mxu0 0.0
    %1474 = vmatpush1.msra.mxu0 0.0
    %1475 = vmatprep.subr.mxu0 0.0
    %1476 = vmatpush1.msra.mxu0 0.0
    %1477 = vmatprep.subr.mxu0 0.0
    %1478 = vmatpush1.msra.mxu0 0.0
    %1479 = vmatprep.subr.mxu0 0.0
    %1480 = vmatpush1.msra.mxu0 0.0
    %1481 = vmatprep.subr.mxu0 0.0
    %1482 = vmatpush1.msra.mxu0 %v118
    %1483 = vmatprep.subr.mxu0 0.0
    %1484 = vmatpush1.msra.mxu0 %v117
    %1485 = vmatprep.subr.mxu0 0.0
    %1486 = vmatpush1.msra.mxu0 %v116
    %1487 = vmatprep.subr.mxu0 0.0
    %1488 = vmatpush1.msra.mxu0 %v115
    %1489 = vmatprep.subr.mxu0 0.0
    %1490 = vmatpush2.msra.mxu0 0.0
    %1491 = vmatprep.subr.mxu0 0.0
    %1492 = vmatpush2.msra.mxu0 0.0
    %1493 = vmatprep.subr.mxu0 0.0
    %1494 = vmatpush2.msra.mxu0 0.0
    %1495 = vmatprep.subr.mxu0 0.0
    %1496 = vmatpush2.msra.mxu0 0.0
    %1497 = vmatprep.subr.mxu0 0.0
    %1498 = vmatpush2.msra.mxu0 0.0
    %1499 = vmatprep.subr.mxu0 0.0
    %1500 = vmatpush2.msra.mxu0 0.0
    %1501 = vmatprep.subr.mxu0 0.0
    %1502 = vmatpush2.msra.mxu0 0.0
    %1503 = vmatprep.subr.mxu0 0.0
    %1504 = vmatpush2.msra.mxu0 0.0
    %1505 = vmatprep.subr.mxu0 0.0
    %1506 = vmatpush2.msra.mxu0 0.0
    %1507 = vmatprep.subr.mxu0 0.0
    %1508 = vmatpush2.msra.mxu0 0.0
    %1509 = vmatprep.subr.mxu0 0.0
    %1510 = vmatpush2.msra.mxu0 0.0
    %1511 = vmatprep.subr.mxu0 0.0
    %1512 = vmatpush2.msra.mxu0 0.0
    %1513 = vmatprep.subr.mxu0 0.0
    %1514 = vmatpush2.msra.mxu0 0.0
    %1515 = vmatprep.subr.mxu0 0.0
    %1516 = vmatpush2.msra.mxu0 0.0
    %1517 = vmatprep.subr.mxu0 0.0
    %1518 = vmatpush2.msra.mxu0 0.0
    %1519 = vmatprep.subr.mxu0 0.0
    %1520 = vmatpush2.msra.mxu0 0.0
    %1521 = vmatprep.mubr.f32.mxu0 0.0
    %1522 = vmatmul.mubr.f32.gmra.mxu0 %v1455
    %v1523 = vpop.f32.mrf.mxu0
    %v1524 = vadd.f32 0.0, %v1523
    %v1525 = vpop.f32.mrf.mxu0
    %1526 = vdwg.mxu0
    %v1527 = vadd.f32 %v1136, %v1524
    %v1528 = vxor.u32 %v1527, 2147483648
    %v1529 = vmul.f32 %v1528, 1.442695
    %v1530 = vpow.pop %v1529
    %v1531 = vadd.f32 %v1530, 1.0
    %v1532 = vrcp.pop %v1531
    %v1533 = vmul.f32 1.0, %v1532
    %v1534 = vtanh.pop %v1527
    %v1536 = vrot.slane %v1444, 2
    %v1538 = vmul.f32 %v1533, %v1536
    %1540 = vrot.lane.b32.xlu0 %v1534, 64
    %v1541 = vpop.permute.xlu0 %1540
    %v1543 = vmul.f32 %v1533, %v1541
    %1545 = vrot.lane.b32.xlu0 %v1543, 32
    %v1546 = vpop.permute.xlu0 %1545
    %v1548 = vadd.f32 %v1538, %v1546
    %v1549 = vtanh.pop %v1548
    %1551 = vrot.lane.b32.xlu0 %v1549, 64
    %v1552 = vpop.permute.xlu0 %1551
    %v1554 = vmul.f32 %v1533, %v1552
    %1556 = vrot.lane.b32.xlu0 %v1554, 32
    %v1557 = vpop.permute.xlu0 %1556
    %v1558 = vsel %vm212, %v1557, 0
    %1560 = vmatprep.subr.mxu0 0.0
    %1561 = vmatpush1.msra.mxu0 0.0
    %1562 = vmatprep.subr.mxu0 0.0
    %1563 = vmatpush1.msra.mxu0 0.0
    %1564 = vmatprep.subr.mxu0 0.0
    %1565 = vmatpush1.msra.mxu0 0.0
    %1566 = vmatprep.subr.mxu0 0.0
    %1567 = vmatpush1.msra.mxu0 0.0
    %1568 = vmatprep.subr.mxu0 0.0
    %1569 = vmatpush1.msra.mxu0 0.0
    %1570 = vmatprep.subr.mxu0 0.0
    %1571 = vmatpush1.msra.mxu0 0.0
    %1572 = vmatprep.subr.mxu0 0.0
    %1573 = vmatpush1.msra.mxu0 0.0
    %1574 = vmatprep.subr.mxu0 0.0
    %1575 = vmatpush1.msra.mxu0 0.0
    %1576 = vmatprep.subr.mxu0 0.0
    %1577 = vmatpush1.msra.mxu0 0.0
    %1578 = vmatprep.subr.mxu0 0.0
    %1579 = vmatpush1.msra.mxu0 0.0
    %1580 = vmatprep.subr.mxu0 0.0
    %1581 = vmatpush1.msra.mxu0 0.0
    %1582 = vmatprep.subr.mxu0 0.0
    %1583 = vmatpush1.msra.mxu0 0.0
    %1584 = vmatprep.subr.mxu0 0.0
    %1585 = vmatpush1.msra.mxu0 %v118
    %1586 = vmatprep.subr.mxu0 0.0
    %1587 = vmatpush1.msra.mxu0 %v117
    %1588 = vmatprep.subr.mxu0 0.0
    %1589 = vmatpush1.msra.mxu0 %v116
    %1590 = vmatprep.subr.mxu0 0.0
    %1591 = vmatpush1.msra.mxu0 %v115
    %1592 = vmatprep.subr.mxu0 0.0
    %1593 = vmatpush2.msra.mxu0 0.0
    %1594 = vmatprep.subr.mxu0 0.0
    %1595 = vmatpush2.msra.mxu0 0.0
    %1596 = vmatprep.subr.mxu0 0.0
    %1597 = vmatpush2.msra.mxu0 0.0
    %1598 = vmatprep.subr.mxu0 0.0
    %1599 = vmatpush2.msra.mxu0 0.0
    %1600 = vmatprep.subr.mxu0 0.0
    %1601 = vmatpush2.msra.mxu0 0.0
    %1602 = vmatprep.subr.mxu0 0.0
    %1603 = vmatpush2.msra.mxu0 0.0
    %1604 = vmatprep.subr.mxu0 0.0
    %1605 = vmatpush2.msra.mxu0 0.0
    %1606 = vmatprep.subr.mxu0 0.0
    %1607 = vmatpush2.msra.mxu0 0.0
    %1608 = vmatprep.subr.mxu0 0.0
    %1609 = vmatpush2.msra.mxu0 0.0
    %1610 = vmatprep.subr.mxu0 0.0
    %1611 = vmatpush2.msra.mxu0 0.0
    %1612 = vmatprep.subr.mxu0 0.0
    %1613 = vmatpush2.msra.mxu0 0.0
    %1614 = vmatprep.subr.mxu0 0.0
    %1615 = vmatpush2.msra.mxu0 0.0
    %1616 = vmatprep.subr.mxu0 0.0
    %1617 = vmatpush2.msra.mxu0 0.0
    %1618 = vmatprep.subr.mxu0 0.0
    %1619 = vmatpush2.msra.mxu0 0.0
    %1620 = vmatprep.subr.mxu0 0.0
    %1621 = vmatpush2.msra.mxu0 0.0
    %1622 = vmatprep.subr.mxu0 0.0
    %1623 = vmatpush2.msra.mxu0 0.0
    %1624 = vmatprep.mubr.f32.mxu0 0.0
    %1625 = vmatmul.mubr.f32.gmra.mxu0 %v1558
    %v1626 = vpop.f32.mrf.mxu0
    %v1627 = vadd.f32 0.0, %v1626
    %v1628 = vpop.f32.mrf.mxu0
    %1629 = vdwg.mxu0
    %v1631 = vrot.slane %v1627, 2
    %v1633 = vadd.f32 %v1131, %v1631
    %v1634 = vxor.u32 %v1633, 2147483648
    %v1635 = vmul.f32 %v1634, 1.442695
    %v1636 = vpow.pop %v1635
    %v1637 = vadd.f32 %v1636, 1.0
    %v1638 = vrcp.pop %v1637
    %v1639 = vmul.f32 1.0, %v1638
    %v1640 = vtanh.pop %v1633
    %v1642 = vrot.slane %v1548, 2
    %v1644 = vmul.f32 %v1639, %v1642
    %1646 = vrot.lane.b32.xlu0 %v1640, 64
    %v1647 = vpop.permute.xlu0 %1646
    %v1649 = vmul.f32 %v1639, %v1647
    %1651 = vrot.lane.b32.xlu0 %v1649, 32
    %v1652 = vpop.permute.xlu0 %1651
    %v1654 = vadd.f32 %v1644, %v1652
    %v1655 = vtanh.pop %v1654
    %1657 = vrot.lane.b32.xlu0 %v1655, 64
    %v1658 = vpop.permute.xlu0 %1657
    %v1660 = vmul.f32 %v1639, %v1658
    %v1662 = vrot.slane %v1660, 6
    %1663 = vrot.lane.b32.xlu0 %v1662, 32
    %v1664 = vpop.permute.xlu0 %1663
    %v1665 = vsel %vm212, %v1664, 0
    %1667 = vmatprep.subr.mxu0 0.0
    %1668 = vmatpush1.msra.mxu0 0.0
    %1669 = vmatprep.subr.mxu0 0.0
    %1670 = vmatpush1.msra.mxu0 0.0
    %1671 = vmatprep.subr.mxu0 0.0
    %1672 = vmatpush1.msra.mxu0 0.0
    %1673 = vmatprep.subr.mxu0 0.0
    %1674 = vmatpush1.msra.mxu0 0.0
    %1675 = vmatprep.subr.mxu0 0.0
    %1676 = vmatpush1.msra.mxu0 0.0
    %1677 = vmatprep.subr.mxu0 0.0
    %1678 = vmatpush1.msra.mxu0 0.0
    %1679 = vmatprep.subr.mxu0 0.0
    %1680 = vmatpush1.msra.mxu0 0.0
    %1681 = vmatprep.subr.mxu0 0.0
    %1682 = vmatpush1.msra.mxu0 0.0
    %1683 = vmatprep.subr.mxu0 0.0
    %1684 = vmatpush1.msra.mxu0 0.0
    %1685 = vmatprep.subr.mxu0 0.0
    %1686 = vmatpush1.msra.mxu0 0.0
    %1687 = vmatprep.subr.mxu0 0.0
    %1688 = vmatpush1.msra.mxu0 0.0
    %1689 = vmatprep.subr.mxu0 0.0
    %1690 = vmatpush1.msra.mxu0 0.0
    %1691 = vmatprep.subr.mxu0 0.0
    %1692 = vmatpush1.msra.mxu0 %v118
    %1693 = vmatprep.subr.mxu0 0.0
    %1694 = vmatpush1.msra.mxu0 %v117
    %1695 = vmatprep.subr.mxu0 0.0
    %1696 = vmatpush1.msra.mxu0 %v116
    %1697 = vmatprep.subr.mxu0 0.0
    %1698 = vmatpush1.msra.mxu0 %v115
    %1699 = vmatprep.subr.mxu0 0.0
    %1700 = vmatpush2.msra.mxu0 0.0
    %1701 = vmatprep.subr.mxu0 0.0
    %1702 = vmatpush2.msra.mxu0 0.0
    %1703 = vmatprep.subr.mxu0 0.0
    %1704 = vmatpush2.msra.mxu0 0.0
    %1705 = vmatprep.subr.mxu0 0.0
    %1706 = vmatpush2.msra.mxu0 0.0
    %1707 = vmatprep.subr.mxu0 0.0
    %1708 = vmatpush2.msra.mxu0 0.0
    %1709 = vmatprep.subr.mxu0 0.0
    %1710 = vmatpush2.msra.mxu0 0.0
    %1711 = vmatprep.subr.mxu0 0.0
    %1712 = vmatpush2.msra.mxu0 0.0
    %1713 = vmatprep.subr.mxu0 0.0
    %1714 = vmatpush2.msra.mxu0 0.0
    %1715 = vmatprep.subr.mxu0 0.0
    %1716 = vmatpush2.msra.mxu0 0.0
    %1717 = vmatprep.subr.mxu0 0.0
    %1718 = vmatpush2.msra.mxu0 0.0
    %1719 = vmatprep.subr.mxu0 0.0
    %1720 = vmatpush2.msra.mxu0 0.0
    %1721 = vmatprep.subr.mxu0 0.0
    %1722 = vmatpush2.msra.mxu0 0.0
    %1723 = vmatprep.subr.mxu0 0.0
    %1724 = vmatpush2.msra.mxu0 0.0
    %1725 = vmatprep.subr.mxu0 0.0
    %1726 = vmatpush2.msra.mxu0 0.0
    %1727 = vmatprep.subr.mxu0 0.0
    %1728 = vmatpush2.msra.mxu0 0.0
    %1729 = vmatprep.subr.mxu0 0.0
    %1730 = vmatpush2.msra.mxu0 0.0
    %1731 = vmatprep.mubr.f32.mxu0 0.0
    %1732 = vmatmul.mubr.f32.gmra.mxu0 %v1665
    %v1733 = vpop.f32.mrf.mxu0
    %v1734 = vadd.f32 0.0, %v1733
    %v1735 = vpop.f32.mrf.mxu0
    %1736 = vdwg.mxu0
    %v1738 = vrot.slane %v1734, 4
    %v1740 = vadd.f32 %v1131, %v1738
    %v1741 = vxor.u32 %v1740, 2147483648
    %v1742 = vmul.f32 %v1741, 1.442695
    %v1743 = vpow.pop %v1742
    %v1744 = vadd.f32 %v1743, 1.0
    %v1745 = vrcp.pop %v1744
    %v1746 = vmul.f32 1.0, %v1745
    %v1747 = vtanh.pop %v1740
    %v1749 = vrot.slane %v1654, 2
    %v1751 = vmul.f32 %v1746, %v1749
    %1753 = vrot.lane.b32.xlu0 %v1747, 64
    %v1754 = vpop.permute.xlu0 %1753
    %v1756 = vmul.f32 %v1746, %v1754
    %1758 = vrot.lane.b32.xlu0 %v1756, 32
    %v1759 = vpop.permute.xlu0 %1758
    %v1761 = vadd.f32 %v1751, %v1759
    %v1762 = vtanh.pop %v1761
    %1764 = vrot.lane.b32.xlu0 %v1762, 64
    %v1765 = vpop.permute.xlu0 %1764
    %v1767 = vmul.f32 %v1746, %v1765
    %v1769 = vrot.slane %v1767, 4
    %1770 = vrot.lane.b32.xlu0 %v1769, 32
    %v1771 = vpop.permute.xlu0 %1770
    %v1772 = vsel %vm212, %v1771, 0
    %1774 = vmatprep.subr.mxu0 0.0
    %1775 = vmatpush1.msra.mxu0 0.0
    %1776 = vmatprep.subr.mxu0 0.0
    %1777 = vmatpush1.msra.mxu0 0.0
    %1778 = vmatprep.subr.mxu0 0.0
    %1779 = vmatpush1.msra.mxu0 0.0
    %1780 = vmatprep.subr.mxu0 0.0
    %1781 = vmatpush1.msra.mxu0 0.0
    %1782 = vmatprep.subr.mxu0 0.0
    %1783 = vmatpush1.msra.mxu0 0.0
    %1784 = vmatprep.subr.mxu0 0.0
    %1785 = vmatpush1.msra.mxu0 0.0
    %1786 = vmatprep.subr.mxu0 0.0
    %1787 = vmatpush1.msra.mxu0 0.0
    %1788 = vmatprep.subr.mxu0 0.0
    %1789 = vmatpush1.msra.mxu0 0.0
    %1790 = vmatprep.subr.mxu0 0.0
    %1791 = vmatpush1.msra.mxu0 0.0
    %1792 = vmatprep.subr.mxu0 0.0
    %1793 = vmatpush1.msra.mxu0 0.0
    %1794 = vmatprep.subr.mxu0 0.0
    %1795 = vmatpush1.msra.mxu0 0.0
    %1796 = vmatprep.subr.mxu0 0.0
    %1797 = vmatpush1.msra.mxu0 0.0
    %1798 = vmatprep.subr.mxu0 0.0
    %1799 = vmatpush1.msra.mxu0 %v118
    %1800 = vmatprep.subr.mxu0 0.0
    %1801 = vmatpush1.msra.mxu0 %v117
    %1802 = vmatprep.subr.mxu0 0.0
    %1803 = vmatpush1.msra.mxu0 %v116
    %1804 = vmatprep.subr.mxu0 0.0
    %1805 = vmatpush1.msra.mxu0 %v115
    %1806 = vmatprep.subr.mxu0 0.0
    %1807 = vmatpush2.msra.mxu0 0.0
    %1808 = vmatprep.subr.mxu0 0.0
    %1809 = vmatpush2.msra.mxu0 0.0
    %1810 = vmatprep.subr.mxu0 0.0
    %1811 = vmatpush2.msra.mxu0 0.0
    %1812 = vmatprep.subr.mxu0 0.0
    %1813 = vmatpush2.msra.mxu0 0.0
    %1814 = vmatprep.subr.mxu0 0.0
    %1815 = vmatpush2.msra.mxu0 0.0
    %1816 = vmatprep.subr.mxu0 0.0
    %1817 = vmatpush2.msra.mxu0 0.0
    %1818 = vmatprep.subr.mxu0 0.0
    %1819 = vmatpush2.msra.mxu0 0.0
    %1820 = vmatprep.subr.mxu0 0.0
    %1821 = vmatpush2.msra.mxu0 0.0
    %1822 = vmatprep.subr.mxu0 0.0
    %1823 = vmatpush2.msra.mxu0 0.0
    %1824 = vmatprep.subr.mxu0 0.0
    %1825 = vmatpush2.msra.mxu0 0.0
    %1826 = vmatprep.subr.mxu0 0.0
    %1827 = vmatpush2.msra.mxu0 0.0
    %1828 = vmatprep.subr.mxu0 0.0
    %1829 = vmatpush2.msra.mxu0 0.0
    %1830 = vmatprep.subr.mxu0 0.0
    %1831 = vmatpush2.msra.mxu0 0.0
    %1832 = vmatprep.subr.mxu0 0.0
    %1833 = vmatpush2.msra.mxu0 0.0
    %1834 = vmatprep.subr.mxu0 0.0
    %1835 = vmatpush2.msra.mxu0 0.0
    %1836 = vmatprep.subr.mxu0 0.0
    %1837 = vmatpush2.msra.mxu0 0.0
    %1838 = vmatprep.mubr.f32.mxu0 0.0
    %1839 = vmatmul.mubr.f32.gmra.mxu0 %v1772
    %v1840 = vpop.f32.mrf.mxu0
    %v1841 = vadd.f32 0.0, %v1840
    %v1842 = vpop.f32.mrf.mxu0
    %1843 = vdwg.mxu0
    %v1845 = vrot.slane %v1841, 6
    %v1847 = vadd.f32 %v1131, %v1845
    %v1848 = vxor.u32 %v1847, 2147483648
    %v1849 = vmul.f32 %v1848, 1.442695
    %v1850 = vpow.pop %v1849
    %v1851 = vadd.f32 %v1850, 1.0
    %v1852 = vrcp.pop %v1851
    %v1853 = vmul.f32 1.0, %v1852
    %v1854 = vtanh.pop %v1847
    %v1856 = vrot.slane %v1761, 2
    %v1858 = vmul.f32 %v1853, %v1856
    %1860 = vrot.lane.b32.xlu0 %v1854, 64
    %v1861 = vpop.permute.xlu0 %1860
    %v1863 = vmul.f32 %v1853, %v1861
    %1865 = vrot.lane.b32.xlu0 %v1863, 32
    %v1866 = vpop.permute.xlu0 %1865
    %v1868 = vadd.f32 %v1858, %v1866
    %v1869 = vtanh.pop %v1868
    %1871 = vrot.lane.b32.xlu0 %v1869, 64
    %v1872 = vpop.permute.xlu0 %1871
    %v1874 = vmul.f32 %v1853, %v1872
    %v1876 = vrot.slane %v1874, 2
    %1877 = vrot.lane.b32.xlu0 %v1876, 32
    %v1878 = vpop.permute.xlu0 %1877
    %v1879 = vsel %vm212, %v1878, 0
    %1881 = vmatprep.subr.mxu0 0.0
    %1882 = vmatpush1.msra.mxu0 0.0
    %1883 = vmatprep.subr.mxu0 0.0
    %1884 = vmatpush1.msra.mxu0 0.0
    %1885 = vmatprep.subr.mxu0 0.0
    %1886 = vmatpush1.msra.mxu0 0.0
    %1887 = vmatprep.subr.mxu0 0.0
    %1888 = vmatpush1.msra.mxu0 0.0
    %1889 = vmatprep.subr.mxu0 0.0
    %1890 = vmatpush1.msra.mxu0 0.0
    %1891 = vmatprep.subr.mxu0 0.0
    %1892 = vmatpush1.msra.mxu0 0.0
    %1893 = vmatprep.subr.mxu0 0.0
    %1894 = vmatpush1.msra.mxu0 0.0
    %1895 = vmatprep.subr.mxu0 0.0
    %1896 = vmatpush1.msra.mxu0 0.0
    %1897 = vmatprep.subr.mxu0 0.0
    %1898 = vmatpush1.msra.mxu0 0.0
    %1899 = vmatprep.subr.mxu0 0.0
    %1900 = vmatpush1.msra.mxu0 0.0
    %1901 = vmatprep.subr.mxu0 0.0
    %1902 = vmatpush1.msra.mxu0 0.0
    %1903 = vmatprep.subr.mxu0 0.0
    %1904 = vmatpush1.msra.mxu0 0.0
    %1905 = vmatprep.subr.mxu0 0.0
    %1906 = vmatpush1.msra.mxu0 %v118
    %1907 = vmatprep.subr.mxu0 0.0
    %1908 = vmatpush1.msra.mxu0 %v117
    %1909 = vmatprep.subr.mxu0 0.0
    %1910 = vmatpush1.msra.mxu0 %v116
    %1911 = vmatprep.subr.mxu0 0.0
    %1912 = vmatpush1.msra.mxu0 %v115
    %1913 = vmatprep.subr.mxu0 0.0
    %1914 = vmatpush2.msra.mxu0 0.0
    %1915 = vmatprep.subr.mxu0 0.0
    %1916 = vmatpush2.msra.mxu0 0.0
    %1917 = vmatprep.subr.mxu0 0.0
    %1918 = vmatpush2.msra.mxu0 0.0
    %1919 = vmatprep.subr.mxu0 0.0
    %1920 = vmatpush2.msra.mxu0 0.0
    %1921 = vmatprep.subr.mxu0 0.0
    %1922 = vmatpush2.msra.mxu0 0.0
    %1923 = vmatprep.subr.mxu0 0.0
    %1924 = vmatpush2.msra.mxu0 0.0
    %1925 = vmatprep.subr.mxu0 0.0
    %1926 = vmatpush2.msra.mxu0 0.0
    %1927 = vmatprep.subr.mxu0 0.0
    %1928 = vmatpush2.msra.mxu0 0.0
    %1929 = vmatprep.subr.mxu0 0.0
    %1930 = vmatpush2.msra.mxu0 0.0
    %1931 = vmatprep.subr.mxu0 0.0
    %1932 = vmatpush2.msra.mxu0 0.0
    %1933 = vmatprep.subr.mxu0 0.0
    %1934 = vmatpush2.msra.mxu0 0.0
    %1935 = vmatprep.subr.mxu0 0.0
    %1936 = vmatpush2.msra.mxu0 0.0
    %1937 = vmatprep.subr.mxu0 0.0
    %1938 = vmatpush2.msra.mxu0 0.0
    %1939 = vmatprep.subr.mxu0 0.0
    %1940 = vmatpush2.msra.mxu0 0.0
    %1941 = vmatprep.subr.mxu0 0.0
    %1942 = vmatpush2.msra.mxu0 0.0
    %1943 = vmatprep.subr.mxu0 0.0
    %1944 = vmatpush2.msra.mxu0 0.0
    %1945 = vmatprep.mubr.f32.mxu0 0.0
    %1946 = vmatmul.mubr.f32.gmra.mxu0 %v1879
    %v1947 = vpop.f32.mrf.mxu0
    %v1948 = vadd.f32 0.0, %v1947
    %v1949 = vpop.f32.mrf.mxu0
    %1950 = vdwg.mxu0
    %v1951 = vadd.f32 %v1131, %v1948
    %v1952 = vxor.u32 %v1951, 2147483648
    %v1953 = vmul.f32 %v1952, 1.442695
    %v1954 = vpow.pop %v1953
    %v1955 = vadd.f32 %v1954, 1.0
    %v1956 = vrcp.pop %v1955
    %v1957 = vmul.f32 1.0, %v1956
    %v1958 = vtanh.pop %v1951
    %v1960 = vrot.slane %v1868, 2
    %v1962 = vmul.f32 %v1957, %v1960
    %1964 = vrot.lane.b32.xlu0 %v1958, 64
    %v1965 = vpop.permute.xlu0 %1964
    %v1967 = vmul.f32 %v1957, %v1965
    %1969 = vrot.lane.b32.xlu0 %v1967, 32
    %v1970 = vpop.permute.xlu0 %1969
    %v1972 = vadd.f32 %v1962, %v1970
    %v1973 = vtanh.pop %v1972
    %1975 = vrot.lane.b32.xlu0 %v1973, 64
    %v1976 = vpop.permute.xlu0 %1975
    %v1978 = vmul.f32 %v1957, %v1976
    %1981 = vrot.lane.b32.xlu0 %v1978, 64
    %v1982 = vpop.permute.xlu0 %1981
    %v1984 = vsel %vm212, %v313, %v1982
    %1985 = vrot.lane.b32.xlu0 %v416, 32
    %v1986 = vpop.permute.xlu0 %1985
    %1988 = vrot.lane.b32.xlu0 %v1874, 64
    %v1989 = vpop.permute.xlu0 %1988
    %v1991 = vsel %vm212, %v1986, %v1989
    %1992 = vrot.lane.b32.xlu0 %v523, 32
    %v1993 = vpop.permute.xlu0 %1992
    %1995 = vrot.lane.b32.xlu0 %v1767, 64
    %v1996 = vpop.permute.xlu0 %1995
    %v1998 = vsel %vm212, %v1993, %v1996
    %1999 = vrot.lane.b32.xlu0 %v630, 32
    %v2000 = vpop.permute.xlu0 %1999
    %2002 = vrot.lane.b32.xlu0 %v1660, 64
    %v2003 = vpop.permute.xlu0 %2002
    %v2005 = vsel %vm212, %v2000, %v2003
    %2007 = vrot.lane.b32.xlu0 %v1554, 64
    %v2008 = vpop.permute.xlu0 %2007
    %v2010 = vsel %vm212, %v737, %v2008
    %2011 = vrot.lane.b32.xlu0 %v840, 32
    %v2012 = vpop.permute.xlu0 %2011
    %2014 = vrot.lane.b32.xlu0 %v1450, 64
    %v2015 = vpop.permute.xlu0 %2014
    %v2017 = vsel %vm212, %v2012, %v2015
    %2018 = vrot.lane.b32.xlu0 %v947, 32
    %v2019 = vpop.permute.xlu0 %2018
    %2021 = vrot.lane.b32.xlu0 %v1343, 64
    %v2022 = vpop.permute.xlu0 %2021
    %v2024 = vsel %vm212, %v2019, %v2022
    %2026 = vrot.lane.b32.xlu0 %v1054, 32
    %v2027 = vpop.permute.xlu0 %2026
    %2029 = vrot.lane.b32.xlu0 %v1236, 64
    %v2030 = vpop.permute.xlu0 %2029
    %v2032 = vsel %vm212, %v2027, %v2030
    %vm2033 = vcmask 1041408
    %v2034 = vsel %vm2033, %v1984, %v1991
    %v2035 = vsel %vm133, %v2034, %v1998
    %vm2036 = vcmask 1045504
    %v2037 = vsel %vm2036, %v2035, %v2005
    %v2038 = vsel %vm2033, %v2010, %v2017
    %v2039 = vsel %vm133, %v2038, %v2024
    %v2040 = vsel %vm2036, %v2039, %v2032
    %v2041 = vld [vmem:[%s7] sm:$0xff]
    %v2042 = vld [vmem:[%s7 + $0x8] sm:$0xff]
    %v2043 = vld [vmem:[%s7 + $0x10] sm:$0xff]
    %v2044 = vld [vmem:[%s7 + $0x18] sm:$0xff]
    %v2045 = vld [vmem:[%s7 + $0x20] sm:$0xff]
    %v2046 = vld [vmem:[%s7 + $0x28] sm:$0xff]
    %v2047 = vld [vmem:[%s7 + $0x30] sm:$0xff]
    %v2048 = vld [vmem:[%s7 + $0x38] sm:$0xff]
    %v2049 = vld [vmem:[#allocation5] sm:$0xff]
    %v2050 = vld [vmem:[#allocation5 + $0x8] sm:$0xff]
    %v2051 = vld [vmem:[#allocation5 + $0x10] sm:$0xff]
    %v2052 = vld [vmem:[#allocation5 + $0x18] sm:$0xff]
    %v2053 = vld [vmem:[%s9] sm:$0x1]
    %v2054 = vld [vmem:[#allocation7] sm:$0xff]
    %v2055 = vld [vmem:[#allocation7 + $0x8] sm:$0xff]
    %v2056 = vld [vmem:[#allocation7 + $0x10] sm:$0xff]
    %v2057 = vld [vmem:[#allocation7 + $0x18] sm:$0xff]
    %v2058 = vld [vmem:[#allocation7 + $0x20] sm:$0xff]
    %v2059 = vld [vmem:[#allocation7 + $0x28] sm:$0xff]
    %v2060 = vld [vmem:[#allocation7 + $0x30] sm:$0xff]
    %v2061 = vld [vmem:[#allocation7 + $0x38] sm:$0xff]
    %v2062 = vld [vmem:[#allocation8] sm:$0xff]
    %v2063 = vld [vmem:[#allocation8 + $0x8] sm:$0xff]
    %v2064 = vld [vmem:[#allocation8 + $0x10] sm:$0xff]
    %v2065 = vld [vmem:[#allocation8 + $0x18] sm:$0xff]
    %v2066 = vld [vmem:[%s12] sm:$0x1]
    %v2068 = vlaneseq
    %v2069 = vshrl.u32 %v2068, 7
    %v2070 = vsub.s32 0, %v2069
    %v2071 = vrot.slane %v2053, %v2070
    %vm2073 = vcmask 523264
    %v2075 = vsel %vm2073, %v2037, 0
    %v2078 = vsel %vm2073, %v2040, 0
    %2080 = vmatprep.subr.mxu0 0.0
    %2081 = vmatpush1.msra.mxu0 0.0
    %2082 = vmatprep.subr.mxu0 0.0
    %2083 = vmatpush1.msra.mxu0 0.0
    %2084 = vmatprep.subr.mxu0 0.0
    %2085 = vmatpush1.msra.mxu0 0.0
    %2086 = vmatprep.subr.mxu0 0.0
    %2087 = vmatpush1.msra.mxu0 0.0
    %2088 = vmatprep.subr.mxu0 0.0
    %2089 = vmatpush1.msra.mxu0 0.0
    %2090 = vmatprep.subr.mxu0 0.0
    %2091 = vmatpush1.msra.mxu0 0.0
    %2092 = vmatprep.subr.mxu0 0.0
    %2093 = vmatpush1.msra.mxu0 0.0
    %2094 = vmatprep.subr.mxu0 0.0
    %2095 = vmatpush1.msra.mxu0 0.0
    %2096 = vmatprep.subr.mxu0 0.0
    %2097 = vmatpush1.msra.mxu0 %v2048
    %2098 = vmatprep.subr.mxu0 0.0
    %2099 = vmatpush1.msra.mxu0 %v2047
    %2100 = vmatprep.subr.mxu0 0.0
    %2101 = vmatpush1.msra.mxu0 %v2046
    %2102 = vmatprep.subr.mxu0 0.0
    %2103 = vmatpush1.msra.mxu0 %v2045
    %2104 = vmatprep.subr.mxu0 0.0
    %2105 = vmatpush1.msra.mxu0 %v2044
    %2106 = vmatprep.subr.mxu0 0.0
    %2107 = vmatpush1.msra.mxu0 %v2043
    %2108 = vmatprep.subr.mxu0 0.0
    %2109 = vmatpush1.msra.mxu0 %v2042
    %2110 = vmatprep.subr.mxu0 0.0
    %2111 = vmatpush1.msra.mxu0 %v2041
    %2112 = vmatprep.subr.mxu0 0.0
    %2113 = vmatpush2.msra.mxu0 0.0
    %2114 = vmatprep.subr.mxu0 0.0
    %2115 = vmatpush2.msra.mxu0 0.0
    %2116 = vmatprep.subr.mxu0 0.0
    %2117 = vmatpush2.msra.mxu0 0.0
    %2118 = vmatprep.subr.mxu0 0.0
    %2119 = vmatpush2.msra.mxu0 0.0
    %2120 = vmatprep.subr.mxu0 0.0
    %2121 = vmatpush2.msra.mxu0 0.0
    %2122 = vmatprep.subr.mxu0 0.0
    %2123 = vmatpush2.msra.mxu0 0.0
    %2124 = vmatprep.subr.mxu0 0.0
    %2125 = vmatpush2.msra.mxu0 0.0
    %2126 = vmatprep.subr.mxu0 0.0
    %2127 = vmatpush2.msra.mxu0 0.0
    %2128 = vmatprep.subr.mxu0 0.0
    %2129 = vmatpush2.msra.mxu0 0.0
    %2130 = vmatprep.subr.mxu0 0.0
    %2131 = vmatpush2.msra.mxu0 0.0
    %2132 = vmatprep.subr.mxu0 0.0
    %2133 = vmatpush2.msra.mxu0 0.0
    %2134 = vmatprep.subr.mxu0 0.0
    %2135 = vmatpush2.msra.mxu0 0.0
    %2136 = vmatprep.subr.mxu0 0.0
    %2137 = vmatpush2.msra.mxu0 0.0
    %2138 = vmatprep.subr.mxu0 0.0
    %2139 = vmatpush2.msra.mxu0 0.0
    %2140 = vmatprep.subr.mxu0 0.0
    %2141 = vmatpush2.msra.mxu0 0.0
    %2142 = vmatprep.subr.mxu0 0.0
    %2143 = vmatpush2.msra.mxu0 0.0
    %2144 = vmatprep.mubr.f32.mxu0 0.0
    %2145 = vmatmul.mubr.f32.gmra.mxu0 %v2075
    %v2146 = vpop.f32.mrf.mxu0
    %v2147 = vadd.f32 %v2071, %v2146
    %v2148 = vpop.f32.mrf.mxu0
    %2149 = vmatprep.mubr.f32.mxu0 0.0
    %2150 = vmatmul.mubr.f32.gmra.mxu0 %v2078
    %v2151 = vpop.f32.mrf.mxu0
    %v2152 = vadd.f32 %v2071, %v2151
    %v2153 = vpop.f32.mrf.mxu0
    %2154 = vdwg.mxu0
    %2155 = vmatprep.subr.mxu0 0.0
    %2156 = vmatpush1.msra.mxu0 0.0
    %2157 = vmatprep.subr.mxu0 0.0
    %2158 = vmatpush1.msra.mxu0 0.0
    %2159 = vmatprep.subr.mxu0 0.0
    %2160 = vmatpush1.msra.mxu0 0.0
    %2161 = vmatprep.subr.mxu0 0.0
    %2162 = vmatpush1.msra.mxu0 0.0
    %2163 = vmatprep.subr.mxu0 0.0
    %2164 = vmatpush1.msra.mxu0 0.0
    %2165 = vmatprep.subr.mxu0 0.0
    %2166 = vmatpush1.msra.mxu0 0.0
    %2167 = vmatprep.subr.mxu0 0.0
    %2168 = vmatpush1.msra.mxu0 0.0
    %2169 = vmatprep.subr.mxu0 0.0
    %2170 = vmatpush1.msra.mxu0 0.0
    %2171 = vmatprep.subr.mxu0 0.0
    %2172 = vmatpush1.msra.mxu0 0.0
    %2173 = vmatprep.subr.mxu0 0.0
    %2174 = vmatpush1.msra.mxu0 0.0
    %2175 = vmatprep.subr.mxu0 0.0
    %2176 = vmatpush1.msra.mxu0 0.0
    %2177 = vmatprep.subr.mxu0 0.0
    %2178 = vmatpush1.msra.mxu0 0.0
    %2179 = vmatprep.subr.mxu0 0.0
    %2180 = vmatpush1.msra.mxu0 %v2052
    %2181 = vmatprep.subr.mxu0 0.0
    %2182 = vmatpush1.msra.mxu0 %v2051
    %2183 = vmatprep.subr.mxu0 0.0
    %2184 = vmatpush1.msra.mxu0 %v2050
    %2185 = vmatprep.subr.mxu0 0.0
    %2186 = vmatpush1.msra.mxu0 %v2049
    %2187 = vmatprep.subr.mxu0 0.0
    %2188 = vmatpush2.msra.mxu0 0.0
    %2189 = vmatprep.subr.mxu0 0.0
    %2190 = vmatpush2.msra.mxu0 0.0
    %2191 = vmatprep.subr.mxu0 0.0
    %2192 = vmatpush2.msra.mxu0 0.0
    %2193 = vmatprep.subr.mxu0 0.0
    %2194 = vmatpush2.msra.mxu0 0.0
    %2195 = vmatprep.subr.mxu0 0.0
    %2196 = vmatpush2.msra.mxu0 0.0
    %2197 = vmatprep.subr.mxu0 0.0
    %2198 = vmatpush2.msra.mxu0 0.0
    %2199 = vmatprep.subr.mxu0 0.0
    %2200 = vmatpush2.msra.mxu0 0.0
    %2201 = vmatprep.subr.mxu0 0.0
    %2202 = vmatpush2.msra.mxu0 0.0
    %2203 = vmatprep.subr.mxu0 0.0
    %2204 = vmatpush2.msra.mxu0 0.0
    %2205 = vmatprep.subr.mxu0 0.0
    %2206 = vmatpush2.msra.mxu0 0.0
    %2207 = vmatprep.subr.mxu0 0.0
    %2208 = vmatpush2.msra.mxu0 0.0
    %2209 = vmatprep.subr.mxu0 0.0
    %2210 = vmatpush2.msra.mxu0 0.0
    %2211 = vmatprep.subr.mxu0 0.0
    %2212 = vmatpush2.msra.mxu0 0.0
    %2213 = vmatprep.subr.mxu0 0.0
    %2214 = vmatpush2.msra.mxu0 0.0
    %2215 = vmatprep.subr.mxu0 0.0
    %2216 = vmatpush2.msra.mxu0 0.0
    %2217 = vmatprep.subr.mxu0 0.0
    %2218 = vmatpush2.msra.mxu0 0.0
    %2219 = vmatprep.mubr.f32.mxu0 0.0
    %2220 = vmatmul.mubr.f32.gmra.mxu0 %v214
    %v2221 = vpop.f32.mrf.mxu0
    %v2222 = vadd.f32 0.0, %v2221
    %v2223 = vpop.f32.mrf.mxu0
    %2224 = vdwg.mxu0
    %v2225 = vadd.f32 %v2147, %v2222
    %v2226 = vxor.u32 %v2225, 2147483648
    %v2227 = vmul.f32 %v2226, 1.442695
    %v2228 = vpow.pop %v2227
    %v2229 = vadd.f32 %v2228, 1.0
    %v2230 = vrcp.pop %v2229
    %v2231 = vmul.f32 1.0, %v2230
    %v2232 = vtanh.pop %v2225
    %v2233 = vmul.f32 %v2231, 0.0
    %2235 = vrot.lane.b32.xlu0 %v2232, 64
    %v2236 = vpop.permute.xlu0 %2235
    %v2238 = vmul.f32 %v2231, %v2236
    %2240 = vrot.lane.b32.xlu0 %v2238, 32
    %v2241 = vpop.permute.xlu0 %2240
    %v2243 = vadd.f32 %v2233, %v2241
    %v2244 = vtanh.pop %v2243
    %2246 = vrot.lane.b32.xlu0 %v2244, 64
    %v2247 = vpop.permute.xlu0 %2246
    %v2249 = vmul.f32 %v2231, %v2247
    %2251 = vrot.lane.b32.xlu0 %v2249, 32
    %v2252 = vpop.permute.xlu0 %2251
    %v2253 = vsel %vm212, %v2252, 0
    %2255 = vmatprep.subr.mxu0 0.0
    %2256 = vmatpush1.msra.mxu0 0.0
    %2257 = vmatprep.subr.mxu0 0.0
    %2258 = vmatpush1.msra.mxu0 0.0
    %2259 = vmatprep.subr.mxu0 0.0
    %2260 = vmatpush1.msra.mxu0 0.0
    %2261 = vmatprep.subr.mxu0 0.0
    %2262 = vmatpush1.msra.mxu0 0.0
    %2263 = vmatprep.subr.mxu0 0.0
    %2264 = vmatpush1.msra.mxu0 0.0
    %2265 = vmatprep.subr.mxu0 0.0
    %2266 = vmatpush1.msra.mxu0 0.0
    %2267 = vmatprep.subr.mxu0 0.0
    %2268 = vmatpush1.msra.mxu0 0.0
    %2269 = vmatprep.subr.mxu0 0.0
    %2270 = vmatpush1.msra.mxu0 0.0
    %2271 = vmatprep.subr.mxu0 0.0
    %2272 = vmatpush1.msra.mxu0 0.0
    %2273 = vmatprep.subr.mxu0 0.0
    %2274 = vmatpush1.msra.mxu0 0.0
    %2275 = vmatprep.subr.mxu0 0.0
    %2276 = vmatpush1.msra.mxu0 0.0
    %2277 = vmatprep.subr.mxu0 0.0
    %2278 = vmatpush1.msra.mxu0 0.0
    %2279 = vmatprep.subr.mxu0 0.0
    %2280 = vmatpush1.msra.mxu0 %v2052
    %2281 = vmatprep.subr.mxu0 0.0
    %2282 = vmatpush1.msra.mxu0 %v2051
    %2283 = vmatprep.subr.mxu0 0.0
    %2284 = vmatpush1.msra.mxu0 %v2050
    %2285 = vmatprep.subr.mxu0 0.0
    %2286 = vmatpush1.msra.mxu0 %v2049
    %2287 = vmatprep.subr.mxu0 0.0
    %2288 = vmatpush2.msra.mxu0 0.0
    %2289 = vmatprep.subr.mxu0 0.0
    %2290 = vmatpush2.msra.mxu0 0.0
    %2291 = vmatprep.subr.mxu0 0.0
    %2292 = vmatpush2.msra.mxu0 0.0
    %2293 = vmatprep.subr.mxu0 0.0
    %2294 = vmatpush2.msra.mxu0 0.0
    %2295 = vmatprep.subr.mxu0 0.0
    %2296 = vmatpush2.msra.mxu0 0.0
    %2297 = vmatprep.subr.mxu0 0.0
    %2298 = vmatpush2.msra.mxu0 0.0
    %2299 = vmatprep.subr.mxu0 0.0
    %2300 = vmatpush2.msra.mxu0 0.0
    %2301 = vmatprep.subr.mxu0 0.0
    %2302 = vmatpush2.msra.mxu0 0.0
    %2303 = vmatprep.subr.mxu0 0.0
    %2304 = vmatpush2.msra.mxu0 0.0
    %2305 = vmatprep.subr.mxu0 0.0
    %2306 = vmatpush2.msra.mxu0 0.0
    %2307 = vmatprep.subr.mxu0 0.0
    %2308 = vmatpush2.msra.mxu0 0.0
    %2309 = vmatprep.subr.mxu0 0.0
    %2310 = vmatpush2.msra.mxu0 0.0
    %2311 = vmatprep.subr.mxu0 0.0
    %2312 = vmatpush2.msra.mxu0 0.0
    %2313 = vmatprep.subr.mxu0 0.0
    %2314 = vmatpush2.msra.mxu0 0.0
    %2315 = vmatprep.subr.mxu0 0.0
    %2316 = vmatpush2.msra.mxu0 0.0
    %2317 = vmatprep.subr.mxu0 0.0
    %2318 = vmatpush2.msra.mxu0 0.0
    %2319 = vmatprep.mubr.f32.mxu0 0.0
    %2320 = vmatmul.mubr.f32.gmra.mxu0 %v2253
    %v2321 = vpop.f32.mrf.mxu0
    %v2322 = vadd.f32 0.0, %v2321
    %v2323 = vpop.f32.mrf.mxu0
    %2324 = vdwg.mxu0
    %v2326 = vrot.slane %v2322, 6
    %v2328 = vadd.f32 %v2147, %v2326
    %v2329 = vxor.u32 %v2328, 2147483648
    %v2330 = vmul.f32 %v2329, 1.442695
    %v2331 = vpow.pop %v2330
    %v2332 = vadd.f32 %v2331, 1.0
    %v2333 = vrcp.pop %v2332
    %v2334 = vmul.f32 1.0, %v2333
    %v2335 = vtanh.pop %v2328
    %v2337 = vrot.slane %v2243, 6
    %v2339 = vmul.f32 %v2334, %v2337
    %2341 = vrot.lane.b32.xlu0 %v2335, 64
    %v2342 = vpop.permute.xlu0 %2341
    %v2344 = vmul.f32 %v2334, %v2342
    %2346 = vrot.lane.b32.xlu0 %v2344, 32
    %v2347 = vpop.permute.xlu0 %2346
    %v2349 = vadd.f32 %v2339, %v2347
    %v2350 = vtanh.pop %v2349
    %2352 = vrot.lane.b32.xlu0 %v2350, 64
    %v2353 = vpop.permute.xlu0 %2352
    %v2355 = vmul.f32 %v2334, %v2353
    %v2357 = vrot.slane %v2355, 2
    %2358 = vrot.lane.b32.xlu0 %v2357, 32
    %v2359 = vpop.permute.xlu0 %2358
    %v2360 = vsel %vm212, %v2359, 0
    %2362 = vmatprep.subr.mxu0 0.0
    %2363 = vmatpush1.msra.mxu0 0.0
    %2364 = vmatprep.subr.mxu0 0.0
    %2365 = vmatpush1.msra.mxu0 0.0
    %2366 = vmatprep.subr.mxu0 0.0
    %2367 = vmatpush1.msra.mxu0 0.0
    %2368 = vmatprep.subr.mxu0 0.0
    %2369 = vmatpush1.msra.mxu0 0.0
    %2370 = vmatprep.subr.mxu0 0.0
    %2371 = vmatpush1.msra.mxu0 0.0
    %2372 = vmatprep.subr.mxu0 0.0
    %2373 = vmatpush1.msra.mxu0 0.0
    %2374 = vmatprep.subr.mxu0 0.0
    %2375 = vmatpush1.msra.mxu0 0.0
    %2376 = vmatprep.subr.mxu0 0.0
    %2377 = vmatpush1.msra.mxu0 0.0
    %2378 = vmatprep.subr.mxu0 0.0
    %2379 = vmatpush1.msra.mxu0 0.0
    %2380 = vmatprep.subr.mxu0 0.0
    %2381 = vmatpush1.msra.mxu0 0.0
    %2382 = vmatprep.subr.mxu0 0.0
    %2383 = vmatpush1.msra.mxu0 0.0
    %2384 = vmatprep.subr.mxu0 0.0
    %2385 = vmatpush1.msra.mxu0 0.0
    %2386 = vmatprep.subr.mxu0 0.0
    %2387 = vmatpush1.msra.mxu0 %v2052
    %2388 = vmatprep.subr.mxu0 0.0
    %2389 = vmatpush1.msra.mxu0 %v2051
    %2390 = vmatprep.subr.mxu0 0.0
    %2391 = vmatpush1.msra.mxu0 %v2050
    %2392 = vmatprep.subr.mxu0 0.0
    %2393 = vmatpush1.msra.mxu0 %v2049
    %2394 = vmatprep.subr.mxu0 0.0
    %2395 = vmatpush2.msra.mxu0 0.0
    %2396 = vmatprep.subr.mxu0 0.0
    %2397 = vmatpush2.msra.mxu0 0.0
    %2398 = vmatprep.subr.mxu0 0.0
    %2399 = vmatpush2.msra.mxu0 0.0
    %2400 = vmatprep.subr.mxu0 0.0
    %2401 = vmatpush2.msra.mxu0 0.0
    %2402 = vmatprep.subr.mxu0 0.0
    %2403 = vmatpush2.msra.mxu0 0.0
    %2404 = vmatprep.subr.mxu0 0.0
    %2405 = vmatpush2.msra.mxu0 0.0
    %2406 = vmatprep.subr.mxu0 0.0
    %2407 = vmatpush2.msra.mxu0 0.0
    %2408 = vmatprep.subr.mxu0 0.0
    %2409 = vmatpush2.msra.mxu0 0.0
    %2410 = vmatprep.subr.mxu0 0.0
    %2411 = vmatpush2.msra.mxu0 0.0
    %2412 = vmatprep.subr.mxu0 0.0
    %2413 = vmatpush2.msra.mxu0 0.0
    %2414 = vmatprep.subr.mxu0 0.0
    %2415 = vmatpush2.msra.mxu0 0.0
    %2416 = vmatprep.subr.mxu0 0.0
    %2417 = vmatpush2.msra.mxu0 0.0
    %2418 = vmatprep.subr.mxu0 0.0
    %2419 = vmatpush2.msra.mxu0 0.0
    %2420 = vmatprep.subr.mxu0 0.0
    %2421 = vmatpush2.msra.mxu0 0.0
    %2422 = vmatprep.subr.mxu0 0.0
    %2423 = vmatpush2.msra.mxu0 0.0
    %2424 = vmatprep.subr.mxu0 0.0
    %2425 = vmatpush2.msra.mxu0 0.0
    %2426 = vmatprep.mubr.f32.mxu0 0.0
    %2427 = vmatmul.mubr.f32.gmra.mxu0 %v2360
    %v2428 = vpop.f32.mrf.mxu0
    %v2429 = vadd.f32 0.0, %v2428
    %v2430 = vpop.f32.mrf.mxu0
    %2431 = vdwg.mxu0
    %v2433 = vrot.slane %v2429, 4
    %v2435 = vadd.f32 %v2147, %v2433
    %v2436 = vxor.u32 %v2435, 2147483648
    %v2437 = vmul.f32 %v2436, 1.442695
    %v2438 = vpow.pop %v2437
    %v2439 = vadd.f32 %v2438, 1.0
    %v2440 = vrcp.pop %v2439
    %v2441 = vmul.f32 1.0, %v2440
    %v2442 = vtanh.pop %v2435
    %v2444 = vrot.slane %v2349, 6
    %v2446 = vmul.f32 %v2441, %v2444
    %2448 = vrot.lane.b32.xlu0 %v2442, 64
    %v2449 = vpop.permute.xlu0 %2448
    %v2451 = vmul.f32 %v2441, %v2449
    %2453 = vrot.lane.b32.xlu0 %v2451, 32
    %v2454 = vpop.permute.xlu0 %2453
    %v2456 = vadd.f32 %v2446, %v2454
    %v2457 = vtanh.pop %v2456
    %2459 = vrot.lane.b32.xlu0 %v2457, 64
    %v2460 = vpop.permute.xlu0 %2459
    %v2462 = vmul.f32 %v2441, %v2460
    %v2464 = vrot.slane %v2462, 4
    %2465 = vrot.lane.b32.xlu0 %v2464, 32
    %v2466 = vpop.permute.xlu0 %2465
    %v2467 = vsel %vm212, %v2466, 0
    %2469 = vmatprep.subr.mxu0 0.0
    %2470 = vmatpush1.msra.mxu0 0.0
    %2471 = vmatprep.subr.mxu0 0.0
    %2472 = vmatpush1.msra.mxu0 0.0
    %2473 = vmatprep.subr.mxu0 0.0
    %2474 = vmatpush1.msra.mxu0 0.0
    %2475 = vmatprep.subr.mxu0 0.0
    %2476 = vmatpush1.msra.mxu0 0.0
    %2477 = vmatprep.subr.mxu0 0.0
    %2478 = vmatpush1.msra.mxu0 0.0
    %2479 = vmatprep.subr.mxu0 0.0
    %2480 = vmatpush1.msra.mxu0 0.0
    %2481 = vmatprep.subr.mxu0 0.0
    %2482 = vmatpush1.msra.mxu0 0.0
    %2483 = vmatprep.subr.mxu0 0.0
    %2484 = vmatpush1.msra.mxu0 0.0
    %2485 = vmatprep.subr.mxu0 0.0
    %2486 = vmatpush1.msra.mxu0 0.0
    %2487 = vmatprep.subr.mxu0 0.0
    %2488 = vmatpush1.msra.mxu0 0.0
    %2489 = vmatprep.subr.mxu0 0.0
    %2490 = vmatpush1.msra.mxu0 0.0
    %2491 = vmatprep.subr.mxu0 0.0
    %2492 = vmatpush1.msra.mxu0 0.0
    %2493 = vmatprep.subr.mxu0 0.0
    %2494 = vmatpush1.msra.mxu0 %v2052
    %2495 = vmatprep.subr.mxu0 0.0
    %2496 = vmatpush1.msra.mxu0 %v2051
    %2497 = vmatprep.subr.mxu0 0.0
    %2498 = vmatpush1.msra.mxu0 %v2050
    %2499 = vmatprep.subr.mxu0 0.0
    %2500 = vmatpush1.msra.mxu0 %v2049
    %2501 = vmatprep.subr.mxu0 0.0
    %2502 = vmatpush2.msra.mxu0 0.0
    %2503 = vmatprep.subr.mxu0 0.0
    %2504 = vmatpush2.msra.mxu0 0.0
    %2505 = vmatprep.subr.mxu0 0.0
    %2506 = vmatpush2.msra.mxu0 0.0
    %2507 = vmatprep.subr.mxu0 0.0
    %2508 = vmatpush2.msra.mxu0 0.0
    %2509 = vmatprep.subr.mxu0 0.0
    %2510 = vmatpush2.msra.mxu0 0.0
    %2511 = vmatprep.subr.mxu0 0.0
    %2512 = vmatpush2.msra.mxu0 0.0
    %2513 = vmatprep.subr.mxu0 0.0
    %2514 = vmatpush2.msra.mxu0 0.0
    %2515 = vmatprep.subr.mxu0 0.0
    %2516 = vmatpush2.msra.mxu0 0.0
    %2517 = vmatprep.subr.mxu0 0.0
    %2518 = vmatpush2.msra.mxu0 0.0
    %2519 = vmatprep.subr.mxu0 0.0
    %2520 = vmatpush2.msra.mxu0 0.0
    %2521 = vmatprep.subr.mxu0 0.0
    %2522 = vmatpush2.msra.mxu0 0.0
    %2523 = vmatprep.subr.mxu0 0.0
    %2524 = vmatpush2.msra.mxu0 0.0
    %2525 = vmatprep.subr.mxu0 0.0
    %2526 = vmatpush2.msra.mxu0 0.0
    %2527 = vmatprep.subr.mxu0 0.0
    %2528 = vmatpush2.msra.mxu0 0.0
    %2529 = vmatprep.subr.mxu0 0.0
    %2530 = vmatpush2.msra.mxu0 0.0
    %2531 = vmatprep.subr.mxu0 0.0
    %2532 = vmatpush2.msra.mxu0 0.0
    %2533 = vmatprep.mubr.f32.mxu0 0.0
    %2534 = vmatmul.mubr.f32.gmra.mxu0 %v2467
    %v2535 = vpop.f32.mrf.mxu0
    %v2536 = vadd.f32 0.0, %v2535
    %v2537 = vpop.f32.mrf.mxu0
    %2538 = vdwg.mxu0
    %v2540 = vrot.slane %v2536, 2
    %v2542 = vadd.f32 %v2147, %v2540
    %v2543 = vxor.u32 %v2542, 2147483648
    %v2544 = vmul.f32 %v2543, 1.442695
    %v2545 = vpow.pop %v2544
    %v2546 = vadd.f32 %v2545, 1.0
    %v2547 = vrcp.pop %v2546
    %v2548 = vmul.f32 1.0, %v2547
    %v2549 = vtanh.pop %v2542
    %v2551 = vrot.slane %v2456, 6
    %v2553 = vmul.f32 %v2548, %v2551
    %2555 = vrot.lane.b32.xlu0 %v2549, 64
    %v2556 = vpop.permute.xlu0 %2555
    %v2558 = vmul.f32 %v2548, %v2556
    %2560 = vrot.lane.b32.xlu0 %v2558, 32
    %v2561 = vpop.permute.xlu0 %2560
    %v2563 = vadd.f32 %v2553, %v2561
    %v2564 = vtanh.pop %v2563
    %2566 = vrot.lane.b32.xlu0 %v2564, 64
    %v2567 = vpop.permute.xlu0 %2566
    %v2569 = vmul.f32 %v2548, %v2567
    %v2571 = vrot.slane %v2569, 6
    %2572 = vrot.lane.b32.xlu0 %v2571, 32
    %v2573 = vpop.permute.xlu0 %2572
    %v2574 = vsel %vm212, %v2573, 0
    %2576 = vmatprep.subr.mxu0 0.0
    %2577 = vmatpush1.msra.mxu0 0.0
    %2578 = vmatprep.subr.mxu0 0.0
    %2579 = vmatpush1.msra.mxu0 0.0
    %2580 = vmatprep.subr.mxu0 0.0
    %2581 = vmatpush1.msra.mxu0 0.0
    %2582 = vmatprep.subr.mxu0 0.0
    %2583 = vmatpush1.msra.mxu0 0.0
    %2584 = vmatprep.subr.mxu0 0.0
    %2585 = vmatpush1.msra.mxu0 0.0
    %2586 = vmatprep.subr.mxu0 0.0
    %2587 = vmatpush1.msra.mxu0 0.0
    %2588 = vmatprep.subr.mxu0 0.0
    %2589 = vmatpush1.msra.mxu0 0.0
    %2590 = vmatprep.subr.mxu0 0.0
    %2591 = vmatpush1.msra.mxu0 0.0
    %2592 = vmatprep.subr.mxu0 0.0
    %2593 = vmatpush1.msra.mxu0 0.0
    %2594 = vmatprep.subr.mxu0 0.0
    %2595 = vmatpush1.msra.mxu0 0.0
    %2596 = vmatprep.subr.mxu0 0.0
    %2597 = vmatpush1.msra.mxu0 0.0
    %2598 = vmatprep.subr.mxu0 0.0
    %2599 = vmatpush1.msra.mxu0 0.0
    %2600 = vmatprep.subr.mxu0 0.0
    %2601 = vmatpush1.msra.mxu0 %v2052
    %2602 = vmatprep.subr.mxu0 0.0
    %2603 = vmatpush1.msra.mxu0 %v2051
    %2604 = vmatprep.subr.mxu0 0.0
    %2605 = vmatpush1.msra.mxu0 %v2050
    %2606 = vmatprep.subr.mxu0 0.0
    %2607 = vmatpush1.msra.mxu0 %v2049
    %2608 = vmatprep.subr.mxu0 0.0
    %2609 = vmatpush2.msra.mxu0 0.0
    %2610 = vmatprep.subr.mxu0 0.0
    %2611 = vmatpush2.msra.mxu0 0.0
    %2612 = vmatprep.subr.mxu0 0.0
    %2613 = vmatpush2.msra.mxu0 0.0
    %2614 = vmatprep.subr.mxu0 0.0
    %2615 = vmatpush2.msra.mxu0 0.0
    %2616 = vmatprep.subr.mxu0 0.0
    %2617 = vmatpush2.msra.mxu0 0.0
    %2618 = vmatprep.subr.mxu0 0.0
    %2619 = vmatpush2.msra.mxu0 0.0
    %2620 = vmatprep.subr.mxu0 0.0
    %2621 = vmatpush2.msra.mxu0 0.0
    %2622 = vmatprep.subr.mxu0 0.0
    %2623 = vmatpush2.msra.mxu0 0.0
    %2624 = vmatprep.subr.mxu0 0.0
    %2625 = vmatpush2.msra.mxu0 0.0
    %2626 = vmatprep.subr.mxu0 0.0
    %2627 = vmatpush2.msra.mxu0 0.0
    %2628 = vmatprep.subr.mxu0 0.0
    %2629 = vmatpush2.msra.mxu0 0.0
    %2630 = vmatprep.subr.mxu0 0.0
    %2631 = vmatpush2.msra.mxu0 0.0
    %2632 = vmatprep.subr.mxu0 0.0
    %2633 = vmatpush2.msra.mxu0 0.0
    %2634 = vmatprep.subr.mxu0 0.0
    %2635 = vmatpush2.msra.mxu0 0.0
    %2636 = vmatprep.subr.mxu0 0.0
    %2637 = vmatpush2.msra.mxu0 0.0
    %2638 = vmatprep.subr.mxu0 0.0
    %2639 = vmatpush2.msra.mxu0 0.0
    %2640 = vmatprep.mubr.f32.mxu0 0.0
    %2641 = vmatmul.mubr.f32.gmra.mxu0 %v2574
    %v2642 = vpop.f32.mrf.mxu0
    %v2643 = vadd.f32 0.0, %v2642
    %v2644 = vpop.f32.mrf.mxu0
    %2645 = vdwg.mxu0
    %v2646 = vadd.f32 %v2152, %v2643
    %v2647 = vxor.u32 %v2646, 2147483648
    %v2648 = vmul.f32 %v2647, 1.442695
    %v2649 = vpow.pop %v2648
    %v2650 = vadd.f32 %v2649, 1.0
    %v2651 = vrcp.pop %v2650
    %v2652 = vmul.f32 1.0, %v2651
    %v2653 = vtanh.pop %v2646
    %v2655 = vrot.slane %v2563, 6
    %v2657 = vmul.f32 %v2652, %v2655
    %2659 = vrot.lane.b32.xlu0 %v2653, 64
    %v2660 = vpop.permute.xlu0 %2659
    %v2662 = vmul.f32 %v2652, %v2660
    %2664 = vrot.lane.b32.xlu0 %v2662, 32
    %v2665 = vpop.permute.xlu0 %2664
    %v2667 = vadd.f32 %v2657, %v2665
    %v2668 = vtanh.pop %v2667
    %2670 = vrot.lane.b32.xlu0 %v2668, 64
    %v2671 = vpop.permute.xlu0 %2670
    %v2673 = vmul.f32 %v2652, %v2671
    %2675 = vrot.lane.b32.xlu0 %v2673, 32
    %v2676 = vpop.permute.xlu0 %2675
    %v2677 = vsel %vm212, %v2676, 0
    %2679 = vmatprep.subr.mxu0 0.0
    %2680 = vmatpush1.msra.mxu0 0.0
    %2681 = vmatprep.subr.mxu0 0.0
    %2682 = vmatpush1.msra.mxu0 0.0
    %2683 = vmatprep.subr.mxu0 0.0
    %2684 = vmatpush1.msra.mxu0 0.0
    %2685 = vmatprep.subr.mxu0 0.0
    %2686 = vmatpush1.msra.mxu0 0.0
    %2687 = vmatprep.subr.mxu0 0.0
    %2688 = vmatpush1.msra.mxu0 0.0
    %2689 = vmatprep.subr.mxu0 0.0
    %2690 = vmatpush1.msra.mxu0 0.0
    %2691 = vmatprep.subr.mxu0 0.0
    %2692 = vmatpush1.msra.mxu0 0.0
    %2693 = vmatprep.subr.mxu0 0.0
    %2694 = vmatpush1.msra.mxu0 0.0
    %2695 = vmatprep.subr.mxu0 0.0
    %2696 = vmatpush1.msra.mxu0 0.0
    %2697 = vmatprep.subr.mxu0 0.0
    %2698 = vmatpush1.msra.mxu0 0.0
    %2699 = vmatprep.subr.mxu0 0.0
    %2700 = vmatpush1.msra.mxu0 0.0
    %2701 = vmatprep.subr.mxu0 0.0
    %2702 = vmatpush1.msra.mxu0 0.0
    %2703 = vmatprep.subr.mxu0 0.0
    %2704 = vmatpush1.msra.mxu0 %v2052
    %2705 = vmatprep.subr.mxu0 0.0
    %2706 = vmatpush1.msra.mxu0 %v2051
    %2707 = vmatprep.subr.mxu0 0.0
    %2708 = vmatpush1.msra.mxu0 %v2050
    %2709 = vmatprep.subr.mxu0 0.0
    %2710 = vmatpush1.msra.mxu0 %v2049
    %2711 = vmatprep.subr.mxu0 0.0
    %2712 = vmatpush2.msra.mxu0 0.0
    %2713 = vmatprep.subr.mxu0 0.0
    %2714 = vmatpush2.msra.mxu0 0.0
    %2715 = vmatprep.subr.mxu0 0.0
    %2716 = vmatpush2.msra.mxu0 0.0
    %2717 = vmatprep.subr.mxu0 0.0
    %2718 = vmatpush2.msra.mxu0 0.0
    %2719 = vmatprep.subr.mxu0 0.0
    %2720 = vmatpush2.msra.mxu0 0.0
    %2721 = vmatprep.subr.mxu0 0.0
    %2722 = vmatpush2.msra.mxu0 0.0
    %2723 = vmatprep.subr.mxu0 0.0
    %2724 = vmatpush2.msra.mxu0 0.0
    %2725 = vmatprep.subr.mxu0 0.0
    %2726 = vmatpush2.msra.mxu0 0.0
    %2727 = vmatprep.subr.mxu0 0.0
    %2728 = vmatpush2.msra.mxu0 0.0
    %2729 = vmatprep.subr.mxu0 0.0
    %2730 = vmatpush2.msra.mxu0 0.0
    %2731 = vmatprep.subr.mxu0 0.0
    %2732 = vmatpush2.msra.mxu0 0.0
    %2733 = vmatprep.subr.mxu0 0.0
    %2734 = vmatpush2.msra.mxu0 0.0
    %2735 = vmatprep.subr.mxu0 0.0
    %2736 = vmatpush2.msra.mxu0 0.0
    %2737 = vmatprep.subr.mxu0 0.0
    %2738 = vmatpush2.msra.mxu0 0.0
    %2739 = vmatprep.subr.mxu0 0.0
    %2740 = vmatpush2.msra.mxu0 0.0
    %2741 = vmatprep.subr.mxu0 0.0
    %2742 = vmatpush2.msra.mxu0 0.0
    %2743 = vmatprep.mubr.f32.mxu0 0.0
    %2744 = vmatmul.mubr.f32.gmra.mxu0 %v2677
    %v2745 = vpop.f32.mrf.mxu0
    %v2746 = vadd.f32 0.0, %v2745
    %v2747 = vpop.f32.mrf.mxu0
    %2748 = vdwg.mxu0
    %v2750 = vrot.slane %v2746, 6
    %v2752 = vadd.f32 %v2152, %v2750
    %v2753 = vxor.u32 %v2752, 2147483648
    %v2754 = vmul.f32 %v2753, 1.442695
    %v2755 = vpow.pop %v2754
    %v2756 = vadd.f32 %v2755, 1.0
    %v2757 = vrcp.pop %v2756
    %v2758 = vmul.f32 1.0, %v2757
    %v2759 = vtanh.pop %v2752
    %v2761 = vrot.slane %v2667, 6
    %v2763 = vmul.f32 %v2758, %v2761
    %2765 = vrot.lane.b32.xlu0 %v2759, 64
    %v2766 = vpop.permute.xlu0 %2765
    %v2768 = vmul.f32 %v2758, %v2766
    %2770 = vrot.lane.b32.xlu0 %v2768, 32
    %v2771 = vpop.permute.xlu0 %2770
    %v2773 = vadd.f32 %v2763, %v2771
    %v2774 = vtanh.pop %v2773
    %2776 = vrot.lane.b32.xlu0 %v2774, 64
    %v2777 = vpop.permute.xlu0 %2776
    %v2779 = vmul.f32 %v2758, %v2777
    %v2781 = vrot.slane %v2779, 2
    %2782 = vrot.lane.b32.xlu0 %v2781, 32
    %v2783 = vpop.permute.xlu0 %2782
    %v2784 = vsel %vm212, %v2783, 0
    %2786 = vmatprep.subr.mxu0 0.0
    %2787 = vmatpush1.msra.mxu0 0.0
    %2788 = vmatprep.subr.mxu0 0.0
    %2789 = vmatpush1.msra.mxu0 0.0
    %2790 = vmatprep.subr.mxu0 0.0
    %2791 = vmatpush1.msra.mxu0 0.0
    %2792 = vmatprep.subr.mxu0 0.0
    %2793 = vmatpush1.msra.mxu0 0.0
    %2794 = vmatprep.subr.mxu0 0.0
    %2795 = vmatpush1.msra.mxu0 0.0
    %2796 = vmatprep.subr.mxu0 0.0
    %2797 = vmatpush1.msra.mxu0 0.0
    %2798 = vmatprep.subr.mxu0 0.0
    %2799 = vmatpush1.msra.mxu0 0.0
    %2800 = vmatprep.subr.mxu0 0.0
    %2801 = vmatpush1.msra.mxu0 0.0
    %2802 = vmatprep.subr.mxu0 0.0
    %2803 = vmatpush1.msra.mxu0 0.0
    %2804 = vmatprep.subr.mxu0 0.0
    %2805 = vmatpush1.msra.mxu0 0.0
    %2806 = vmatprep.subr.mxu0 0.0
    %2807 = vmatpush1.msra.mxu0 0.0
    %2808 = vmatprep.subr.mxu0 0.0
    %2809 = vmatpush1.msra.mxu0 0.0
    %2810 = vmatprep.subr.mxu0 0.0
    %2811 = vmatpush1.msra.mxu0 %v2052
    %2812 = vmatprep.subr.mxu0 0.0
    %2813 = vmatpush1.msra.mxu0 %v2051
    %2814 = vmatprep.subr.mxu0 0.0
    %2815 = vmatpush1.msra.mxu0 %v2050
    %2816 = vmatprep.subr.mxu0 0.0
    %2817 = vmatpush1.msra.mxu0 %v2049
    %2818 = vmatprep.subr.mxu0 0.0
    %2819 = vmatpush2.msra.mxu0 0.0
    %2820 = vmatprep.subr.mxu0 0.0
    %2821 = vmatpush2.msra.mxu0 0.0
    %2822 = vmatprep.subr.mxu0 0.0
    %2823 = vmatpush2.msra.mxu0 0.0
    %2824 = vmatprep.subr.mxu0 0.0
    %2825 = vmatpush2.msra.mxu0 0.0
    %2826 = vmatprep.subr.mxu0 0.0
    %2827 = vmatpush2.msra.mxu0 0.0
    %2828 = vmatprep.subr.mxu0 0.0
    %2829 = vmatpush2.msra.mxu0 0.0
    %2830 = vmatprep.subr.mxu0 0.0
    %2831 = vmatpush2.msra.mxu0 0.0
    %2832 = vmatprep.subr.mxu0 0.0
    %2833 = vmatpush2.msra.mxu0 0.0
    %2834 = vmatprep.subr.mxu0 0.0
    %2835 = vmatpush2.msra.mxu0 0.0
    %2836 = vmatprep.subr.mxu0 0.0
    %2837 = vmatpush2.msra.mxu0 0.0
    %2838 = vmatprep.subr.mxu0 0.0
    %2839 = vmatpush2.msra.mxu0 0.0
    %2840 = vmatprep.subr.mxu0 0.0
    %2841 = vmatpush2.msra.mxu0 0.0
    %2842 = vmatprep.subr.mxu0 0.0
    %2843 = vmatpush2.msra.mxu0 0.0
    %2844 = vmatprep.subr.mxu0 0.0
    %2845 = vmatpush2.msra.mxu0 0.0
    %2846 = vmatprep.subr.mxu0 0.0
    %2847 = vmatpush2.msra.mxu0 0.0
    %2848 = vmatprep.subr.mxu0 0.0
    %2849 = vmatpush2.msra.mxu0 0.0
    %2850 = vmatprep.mubr.f32.mxu0 0.0
    %2851 = vmatmul.mubr.f32.gmra.mxu0 %v2784
    %v2852 = vpop.f32.mrf.mxu0
    %v2853 = vadd.f32 0.0, %v2852
    %v2854 = vpop.f32.mrf.mxu0
    %2855 = vdwg.mxu0
    %v2857 = vrot.slane %v2853, 4
    %v2859 = vadd.f32 %v2152, %v2857
    %v2860 = vxor.u32 %v2859, 2147483648
    %v2861 = vmul.f32 %v2860, 1.442695
    %v2862 = vpow.pop %v2861
    %v2863 = vadd.f32 %v2862, 1.0
    %v2864 = vrcp.pop %v2863
    %v2865 = vmul.f32 1.0, %v2864
    %v2866 = vtanh.pop %v2859
    %v2868 = vrot.slane %v2773, 6
    %v2870 = vmul.f32 %v2865, %v2868
    %2872 = vrot.lane.b32.xlu0 %v2866, 64
    %v2873 = vpop.permute.xlu0 %2872
    %v2875 = vmul.f32 %v2865, %v2873
    %2877 = vrot.lane.b32.xlu0 %v2875, 32
    %v2878 = vpop.permute.xlu0 %2877
    %v2880 = vadd.f32 %v2870, %v2878
    %v2881 = vtanh.pop %v2880
    %2883 = vrot.lane.b32.xlu0 %v2881, 64
    %v2884 = vpop.permute.xlu0 %2883
    %v2886 = vmul.f32 %v2865, %v2884
    %v2888 = vrot.slane %v2886, 4
    %2889 = vrot.lane.b32.xlu0 %v2888, 32
    %v2890 = vpop.permute.xlu0 %2889
    %v2891 = vsel %vm212, %v2890, 0
    %2893 = vmatprep.subr.mxu0 0.0
    %2894 = vmatpush1.msra.mxu0 0.0
    %2895 = vmatprep.subr.mxu0 0.0
    %2896 = vmatpush1.msra.mxu0 0.0
    %2897 = vmatprep.subr.mxu0 0.0
    %2898 = vmatpush1.msra.mxu0 0.0
    %2899 = vmatprep.subr.mxu0 0.0
    %2900 = vmatpush1.msra.mxu0 0.0
    %2901 = vmatprep.subr.mxu0 0.0
    %2902 = vmatpush1.msra.mxu0 0.0
    %2903 = vmatprep.subr.mxu0 0.0
    %2904 = vmatpush1.msra.mxu0 0.0
    %2905 = vmatprep.subr.mxu0 0.0
    %2906 = vmatpush1.msra.mxu0 0.0
    %2907 = vmatprep.subr.mxu0 0.0
    %2908 = vmatpush1.msra.mxu0 0.0
    %2909 = vmatprep.subr.mxu0 0.0
    %2910 = vmatpush1.msra.mxu0 0.0
    %2911 = vmatprep.subr.mxu0 0.0
    %2912 = vmatpush1.msra.mxu0 0.0
    %2913 = vmatprep.subr.mxu0 0.0
    %2914 = vmatpush1.msra.mxu0 0.0
    %2915 = vmatprep.subr.mxu0 0.0
    %2916 = vmatpush1.msra.mxu0 0.0
    %2917 = vmatprep.subr.mxu0 0.0
    %2918 = vmatpush1.msra.mxu0 %v2052
    %2919 = vmatprep.subr.mxu0 0.0
    %2920 = vmatpush1.msra.mxu0 %v2051
    %2921 = vmatprep.subr.mxu0 0.0
    %2922 = vmatpush1.msra.mxu0 %v2050
    %2923 = vmatprep.subr.mxu0 0.0
    %2924 = vmatpush1.msra.mxu0 %v2049
    %2925 = vmatprep.subr.mxu0 0.0
    %2926 = vmatpush2.msra.mxu0 0.0
    %2927 = vmatprep.subr.mxu0 0.0
    %2928 = vmatpush2.msra.mxu0 0.0
    %2929 = vmatprep.subr.mxu0 0.0
    %2930 = vmatpush2.msra.mxu0 0.0
    %2931 = vmatprep.subr.mxu0 0.0
    %2932 = vmatpush2.msra.mxu0 0.0
    %2933 = vmatprep.subr.mxu0 0.0
    %2934 = vmatpush2.msra.mxu0 0.0
    %2935 = vmatprep.subr.mxu0 0.0
    %2936 = vmatpush2.msra.mxu0 0.0
    %2937 = vmatprep.subr.mxu0 0.0
    %2938 = vmatpush2.msra.mxu0 0.0
    %2939 = vmatprep.subr.mxu0 0.0
    %2940 = vmatpush2.msra.mxu0 0.0
    %2941 = vmatprep.subr.mxu0 0.0
    %2942 = vmatpush2.msra.mxu0 0.0
    %2943 = vmatprep.subr.mxu0 0.0
    %2944 = vmatpush2.msra.mxu0 0.0
    %2945 = vmatprep.subr.mxu0 0.0
    %2946 = vmatpush2.msra.mxu0 0.0
    %2947 = vmatprep.subr.mxu0 0.0
    %2948 = vmatpush2.msra.mxu0 0.0
    %2949 = vmatprep.subr.mxu0 0.0
    %2950 = vmatpush2.msra.mxu0 0.0
    %2951 = vmatprep.subr.mxu0 0.0
    %2952 = vmatpush2.msra.mxu0 0.0
    %2953 = vmatprep.subr.mxu0 0.0
    %2954 = vmatpush2.msra.mxu0 0.0
    %2955 = vmatprep.subr.mxu0 0.0
    %2956 = vmatpush2.msra.mxu0 0.0
    %2957 = vmatprep.mubr.f32.mxu0 0.0
    %2958 = vmatmul.mubr.f32.gmra.mxu0 %v2891
    %v2959 = vpop.f32.mrf.mxu0
    %v2960 = vadd.f32 0.0, %v2959
    %v2961 = vpop.f32.mrf.mxu0
    %2962 = vdwg.mxu0
    %v2964 = vrot.slane %v2960, 2
    %v2966 = vadd.f32 %v2152, %v2964
    %v2967 = vxor.u32 %v2966, 2147483648
    %v2968 = vmul.f32 %v2967, 1.442695
    %v2969 = vpow.pop %v2968
    %v2970 = vadd.f32 %v2969, 1.0
    %v2971 = vrcp.pop %v2970
    %v2972 = vmul.f32 1.0, %v2971
    %v2973 = vtanh.pop %v2966
    %v2975 = vrot.slane %v2880, 6
    %v2977 = vmul.f32 %v2972, %v2975
    %2979 = vrot.lane.b32.xlu0 %v2973, 64
    %v2980 = vpop.permute.xlu0 %2979
    %v2982 = vmul.f32 %v2972, %v2980
    %2984 = vrot.lane.b32.xlu0 %v2982, 32
    %v2985 = vpop.permute.xlu0 %2984
    %v2987 = vadd.f32 %v2977, %v2985
    %v2988 = vtanh.pop %v2987
    %2990 = vrot.lane.b32.xlu0 %v2988, 64
    %v2991 = vpop.permute.xlu0 %2990
    %v2993 = vmul.f32 %v2972, %v2991
    %v2995 = vlaneseq
    %v2996 = vshrl.u32 %v2995, 7
    %v2997 = vsub.s32 0, %v2996
    %v2998 = vrot.slane %v2066, %v2997
    %3000 = vmatprep.subr.mxu0 0.0
    %3001 = vmatpush1.msra.mxu0 0.0
    %3002 = vmatprep.subr.mxu0 0.0
    %3003 = vmatpush1.msra.mxu0 0.0
    %3004 = vmatprep.subr.mxu0 0.0
    %3005 = vmatpush1.msra.mxu0 0.0
    %3006 = vmatprep.subr.mxu0 0.0
    %3007 = vmatpush1.msra.mxu0 0.0
    %3008 = vmatprep.subr.mxu0 0.0
    %3009 = vmatpush1.msra.mxu0 0.0
    %3010 = vmatprep.subr.mxu0 0.0
    %3011 = vmatpush1.msra.mxu0 0.0
    %3012 = vmatprep.subr.mxu0 0.0
    %3013 = vmatpush1.msra.mxu0 0.0
    %3014 = vmatprep.subr.mxu0 0.0
    %3015 = vmatpush1.msra.mxu0 0.0
    %3016 = vmatprep.subr.mxu0 0.0
    %3017 = vmatpush1.msra.mxu0 %v2061
    %3018 = vmatprep.subr.mxu0 0.0
    %3019 = vmatpush1.msra.mxu0 %v2060
    %3020 = vmatprep.subr.mxu0 0.0
    %3021 = vmatpush1.msra.mxu0 %v2059
    %3022 = vmatprep.subr.mxu0 0.0
    %3023 = vmatpush1.msra.mxu0 %v2058
    %3024 = vmatprep.subr.mxu0 0.0
    %3025 = vmatpush1.msra.mxu0 %v2057
    %3026 = vmatprep.subr.mxu0 0.0
    %3027 = vmatpush1.msra.mxu0 %v2056
    %3028 = vmatprep.subr.mxu0 0.0
    %3029 = vmatpush1.msra.mxu0 %v2055
    %3030 = vmatprep.subr.mxu0 0.0
    %3031 = vmatpush1.msra.mxu0 %v2054
    %3032 = vmatprep.subr.mxu0 0.0
    %3033 = vmatpush2.msra.mxu0 0.0
    %3034 = vmatprep.subr.mxu0 0.0
    %3035 = vmatpush2.msra.mxu0 0.0
    %3036 = vmatprep.subr.mxu0 0.0
    %3037 = vmatpush2.msra.mxu0 0.0
    %3038 = vmatprep.subr.mxu0 0.0
    %3039 = vmatpush2.msra.mxu0 0.0
    %3040 = vmatprep.subr.mxu0 0.0
    %3041 = vmatpush2.msra.mxu0 0.0
    %3042 = vmatprep.subr.mxu0 0.0
    %3043 = vmatpush2.msra.mxu0 0.0
    %3044 = vmatprep.subr.mxu0 0.0
    %3045 = vmatpush2.msra.mxu0 0.0
    %3046 = vmatprep.subr.mxu0 0.0
    %3047 = vmatpush2.msra.mxu0 0.0
    %3048 = vmatprep.subr.mxu0 0.0
    %3049 = vmatpush2.msra.mxu0 0.0
    %3050 = vmatprep.subr.mxu0 0.0
    %3051 = vmatpush2.msra.mxu0 0.0
    %3052 = vmatprep.subr.mxu0 0.0
    %3053 = vmatpush2.msra.mxu0 0.0
    %3054 = vmatprep.subr.mxu0 0.0
    %3055 = vmatpush2.msra.mxu0 0.0
    %3056 = vmatprep.subr.mxu0 0.0
    %3057 = vmatpush2.msra.mxu0 0.0
    %3058 = vmatprep.subr.mxu0 0.0
    %3059 = vmatpush2.msra.mxu0 0.0
    %3060 = vmatprep.subr.mxu0 0.0
    %3061 = vmatpush2.msra.mxu0 0.0
    %3062 = vmatprep.subr.mxu0 0.0
    %3063 = vmatpush2.msra.mxu0 0.0
    %3064 = vmatprep.mubr.f32.mxu0 0.0
    %3065 = vmatmul.mubr.f32.gmra.mxu0 %v2075
    %v3066 = vpop.f32.mrf.mxu0
    %v3067 = vpop.f32.mrf.mxu0
    %3068 = vmatprep.mubr.f32.mxu0 0.0
    %3069 = vmatmul.mubr.f32.gmra.mxu0 %v2078
    %v3070 = vpop.f32.mrf.mxu0
    %v3071 = vadd.f32 %v2998, %v3070
    %v3072 = vpop.f32.mrf.mxu0
    %3073 = vdwg.mxu0
    %3074 = vmatprep.subr.mxu0 0.0
    %3075 = vmatpush1.msra.mxu0 0.0
    %3076 = vmatprep.subr.mxu0 0.0
    %3077 = vmatpush1.msra.mxu0 0.0
    %3078 = vmatprep.subr.mxu0 0.0
    %3079 = vmatpush1.msra.mxu0 0.0
    %3080 = vmatprep.subr.mxu0 0.0
    %3081 = vmatpush1.msra.mxu0 0.0
    %3082 = vmatprep.subr.mxu0 0.0
    %3083 = vmatpush1.msra.mxu0 0.0
    %3084 = vmatprep.subr.mxu0 0.0
    %3085 = vmatpush1.msra.mxu0 0.0
    %3086 = vmatprep.subr.mxu0 0.0
    %3087 = vmatpush1.msra.mxu0 0.0
    %3088 = vmatprep.subr.mxu0 0.0
    %3089 = vmatpush1.msra.mxu0 0.0
    %3090 = vmatprep.subr.mxu0 0.0
    %3091 = vmatpush1.msra.mxu0 0.0
    %3092 = vmatprep.subr.mxu0 0.0
    %3093 = vmatpush1.msra.mxu0 0.0
    %3094 = vmatprep.subr.mxu0 0.0
    %3095 = vmatpush1.msra.mxu0 0.0
    %3096 = vmatprep.subr.mxu0 0.0
    %3097 = vmatpush1.msra.mxu0 0.0
    %3098 = vmatprep.subr.mxu0 0.0
    %3099 = vmatpush1.msra.mxu0 %v2065
    %3100 = vmatprep.subr.mxu0 0.0
    %3101 = vmatpush1.msra.mxu0 %v2064
    %3102 = vmatprep.subr.mxu0 0.0
    %3103 = vmatpush1.msra.mxu0 %v2063
    %3104 = vmatprep.subr.mxu0 0.0
    %3105 = vmatpush1.msra.mxu0 %v2062
    %3106 = vmatprep.subr.mxu0 0.0
    %3107 = vmatpush2.msra.mxu0 0.0
    %3108 = vmatprep.subr.mxu0 0.0
    %3109 = vmatpush2.msra.mxu0 0.0
    %3110 = vmatprep.subr.mxu0 0.0
    %3111 = vmatpush2.msra.mxu0 0.0
    %3112 = vmatprep.subr.mxu0 0.0
    %3113 = vmatpush2.msra.mxu0 0.0
    %3114 = vmatprep.subr.mxu0 0.0
    %3115 = vmatpush2.msra.mxu0 0.0
    %3116 = vmatprep.subr.mxu0 0.0
    %3117 = vmatpush2.msra.mxu0 0.0
    %3118 = vmatprep.subr.mxu0 0.0
    %3119 = vmatpush2.msra.mxu0 0.0
    %3120 = vmatprep.subr.mxu0 0.0
    %3121 = vmatpush2.msra.mxu0 0.0
    %3122 = vmatprep.subr.mxu0 0.0
    %3123 = vmatpush2.msra.mxu0 0.0
    %3124 = vmatprep.subr.mxu0 0.0
    %3125 = vmatpush2.msra.mxu0 0.0
    %3126 = vmatprep.subr.mxu0 0.0
    %3127 = vmatpush2.msra.mxu0 0.0
    %3128 = vmatprep.subr.mxu0 0.0
    %3129 = vmatpush2.msra.mxu0 0.0
    %3130 = vmatprep.subr.mxu0 0.0
    %3131 = vmatpush2.msra.mxu0 0.0
    %3132 = vmatprep.subr.mxu0 0.0
    %3133 = vmatpush2.msra.mxu0 0.0
    %3134 = vmatprep.subr.mxu0 0.0
    %3135 = vmatpush2.msra.mxu0 0.0
    %3136 = vmatprep.subr.mxu0 0.0
    %3137 = vmatpush2.msra.mxu0 0.0
    %3138 = vmatprep.mubr.f32.mxu0 0.0
    %3139 = vmatmul.mubr.f32.gmra.mxu0 %v214
    %v3140 = vpop.f32.mrf.mxu0
    %v3141 = vadd.f32 0.0, %v3140
    %v3142 = vpop.f32.mrf.mxu0
    %3143 = vdwg.mxu0
    %v3145 = vrot.slane %v3141, 2
    %v3147 = vadd.f32 %v3071, %v3145
    %v3148 = vxor.u32 %v3147, 2147483648
    %v3149 = vmul.f32 %v3148, 1.442695
    %v3150 = vpow.pop %v3149
    %v3151 = vadd.f32 %v3150, 1.0
    %v3152 = vrcp.pop %v3151
    %v3153 = vmul.f32 1.0, %v3152
    %v3154 = vtanh.pop %v3147
    %v3155 = vmul.f32 %v3153, 0.0
    %3157 = vrot.lane.b32.xlu0 %v3154, 64
    %v3158 = vpop.permute.xlu0 %3157
    %v3160 = vmul.f32 %v3153, %v3158
    %3162 = vrot.lane.b32.xlu0 %v3160, 32
    %v3163 = vpop.permute.xlu0 %3162
    %v3165 = vadd.f32 %v3155, %v3163
    %v3166 = vtanh.pop %v3165
    %3168 = vrot.lane.b32.xlu0 %v3166, 64
    %v3169 = vpop.permute.xlu0 %3168
    %v3171 = vmul.f32 %v3153, %v3169
    %3173 = vrot.lane.b32.xlu0 %v2993, 32
    %v3174 = vpop.permute.xlu0 %3173
    %3177 = vrot.lane.b32.xlu0 %v3171, 64
    %v3178 = vpop.permute.xlu0 %3177
    %v3180 = vsel %vm212, %v3174, %v3178
    %v3181 = vld [vmem:[%s13] sm:$0xff]
    %v3182 = vld [vmem:[%s13 + $0x8] sm:$0xff]
    %v3183 = vld [vmem:[%s13 + $0x10] sm:$0xff]
    %v3184 = vld [vmem:[%s13 + $0x18] sm:$0xff]
    %v3185 = vld [vmem:[%s13 + $0x20] sm:$0xff]
    %v3186 = vld [vmem:[%s13 + $0x28] sm:$0xff]
    %v3187 = vld [vmem:[%s13 + $0x30] sm:$0xff]
    %v3188 = vld [vmem:[%s13 + $0x38] sm:$0xff]
    %v3189 = vld [vmem:[%s14] sm:$0x1]
    %v3191 = vlaneseq
    %v3192 = vshrl.u32 %v3191, 7
    %v3193 = vsub.s32 0, %v3192
    %v3194 = vrot.slane %v3189, %v3193
    %v3197 = vrot.slane %v3180, 6
    %v3198 = vsel %vm2073, %v3197, 0
    %3200 = vmatprep.subr.mxu0 0.0
    %3201 = vmatpush1.msra.mxu0 0.0
    %3202 = vmatprep.subr.mxu0 0.0
    %3203 = vmatpush1.msra.mxu0 0.0
    %3204 = vmatprep.subr.mxu0 0.0
    %3205 = vmatpush1.msra.mxu0 0.0
    %3206 = vmatprep.subr.mxu0 0.0
    %3207 = vmatpush1.msra.mxu0 0.0
    %3208 = vmatprep.subr.mxu0 0.0
    %3209 = vmatpush1.msra.mxu0 0.0
    %3210 = vmatprep.subr.mxu0 0.0
    %3211 = vmatpush1.msra.mxu0 0.0
    %3212 = vmatprep.subr.mxu0 0.0
    %3213 = vmatpush1.msra.mxu0 0.0
    %3214 = vmatprep.subr.mxu0 0.0
    %3215 = vmatpush1.msra.mxu0 0.0
    %3216 = vmatprep.subr.mxu0 0.0
    %3217 = vmatpush1.msra.mxu0 %v3188
    %3218 = vmatprep.subr.mxu0 0.0
    %3219 = vmatpush1.msra.mxu0 %v3187
    %3220 = vmatprep.subr.mxu0 0.0
    %3221 = vmatpush1.msra.mxu0 %v3186
    %3222 = vmatprep.subr.mxu0 0.0
    %3223 = vmatpush1.msra.mxu0 %v3185
    %3224 = vmatprep.subr.mxu0 0.0
    %3225 = vmatpush1.msra.mxu0 %v3184
    %3226 = vmatprep.subr.mxu0 0.0
    %3227 = vmatpush1.msra.mxu0 %v3183
    %3228 = vmatprep.subr.mxu0 0.0
    %3229 = vmatpush1.msra.mxu0 %v3182
    %3230 = vmatprep.subr.mxu0 0.0
    %3231 = vmatpush1.msra.mxu0 %v3181
    %3232 = vmatprep.subr.mxu0 0.0
    %3233 = vmatpush2.msra.mxu0 0.0
    %3234 = vmatprep.subr.mxu0 0.0
    %3235 = vmatpush2.msra.mxu0 0.0
    %3236 = vmatprep.subr.mxu0 0.0
    %3237 = vmatpush2.msra.mxu0 0.0
    %3238 = vmatprep.subr.mxu0 0.0
    %3239 = vmatpush2.msra.mxu0 0.0
    %3240 = vmatprep.subr.mxu0 0.0
    %3241 = vmatpush2.msra.mxu0 0.0
    %3242 = vmatprep.subr.mxu0 0.0
    %3243 = vmatpush2.msra.mxu0 0.0
    %3244 = vmatprep.subr.mxu0 0.0
    %3245 = vmatpush2.msra.mxu0 0.0
    %3246 = vmatprep.subr.mxu0 0.0
    %3247 = vmatpush2.msra.mxu0 0.0
    %3248 = vmatprep.subr.mxu0 0.0
    %3249 = vmatpush2.msra.mxu0 0.0
    %3250 = vmatprep.subr.mxu0 0.0
    %3251 = vmatpush2.msra.mxu0 0.0
    %3252 = vmatprep.subr.mxu0 0.0
    %3253 = vmatpush2.msra.mxu0 0.0
    %3254 = vmatprep.subr.mxu0 0.0
    %3255 = vmatpush2.msra.mxu0 0.0
    %3256 = vmatprep.subr.mxu0 0.0
    %3257 = vmatpush2.msra.mxu0 0.0
    %3258 = vmatprep.subr.mxu0 0.0
    %3259 = vmatpush2.msra.mxu0 0.0
    %3260 = vmatprep.subr.mxu0 0.0
    %3261 = vmatpush2.msra.mxu0 0.0
    %3262 = vmatprep.subr.mxu0 0.0
    %3263 = vmatpush2.msra.mxu0 0.0
    %3264 = vmatprep.mubr.f32.mxu0 0.0
    %3265 = vmatmul.mubr.f32.gmra.mxu0 %v3198
    %v3266 = vpop.f32.mrf.mxu0
    %v3267 = vadd.f32 %v3194, %v3266
    %v3268 = vpop.f32.mrf.mxu0
    %3269 = vdwg.mxu0
    %vm3270 = vcmask 25600
    %3271 = vst.msk [vmem:[#allocation10] sm:$0x3] %vm3270, %v3267
    // Predicated region
    $region78: #{lstm_predictor_forward.1} parent=1 // pred_check
      _
    $region79: #{lstm_predictor_forward.1} parent=1 // pred_check_branch
      %3273 = sbr.rel (0) target = $region81
    $region80: #{lstm_predictor_forward.1} parent=1 // pred_region
      %s3275 = ssub.s32 32, 32
      %3276 = vsyncadd [#allocation4], %s3275
      %s3278 = sshll.u32 [#allocation10], 4
      %s3279 = int_to_ptr.vmem [resolvable:$true] %s3278
      %3281 = dma.vmem_to_hbm [thread:$0]  %s3279, 32, %s15, [#allocation4]
    $region81: #{lstm_predictor_forward.1} parent=1 // pred_fallthru
      _
    // Predicated region
    $region82: #{lstm_predictor_forward.1} parent=1 // pred_check
      _
    $region83: #{lstm_predictor_forward.1} parent=1 // pred_check_branch
      %3283 = sbr.rel (0) target = $region85
    $region84: #{lstm_predictor_forward.1} parent=1 // pred_region
      %3284 = dma.done [#allocation4], 32
    $region85: #{lstm_predictor_forward.1} parent=1 // pred_fallthru
      _
    %3285 = vsyncpa [#allocation3], 1
    %3286 = vsyncpa [#allocation6], 1
    %3287 = vsyncpa [#allocation9], 1
    %3288 = vsyncpa [#allocation4], 1

</llo_original>
